<compile_context>
chip_gen: v6e
topology: v6e:2x2x1
jax: 0.10.0
libtpu: 0.0.40
codegen_flags: <defaults>
</compile_context>

<pallas_src>
import numpy as np
import jax
import jax.numpy as jnp
from jax.experimental import pallas as pl
from jax.experimental.pallas import tpu as pltpu

NROWS = 16               # padded node slots; column QCOL holds the query point
QCOL = NROWS - 1         # query column (node ids use 0 .. NROWS-2)
NUM_CLASSES = 3
H = 128                  # padded hidden width (true hidden dims are 100/100/30)
EPS_PD = 1e-6            # F.pairwise_distance eps (added to the difference, as in torch)
BIG = 1e30


# --------------------------- fused Pallas kernel -----------------------------

def _tree_forward_kernel(ptsT_ref, parent_ref, cls_ref,
                         w1_ref, b1_ref, w2_ref, b2_ref,
                         w3_ref, b3_ref, w4_ref, b4_ref,
                         out_ref, closest_ref):
    # ---- TransformNetwork on all node points + the query (nodes on lanes) ----
    x = ptsT_ref[...]                                                   # (2, NROWS)
    h = jnp.maximum(jnp.dot(w1_ref[...], x,
                            preferred_element_type=jnp.float32) + b1_ref[...], 0.0)
    h = jnp.maximum(jnp.dot(w2_ref[...], h,
                            preferred_element_type=jnp.float32) + b2_ref[...], 0.0)
    h = jnp.maximum(jnp.dot(w3_ref[...], h,
                            preferred_element_type=jnp.float32) + b3_ref[...], 0.0)
    emb = jnp.dot(w4_ref[...], h,
                  preferred_element_type=jnp.float32) + b4_ref[...]     # (2, NROWS)

    # ---- pairwise_distance(query, every node), p=2, torch eps semantics ------
    q = emb[:, QCOL:QCOL + 1]                                           # (2, 1)
    diff = emb - q + EPS_PD                                             # (2, NROWS)
    d2 = diff[0:1, :] * diff[0:1, :] + diff[1:2, :] * diff[1:2, :]
    d_all = jnp.sqrt(d2)                                                # (1, NROWS)

    row_ids = jax.lax.broadcasted_iota(jnp.int32, (1, NROWS), 1)        # (1, NROWS)
    parent = parent_ref[...]                  # (1, NROWS) int32; -1 = root/query/pad

    def nbhd_softmax(mask):
        # softmax(-dist) restricted to `mask`, plus first-argmin over masked dist.
        dm = jnp.where(mask, d_all, BIG)
        neg = jnp.where(mask, -d_all, -BIG)
        m = jnp.max(neg, axis=1, keepdims=True)
        e = jnp.where(mask, jnp.exp(neg - m), 0.0)
        s = jnp.sum(e, axis=1, keepdims=True)
        sm = e * pl.reciprocal(s, approx=True)                          # EUP recip
        min_d = jnp.min(dm, axis=1, keepdims=True)
        amin = jnp.min(jnp.where(dm <= min_d, row_ids, NROWS),
                       axis=1, keepdims=True)                           # (1,1) int32
        return sm, amin

    def step(_, carry):
        cur_mask, term1 = carry               # (1,NROWS) int32 one-hot, (1,1) f32
        cur_b = cur_mask > 0
        cur_id = jnp.min(jnp.where(cur_b, row_ids, NROWS), axis=1, keepdims=True)
        nbhd = jnp.logical_or(cur_b, parent == cur_id)   # [current] + children(current)
        sm, amin = nbhd_softmax(nbhd)
        max_p = jnp.max(sm, axis=1, keepdims=True)
        sum_p = jnp.sum(sm, axis=1, keepdims=True)
        last = max_p * pl.reciprocal(sum_p, approx=True)  # max_prob / sum(sm_dist)
        moved = amin != cur_id                            # (1,1) bool
        term1 = term1 + jnp.where(moved, jnp.log(last + 1e-4), 0.0)
        new_mask = jnp.where(moved, (row_ids == amin).astype(jnp.int32), cur_mask)
        return new_mask, term1

    init = ((row_ids == 0).astype(jnp.int32),             # start at the root (id 0)
            jnp.zeros((1, 1), jnp.float32))
    # Node ids strictly increase along any walk, so <= NROWS hops; extra
    # iterations after termination are exact no-ops (argmin stays == current).
    cur_mask, term1 = jax.lax.fori_loop(0, NROWS, step, init, unroll=True)

    # ---- 'Final' neighborhood: parent's neighborhood, or own if terminal==root
    cur_b = cur_mask > 0
    cur_id = jnp.min(jnp.where(cur_b, row_ids, NROWS), axis=1, keepdims=True)
    par_id = jnp.min(jnp.where(cur_b, parent, NROWS), axis=1, keepdims=True)
    fin_id = jnp.where(par_id >= 0, par_id, cur_id)
    fin_mask = jnp.logical_or(row_ids == fin_id, parent == fin_id)
    sm_f, _ = nbhd_softmax(fin_mask)
    probs = jnp.dot(sm_f, cls_ref[...], preferred_element_type=jnp.float32)  # (1, C)

    out_ref[...] = jnp.log(probs + 1e-4) + term1          # term2 (+ accumulated term1)
    closest_ref[...] = cur_id                              # terminal node id


_VMEM = pl.BlockSpec(memory_space=pltpu.MemorySpace.VMEM)

_fused_call = pl.pallas_call(
    _tree_forward_kernel,
    out_shape=(
        jax.ShapeDtypeStruct((1, NUM_CLASSES), jnp.float32),  # log-prob output
        jax.ShapeDtypeStruct((1, 1), jnp.int32),              # closest node id
    ),
    in_specs=[_VMEM] * 11,
    out_specs=(_VMEM, _VMEM),
)
_fused = jax.jit(_fused_call)


# ------------------------- parameter initialization --------------------------

def init_transform_params(key):
    # nn.Linear default init: U(-1/sqrt(fan_in), 1/sqrt(fan_in)) for weight & bias.
    # Weights stored as (out, in) (torch layout) and zero-padded to lane-dense 128
    # hidden widths; padding is exact (zero rows/cols + ReLU(0) = 0).
    dims = [(100, 2), (100, 100), (30, 100), (2, 30)]
    pads = [(H, 2), (H, H), (H, H), (2, H)]
    params = []
    for (fo, fi), (po, pi) in zip(dims, pads):
        key, k1, k2 = jax.random.split(key, 3)
        bound = 1.0 / np.sqrt(fi)
        w = jax.random.uniform(k1, (fo, fi), jnp.float32, -bound, bound)
        b = jax.random.uniform(k2, (fo, 1), jnp.float32, -bound, bound)
        wp = jnp.zeros((po, pi), jnp.float32).at[:fo, :fi].set(w)
        bp = jnp.zeros((po, 1), jnp.float32).at[:fo, :].set(b)
        params += [wp, bp]
    return params


# ------------------------------ boundary tree ---------------------------------

class DeepBoundaryTree:
    # TODO(synk): tree construction/mutation (train_tree's dict bookkeeping) is
    # data-dependent host control flow and stays on the host; only a padded
    # array snapshot (points / parents / one-hots) feeds the fused kernel.
    # TODO(synk): the module API is one query per forward; batching B queries per
    # launch (and sharding the batch across v7x's two TensorCores) would amortize
    # further but changes the interface.
    def __init__(self, params):
        self.params = params
        self.root = 0
        self.count = 1
        self.data = {self.root: None}     # id -> (x, y, y_onehot, parent)
        self.cnodes = {self.root: []}     # id -> children ids
        # Persistent padded device-input buffers, updated incrementally on insert
        # (no per-query Python rebuild loop).
        self._ptsT = np.zeros((2, NROWS), np.float32)
        self._parent = np.full((1, NROWS), -1, np.int32)
        self._onehot = np.zeros((NROWS, NUM_CLASSES), np.float32)

    def _set_node(self, idx, x, y_oh, parent):
        self._ptsT[:, idx] = np.asarray(x, np.float32).reshape(-1)
        self._onehot[idx, :] = np.asarray(y_oh, np.float32).reshape(-1)
        self._parent[0, idx] = -1 if parent is None else int(parent)

    def _run(self, x):
        # One fused kernel launch: MLP embed (all nodes + query) + full tree walk.
        self._ptsT[:, QCOL] = np.asarray(x, np.float32).reshape(-1)
        term2, closest = _fused(jnp.asarray(self._ptsT),
                                jnp.asarray(self._parent),
                                jnp.asarray(self._onehot),
                                *self.params)
        return term2, closest

    def query_tree(self, x, training=False):
        term2, closest = self._run(x)
        cid = int(np.asarray(closest)[0, 0])   # single D2H sync per query
        if training:
            return cid, term2
        return cid

    def train_tree(self, x, y, y_oh):
        if self.data[self.root] is None:
            self.data[self.root] = (x, y, y_oh, None)
            self._set_node(self.root, x, y_oh, None)
            return
        closest = self.query_tree(x, training=False)
        if int(self.data[closest][1]) != int(y):
            nid = self.count
            self.data[nid] = (x, y, y_oh, closest)
            self.cnodes[nid] = []
            self.cnodes[closest].append(nid)
            self._set_node(nid, x, y_oh, closest)
            self.count += 1
            assert self.count <= QCOL, "tree exceeded padded capacity"

    def forward(self, x):
        # Returns log(sum(sm_final @ classes, 0) + 1e-4) + sum_path log(max_prob + 1e-4),
        # fully computed in the fused kernel; shape (NUM_CLASSES,).
        term2, _ = self._run(x)
        return term2[0]


# ----------------------------------- main --------------------------------------

if __name__ == "__main__":
    key = jax.random.PRNGKey(0)
    kparams, kpts, klab, kq = jax.random.split(key, 4)

    params = init_transform_params(kparams)
    tree = DeepBoundaryTree(params)

    # Build a small deterministic boundary tree (the module's train_tree path).
    n_train = 8
    pts = np.asarray(jax.random.normal(kpts, (n_train, 2), jnp.float32))
    labels = np.asarray(jax.random.randint(klab, (n_train,), 0, NUM_CLASSES))
    for i in range(n_train):
        y = int(labels[i])
        y_oh = np.zeros((1, NUM_CLASSES), np.float32)
        y_oh[0, y] = 1.0
        tree.train_tree(pts[i:i + 1], y, y_oh)

    # Forward pass on a query point x of shape (1, 2)  (Linear(2, 100) input).
    xq = np.asarray(jax.random.normal(kq, (1, 2), jnp.float32))
    out = tree.forward(xq)
    jax.block_until_ready(out)
    print("KERNEL_OK")
</pallas_src>

<mosaic_0001>
module attributes {stable_mosaic.version = 11 : i64} {
  func.func @_tree_forward_kernel(%arg0: memref<2x16xf32, #tpu.memory_space<vmem>>, %arg1: memref<1x16xi32, #tpu.memory_space<vmem>>, %arg2: memref<16x3xf32, #tpu.memory_space<vmem>>, %arg3: memref<128x2xf32, #tpu.memory_space<vmem>>, %arg4: memref<128x1xf32, #tpu.memory_space<vmem>>, %arg5: memref<128x128xf32, #tpu.memory_space<vmem>>, %arg6: memref<128x1xf32, #tpu.memory_space<vmem>>, %arg7: memref<128x128xf32, #tpu.memory_space<vmem>>, %arg8: memref<128x1xf32, #tpu.memory_space<vmem>>, %arg9: memref<2x128xf32, #tpu.memory_space<vmem>>, %arg10: memref<2x1xf32, #tpu.memory_space<vmem>>, %arg11: memref<1x3xf32, #tpu.memory_space<vmem>>, %arg12: memref<1x1xi32, #tpu.memory_space<vmem>>) attributes {dimension_semantics = [], scalar_prefetch = 0 : i64, scratch_operands = 0 : i64, tpu.core_type = #tpu.core_type<tc>} {
    %c0 = arith.constant 0 : index
    %c0_0 = arith.constant 0 : index
    %0 = vector.load %arg0[%c0, %c0_0] : memref<2x16xf32, #tpu.memory_space<vmem>>, vector<2x16xf32>
    %c0_1 = arith.constant 0 : index
    %c0_2 = arith.constant 0 : index
    %1 = vector.load %arg3[%c0_1, %c0_2] : memref<128x2xf32, #tpu.memory_space<vmem>>, vector<128x2xf32>
    %cst = arith.constant dense<0.000000e+00> : vector<128x16xf32>
    %2 = tpu.matmul %1, %0, %cst {dimension_numbers = #tpu.dot_dimension_numbers<[1], [0], [0], [1], [0, 0, 1, 1], [], []>} : vector<128x2xf32>, vector<2x16xf32>, vector<128x16xf32> -> vector<128x16xf32>
    %c0_3 = arith.constant 0 : index
    %c0_4 = arith.constant 0 : index
    %3 = vector.load %arg4[%c0_3, %c0_4] : memref<128x1xf32, #tpu.memory_space<vmem>>, vector<128x1xf32>
    %4 = vector.broadcast %3 : vector<128x1xf32> to vector<128x16xf32>
    %5 = arith.addf %2, %4 : vector<128x16xf32>
    %cst_5 = arith.constant 0.000000e+00 : f32
    %6 = vector.broadcast %cst_5 : f32 to vector<128x16xf32>
    %7 = arith.maximumf %5, %6 : vector<128x16xf32>
    %c0_6 = arith.constant 0 : index
    %c0_7 = arith.constant 0 : index
    %8 = vector.load %arg5[%c0_6, %c0_7] : memref<128x128xf32, #tpu.memory_space<vmem>>, vector<128x128xf32>
    %cst_8 = arith.constant dense<0.000000e+00> : vector<128x16xf32>
    %9 = tpu.matmul %8, %7, %cst_8 {dimension_numbers = #tpu.dot_dimension_numbers<[1], [0], [0], [1], [0, 0, 1, 1], [], []>} : vector<128x128xf32>, vector<128x16xf32>, vector<128x16xf32> -> vector<128x16xf32>
    %c0_9 = arith.constant 0 : index
    %c0_10 = arith.constant 0 : index
    %10 = vector.load %arg6[%c0_9, %c0_10] : memref<128x1xf32, #tpu.memory_space<vmem>>, vector<128x1xf32>
    %11 = vector.broadcast %10 : vector<128x1xf32> to vector<128x16xf32>
    %12 = arith.addf %9, %11 : vector<128x16xf32>
    %cst_11 = arith.constant 0.000000e+00 : f32
    %13 = vector.broadcast %cst_11 : f32 to vector<128x16xf32>
    %14 = arith.maximumf %12, %13 : vector<128x16xf32>
    %c0_12 = arith.constant 0 : index
    %c0_13 = arith.constant 0 : index
    %15 = vector.load %arg7[%c0_12, %c0_13] : memref<128x128xf32, #tpu.memory_space<vmem>>, vector<128x128xf32>
    %cst_14 = arith.constant dense<0.000000e+00> : vector<128x16xf32>
    %16 = tpu.matmul %15, %14, %cst_14 {dimension_numbers = #tpu.dot_dimension_numbers<[1], [0], [0], [1], [0, 0, 1, 1], [], []>} : vector<128x128xf32>, vector<128x16xf32>, vector<128x16xf32> -> vector<128x16xf32>
    %c0_15 = arith.constant 0 : index
    %c0_16 = arith.constant 0 : index
    %17 = vector.load %arg8[%c0_15, %c0_16] : memref<128x1xf32, #tpu.memory_space<vmem>>, vector<128x1xf32>
    %18 = vector.broadcast %17 : vector<128x1xf32> to vector<128x16xf32>
    %19 = arith.addf %16, %18 : vector<128x16xf32>
    %cst_17 = arith.constant 0.000000e+00 : f32
    %20 = vector.broadcast %cst_17 : f32 to vector<128x16xf32>
    %21 = arith.maximumf %19, %20 : vector<128x16xf32>
    %c0_18 = arith.constant 0 : index
    %c0_19 = arith.constant 0 : index
    %22 = vector.load %arg9[%c0_18, %c0_19] : memref<2x128xf32, #tpu.memory_space<vmem>>, vector<2x128xf32>
    %cst_20 = arith.constant dense<0.000000e+00> : vector<2x16xf32>
    %23 = tpu.matmul %22, %21, %cst_20 {dimension_numbers = #tpu.dot_dimension_numbers<[1], [0], [0], [1], [0, 0, 1, 1], [], []>} : vector<2x128xf32>, vector<128x16xf32>, vector<2x16xf32> -> vector<2x16xf32>
    %c0_21 = arith.constant 0 : index
    %c0_22 = arith.constant 0 : index
    %24 = vector.load %arg10[%c0_21, %c0_22] : memref<2x1xf32, #tpu.memory_space<vmem>>, vector<2x1xf32>
    %25 = vector.broadcast %24 : vector<2x1xf32> to vector<2x16xf32>
    %26 = arith.addf %23, %25 : vector<2x16xf32>
    %27 = vector.extract_strided_slice %26 {offsets = [0, 15], sizes = [2, 1], strides = [1, 1]} : vector<2x16xf32> to vector<2x1xf32>
    %28 = vector.broadcast %27 : vector<2x1xf32> to vector<2x16xf32>
    %29 = arith.subf %26, %28 : vector<2x16xf32>
    %cst_23 = arith.constant 9.99999997E-7 : f32
    %30 = vector.broadcast %cst_23 : f32 to vector<2x16xf32>
    %31 = arith.addf %29, %30 : vector<2x16xf32>
    %32 = vector.extract_strided_slice %31 {offsets = [0, 0], sizes = [1, 16], strides = [1, 1]} : vector<2x16xf32> to vector<1x16xf32>
    %33 = vector.extract_strided_slice %31 {offsets = [0, 0], sizes = [1, 16], strides = [1, 1]} : vector<2x16xf32> to vector<1x16xf32>
    %34 = arith.mulf %32, %33 : vector<1x16xf32>
    %35 = vector.extract_strided_slice %31 {offsets = [1, 0], sizes = [1, 16], strides = [1, 1]} : vector<2x16xf32> to vector<1x16xf32>
    %36 = vector.extract_strided_slice %31 {offsets = [1, 0], sizes = [1, 16], strides = [1, 1]} : vector<2x16xf32> to vector<1x16xf32>
    %37 = arith.mulf %35, %36 : vector<1x16xf32>
    %38 = arith.addf %34, %37 : vector<1x16xf32>
    %39 = math.sqrt %38 : vector<1x16xf32>
    %40 = tpu.iota {dimensions = array<i32: 1>} : vector<1x16xi32>
    %c0_24 = arith.constant 0 : index
    %c0_25 = arith.constant 0 : index
    %41 = vector.load %arg1[%c0_24, %c0_25] : memref<1x16xi32, #tpu.memory_space<vmem>>, vector<1x16xi32>
    %c0_i32 = arith.constant 0 : i32
    %42 = vector.broadcast %c0_i32 : i32 to vector<1x16xi32>
    %43 = arith.cmpi eq, %40, %42 : vector<1x16xi32>
    %44 = arith.extui %43 : vector<1x16xi1> to vector<1x16xi32>
    %cst_26 = arith.constant 0.000000e+00 : f32
    %45 = vector.broadcast %cst_26 : f32 to vector<1x1xf32>
    %c0_i32_27 = arith.constant 0 : i32
    %c0_i32_28 = arith.constant 0 : i32
    %46 = vector.broadcast %c0_i32_28 : i32 to vector<1x16xi32>
    %47 = arith.cmpi sgt, %44, %46 : vector<1x16xi32>
    %c16_i32 = arith.constant 16 : i32
    %48 = vector.broadcast %c16_i32 : i32 to vector<1x16xi32>
    %49 = arith.select %47, %40, %48 : vector<1x16xi1>, vector<1x16xi32>
    %cst_29 = arith.constant dense<2147483647> : vector<1xi32>
    %50 = vector.multi_reduction <minsi>, %49, %cst_29 [1] : vector<1x16xi32> to vector<1xi32>
    %51 = vector.shape_cast %50 : vector<1xi32> to vector<1x1xi32>
    %52 = vector.broadcast %51 : vector<1x1xi32> to vector<1x16xi32>
    %53 = arith.cmpi eq, %41, %52 : vector<1x16xi32>
    %54 = arith.ori %47, %53 : vector<1x16xi1>
    %cst_30 = arith.constant 1.000000e+30 : f32
    %55 = vector.broadcast %cst_30 : f32 to vector<1x16xf32>
    %56 = arith.select %54, %39, %55 : vector<1x16xi1>, vector<1x16xf32>
    %cst_31 = arith.constant 0.000000e+00 : f32
    %57 = vector.broadcast %cst_31 : f32 to vector<1x16xf32>
    %58 = arith.subf %57, %39 : vector<1x16xf32>
    %cst_32 = arith.constant -1.000000e+30 : f32
    %59 = vector.broadcast %cst_32 : f32 to vector<1x16xf32>
    %60 = arith.select %54, %58, %59 : vector<1x16xi1>, vector<1x16xf32>
    %cst_33 = arith.constant dense<0xFF800000> : vector<1xf32>
    %61 = vector.multi_reduction <maximumf>, %60, %cst_33 [1] : vector<1x16xf32> to vector<1xf32>
    %62 = vector.shape_cast %61 : vector<1xf32> to vector<1x1xf32>
    %63 = vector.broadcast %62 : vector<1x1xf32> to vector<1x16xf32>
    %64 = arith.subf %60, %63 : vector<1x16xf32>
    %65 = math.exp %64 : vector<1x16xf32>
    %cst_34 = arith.constant 0.000000e+00 : f32
    %66 = vector.broadcast %cst_34 : f32 to vector<1x16xf32>
    %67 = arith.select %54, %65, %66 : vector<1x16xi1>, vector<1x16xf32>
    %cst_35 = arith.constant dense<0.000000e+00> : vector<1xf32>
    %68 = vector.multi_reduction <add>, %67, %cst_35 [1] : vector<1x16xf32> to vector<1xf32>
    %69 = vector.shape_cast %68 : vector<1xf32> to vector<1x1xf32>
    %70 = tpu.reciprocal %69 {approx = true} : vector<1x1xf32> -> vector<1x1xf32>
    %71 = vector.broadcast %70 : vector<1x1xf32> to vector<1x16xf32>
    %72 = arith.mulf %67, %71 : vector<1x16xf32>
    %cst_36 = arith.constant dense<0x7F800000> : vector<1xf32>
    %73 = vector.multi_reduction <minimumf>, %56, %cst_36 [1] : vector<1x16xf32> to vector<1xf32>
    %74 = vector.shape_cast %73 : vector<1xf32> to vector<1x1xf32>
    %75 = vector.broadcast %74 : vector<1x1xf32> to vector<1x16xf32>
    %76 = arith.cmpf ole, %56, %75 : vector<1x16xf32>
    %c16_i32_37 = arith.constant 16 : i32
    %77 = vector.broadcast %c16_i32_37 : i32 to vector<1x16xi32>
    %78 = arith.select %76, %40, %77 : vector<1x16xi1>, vector<1x16xi32>
    %cst_38 = arith.constant dense<2147483647> : vector<1xi32>
    %79 = vector.multi_reduction <minsi>, %78, %cst_38 [1] : vector<1x16xi32> to vector<1xi32>
    %80 = vector.shape_cast %79 : vector<1xi32> to vector<1x1xi32>
    %cst_39 = arith.constant dense<0xFF800000> : vector<1xf32>
    %81 = vector.multi_reduction <maximumf>, %72, %cst_39 [1] : vector<1x16xf32> to vector<1xf32>
    %82 = vector.shape_cast %81 : vector<1xf32> to vector<1x1xf32>
    %cst_40 = arith.constant dense<0.000000e+00> : vector<1xf32>
    %83 = vector.multi_reduction <add>, %72, %cst_40 [1] : vector<1x16xf32> to vector<1xf32>
    %84 = vector.shape_cast %83 : vector<1xf32> to vector<1x1xf32>
    %85 = tpu.reciprocal %84 {approx = true} : vector<1x1xf32> -> vector<1x1xf32>
    %86 = arith.mulf %82, %85 : vector<1x1xf32>
    %87 = arith.cmpi ne, %80, %51 : vector<1x1xi32>
    %cst_41 = arith.constant 9.99999974E-5 : f32
    %88 = vector.broadcast %cst_41 : f32 to vector<1x1xf32>
    %89 = arith.addf %86, %88 : vector<1x1xf32>
    %90 = math.log %89 : vector<1x1xf32>
    %cst_42 = arith.constant 0.000000e+00 : f32
    %91 = vector.broadcast %cst_42 : f32 to vector<1x1xf32>
    %92 = arith.select %87, %90, %91 : vector<1x1xi1>, vector<1x1xf32>
    %93 = arith.addf %45, %92 : vector<1x1xf32>
    %94 = vector.broadcast %80 : vector<1x1xi32> to vector<1x16xi32>
    %95 = arith.cmpi eq, %40, %94 : vector<1x16xi32>
    %96 = arith.extui %95 : vector<1x16xi1> to vector<1x16xi32>
    %97 = vector.shape_cast %87 : vector<1x1xi1> to vector<1x1xi1>
    %98 = vector.broadcast %97 : vector<1x1xi1> to vector<1x16xi1>
    %99 = arith.select %98, %96, %44 : vector<1x16xi1>, vector<1x16xi32>
    %c1_i32 = arith.constant 1 : i32
    %c0_i32_43 = arith.constant 0 : i32
    %100 = vector.broadcast %c0_i32_43 : i32 to vector<1x16xi32>
    %101 = arith.cmpi sgt, %99, %100 : vector<1x16xi32>
    %c16_i32_44 = arith.constant 16 : i32
    %102 = vector.broadcast %c16_i32_44 : i32 to vector<1x16xi32>
    %103 = arith.select %101, %40, %102 : vector<1x16xi1>, vector<1x16xi32>
    %cst_45 = arith.constant dense<2147483647> : vector<1xi32>
    %104 = vector.multi_reduction <minsi>, %103, %cst_45 [1] : vector<1x16xi32> to vector<1xi32>
    %105 = vector.shape_cast %104 : vector<1xi32> to vector<1x1xi32>
    %106 = vector.broadcast %105 : vector<1x1xi32> to vector<1x16xi32>
    %107 = arith.cmpi eq, %41, %106 : vector<1x16xi32>
    %108 = arith.ori %101, %107 : vector<1x16xi1>
    %cst_46 = arith.constant 1.000000e+30 : f32
    %109 = vector.broadcast %cst_46 : f32 to vector<1x16xf32>
    %110 = arith.select %108, %39, %109 : vector<1x16xi1>, vector<1x16xf32>
    %cst_47 = arith.constant 0.000000e+00 : f32
    %111 = vector.broadcast %cst_47 : f32 to vector<1x16xf32>
    %112 = arith.subf %111, %39 : vector<1x16xf32>
    %cst_48 = arith.constant -1.000000e+30 : f32
    %113 = vector.broadcast %cst_48 : f32 to vector<1x16xf32>
    %114 = arith.select %108, %112, %113 : vector<1x16xi1>, vector<1x16xf32>
    %cst_49 = arith.constant dense<0xFF800000> : vector<1xf32>
    %115 = vector.multi_reduction <maximumf>, %114, %cst_49 [1] : vector<1x16xf32> to vector<1xf32>
    %116 = vector.shape_cast %115 : vector<1xf32> to vector<1x1xf32>
    %117 = vector.broadcast %116 : vector<1x1xf32> to vector<1x16xf32>
    %118 = arith.subf %114, %117 : vector<1x16xf32>
    %119 = math.exp %118 : vector<1x16xf32>
    %cst_50 = arith.constant 0.000000e+00 : f32
    %120 = vector.broadcast %cst_50 : f32 to vector<1x16xf32>
    %121 = arith.select %108, %119, %120 : vector<1x16xi1>, vector<1x16xf32>
    %cst_51 = arith.constant dense<0.000000e+00> : vector<1xf32>
    %122 = vector.multi_reduction <add>, %121, %cst_51 [1] : vector<1x16xf32> to vector<1xf32>
    %123 = vector.shape_cast %122 : vector<1xf32> to vector<1x1xf32>
    %124 = tpu.reciprocal %123 {approx = true} : vector<1x1xf32> -> vector<1x1xf32>
    %125 = vector.broadcast %124 : vector<1x1xf32> to vector<1x16xf32>
    %126 = arith.mulf %121, %125 : vector<1x16xf32>
    %cst_52 = arith.constant dense<0x7F800000> : vector<1xf32>
    %127 = vector.multi_reduction <minimumf>, %110, %cst_52 [1] : vector<1x16xf32> to vector<1xf32>
    %128 = vector.shape_cast %127 : vector<1xf32> to vector<1x1xf32>
    %129 = vector.broadcast %128 : vector<1x1xf32> to vector<1x16xf32>
    %130 = arith.cmpf ole, %110, %129 : vector<1x16xf32>
    %c16_i32_53 = arith.constant 16 : i32
    %131 = vector.broadcast %c16_i32_53 : i32 to vector<1x16xi32>
    %132 = arith.select %130, %40, %131 : vector<1x16xi1>, vector<1x16xi32>
    %cst_54 = arith.constant dense<2147483647> : vector<1xi32>
    %133 = vector.multi_reduction <minsi>, %132, %cst_54 [1] : vector<1x16xi32> to vector<1xi32>
    %134 = vector.shape_cast %133 : vector<1xi32> to vector<1x1xi32>
    %cst_55 = arith.constant dense<0xFF800000> : vector<1xf32>
    %135 = vector.multi_reduction <maximumf>, %126, %cst_55 [1] : vector<1x16xf32> to vector<1xf32>
    %136 = vector.shape_cast %135 : vector<1xf32> to vector<1x1xf32>
    %cst_56 = arith.constant dense<0.000000e+00> : vector<1xf32>
    %137 = vector.multi_reduction <add>, %126, %cst_56 [1] : vector<1x16xf32> to vector<1xf32>
    %138 = vector.shape_cast %137 : vector<1xf32> to vector<1x1xf32>
    %139 = tpu.reciprocal %138 {approx = true} : vector<1x1xf32> -> vector<1x1xf32>
    %140 = arith.mulf %136, %139 : vector<1x1xf32>
    %141 = arith.cmpi ne, %134, %105 : vector<1x1xi32>
    %cst_57 = arith.constant 9.99999974E-5 : f32
    %142 = vector.broadcast %cst_57 : f32 to vector<1x1xf32>
    %143 = arith.addf %140, %142 : vector<1x1xf32>
    %144 = math.log %143 : vector<1x1xf32>
    %cst_58 = arith.constant 0.000000e+00 : f32
    %145 = vector.broadcast %cst_58 : f32 to vector<1x1xf32>
    %146 = arith.select %141, %144, %145 : vector<1x1xi1>, vector<1x1xf32>
    %147 = arith.addf %93, %146 : vector<1x1xf32>
    %148 = vector.broadcast %134 : vector<1x1xi32> to vector<1x16xi32>
    %149 = arith.cmpi eq, %40, %148 : vector<1x16xi32>
    %150 = arith.extui %149 : vector<1x16xi1> to vector<1x16xi32>
    %151 = vector.shape_cast %141 : vector<1x1xi1> to vector<1x1xi1>
    %152 = vector.broadcast %151 : vector<1x1xi1> to vector<1x16xi1>
    %153 = arith.select %152, %150, %99 : vector<1x16xi1>, vector<1x16xi32>
    %c2_i32 = arith.constant 2 : i32
    %c0_i32_59 = arith.constant 0 : i32
    %154 = vector.broadcast %c0_i32_59 : i32 to vector<1x16xi32>
    %155 = arith.cmpi sgt, %153, %154 : vector<1x16xi32>
    %c16_i32_60 = arith.constant 16 : i32
    %156 = vector.broadcast %c16_i32_60 : i32 to vector<1x16xi32>
    %157 = arith.select %155, %40, %156 : vector<1x16xi1>, vector<1x16xi32>
    %cst_61 = arith.constant dense<2147483647> : vector<1xi32>
    %158 = vector.multi_reduction <minsi>, %157, %cst_61 [1] : vector<1x16xi32> to vector<1xi32>
    %159 = vector.shape_cast %158 : vector<1xi32> to vector<1x1xi32>
    %160 = vector.broadcast %159 : vector<1x1xi32> to vector<1x16xi32>
    %161 = arith.cmpi eq, %41, %160 : vector<1x16xi32>
    %162 = arith.ori %155, %161 : vector<1x16xi1>
    %cst_62 = arith.constant 1.000000e+30 : f32
    %163 = vector.broadcast %cst_62 : f32 to vector<1x16xf32>
    %164 = arith.select %162, %39, %163 : vector<1x16xi1>, vector<1x16xf32>
    %cst_63 = arith.constant 0.000000e+00 : f32
    %165 = vector.broadcast %cst_63 : f32 to vector<1x16xf32>
    %166 = arith.subf %165, %39 : vector<1x16xf32>
    %cst_64 = arith.constant -1.000000e+30 : f32
    %167 = vector.broadcast %cst_64 : f32 to vector<1x16xf32>
    %168 = arith.select %162, %166, %167 : vector<1x16xi1>, vector<1x16xf32>
    %cst_65 = arith.constant dense<0xFF800000> : vector<1xf32>
    %169 = vector.multi_reduction <maximumf>, %168, %cst_65 [1] : vector<1x16xf32> to vector<1xf32>
    %170 = vector.shape_cast %169 : vector<1xf32> to vector<1x1xf32>
    %171 = vector.broadcast %170 : vector<1x1xf32> to vector<1x16xf32>
    %172 = arith.subf %168, %171 : vector<1x16xf32>
    %173 = math.exp %172 : vector<1x16xf32>
    %cst_66 = arith.constant 0.000000e+00 : f32
    %174 = vector.broadcast %cst_66 : f32 to vector<1x16xf32>
    %175 = arith.select %162, %173, %174 : vector<1x16xi1>, vector<1x16xf32>
    %cst_67 = arith.constant dense<0.000000e+00> : vector<1xf32>
    %176 = vector.multi_reduction <add>, %175, %cst_67 [1] : vector<1x16xf32> to vector<1xf32>
    %177 = vector.shape_cast %176 : vector<1xf32> to vector<1x1xf32>
    %178 = tpu.reciprocal %177 {approx = true} : vector<1x1xf32> -> vector<1x1xf32>
    %179 = vector.broadcast %178 : vector<1x1xf32> to vector<1x16xf32>
    %180 = arith.mulf %175, %179 : vector<1x16xf32>
    %cst_68 = arith.constant dense<0x7F800000> : vector<1xf32>
    %181 = vector.multi_reduction <minimumf>, %164, %cst_68 [1] : vector<1x16xf32> to vector<1xf32>
    %182 = vector.shape_cast %181 : vector<1xf32> to vector<1x1xf32>
    %183 = vector.broadcast %182 : vector<1x1xf32> to vector<1x16xf32>
    %184 = arith.cmpf ole, %164, %183 : vector<1x16xf32>
    %c16_i32_69 = arith.constant 16 : i32
    %185 = vector.broadcast %c16_i32_69 : i32 to vector<1x16xi32>
    %186 = arith.select %184, %40, %185 : vector<1x16xi1>, vector<1x16xi32>
    %cst_70 = arith.constant dense<2147483647> : vector<1xi32>
    %187 = vector.multi_reduction <minsi>, %186, %cst_70 [1] : vector<1x16xi32> to vector<1xi32>
    %188 = vector.shape_cast %187 : vector<1xi32> to vector<1x1xi32>
    %cst_71 = arith.constant dense<0xFF800000> : vector<1xf32>
    %189 = vector.multi_reduction <maximumf>, %180, %cst_71 [1] : vector<1x16xf32> to vector<1xf32>
    %190 = vector.shape_cast %189 : vector<1xf32> to vector<1x1xf32>
    %cst_72 = arith.constant dense<0.000000e+00> : vector<1xf32>
    %191 = vector.multi_reduction <add>, %180, %cst_72 [1] : vector<1x16xf32> to vector<1xf32>
    %192 = vector.shape_cast %191 : vector<1xf32> to vector<1x1xf32>
    %193 = tpu.reciprocal %192 {approx = true} : vector<1x1xf32> -> vector<1x1xf32>
    %194 = arith.mulf %190, %193 : vector<1x1xf32>
    %195 = arith.cmpi ne, %188, %159 : vector<1x1xi32>
    %cst_73 = arith.constant 9.99999974E-5 : f32
    %196 = vector.broadcast %cst_73 : f32 to vector<1x1xf32>
    %197 = arith.addf %194, %196 : vector<1x1xf32>
    %198 = math.log %197 : vector<1x1xf32>
    %cst_74 = arith.constant 0.000000e+00 : f32
    %199 = vector.broadcast %cst_74 : f32 to vector<1x1xf32>
    %200 = arith.select %195, %198, %199 : vector<1x1xi1>, vector<1x1xf32>
    %201 = arith.addf %147, %200 : vector<1x1xf32>
    %202 = vector.broadcast %188 : vector<1x1xi32> to vector<1x16xi32>
    %203 = arith.cmpi eq, %40, %202 : vector<1x16xi32>
    %204 = arith.extui %203 : vector<1x16xi1> to vector<1x16xi32>
    %205 = vector.shape_cast %195 : vector<1x1xi1> to vector<1x1xi1>
    %206 = vector.broadcast %205 : vector<1x1xi1> to vector<1x16xi1>
    %207 = arith.select %206, %204, %153 : vector<1x16xi1>, vector<1x16xi32>
    %c3_i32 = arith.constant 3 : i32
    %c0_i32_75 = arith.constant 0 : i32
    %208 = vector.broadcast %c0_i32_75 : i32 to vector<1x16xi32>
    %209 = arith.cmpi sgt, %207, %208 : vector<1x16xi32>
    %c16_i32_76 = arith.constant 16 : i32
    %210 = vector.broadcast %c16_i32_76 : i32 to vector<1x16xi32>
    %211 = arith.select %209, %40, %210 : vector<1x16xi1>, vector<1x16xi32>
    %cst_77 = arith.constant dense<2147483647> : vector<1xi32>
    %212 = vector.multi_reduction <minsi>, %211, %cst_77 [1] : vector<1x16xi32> to vector<1xi32>
    %213 = vector.shape_cast %212 : vector<1xi32> to vector<1x1xi32>
    %214 = vector.broadcast %213 : vector<1x1xi32> to vector<1x16xi32>
    %215 = arith.cmpi eq, %41, %214 : vector<1x16xi32>
    %216 = arith.ori %209, %215 : vector<1x16xi1>
    %cst_78 = arith.constant 1.000000e+30 : f32
    %217 = vector.broadcast %cst_78 : f32 to vector<1x16xf32>
    %218 = arith.select %216, %39, %217 : vector<1x16xi1>, vector<1x16xf32>
    %cst_79 = arith.constant 0.000000e+00 : f32
    %219 = vector.broadcast %cst_79 : f32 to vector<1x16xf32>
    %220 = arith.subf %219, %39 : vector<1x16xf32>
    %cst_80 = arith.constant -1.000000e+30 : f32
    %221 = vector.broadcast %cst_80 : f32 to vector<1x16xf32>
    %222 = arith.select %216, %220, %221 : vector<1x16xi1>, vector<1x16xf32>
    %cst_81 = arith.constant dense<0xFF800000> : vector<1xf32>
    %223 = vector.multi_reduction <maximumf>, %222, %cst_81 [1] : vector<1x16xf32> to vector<1xf32>
    %224 = vector.shape_cast %223 : vector<1xf32> to vector<1x1xf32>
    %225 = vector.broadcast %224 : vector<1x1xf32> to vector<1x16xf32>
    %226 = arith.subf %222, %225 : vector<1x16xf32>
    %227 = math.exp %226 : vector<1x16xf32>
    %cst_82 = arith.constant 0.000000e+00 : f32
    %228 = vector.broadcast %cst_82 : f32 to vector<1x16xf32>
    %229 = arith.select %216, %227, %228 : vector<1x16xi1>, vector<1x16xf32>
    %cst_83 = arith.constant dense<0.000000e+00> : vector<1xf32>
    %230 = vector.multi_reduction <add>, %229, %cst_83 [1] : vector<1x16xf32> to vector<1xf32>
    %231 = vector.shape_cast %230 : vector<1xf32> to vector<1x1xf32>
    %232 = tpu.reciprocal %231 {approx = true} : vector<1x1xf32> -> vector<1x1xf32>
    %233 = vector.broadcast %232 : vector<1x1xf32> to vector<1x16xf32>
    %234 = arith.mulf %229, %233 : vector<1x16xf32>
    %cst_84 = arith.constant dense<0x7F800000> : vector<1xf32>
    %235 = vector.multi_reduction <minimumf>, %218, %cst_84 [1] : vector<1x16xf32> to vector<1xf32>
    %236 = vector.shape_cast %235 : vector<1xf32> to vector<1x1xf32>
    %237 = vector.broadcast %236 : vector<1x1xf32> to vector<1x16xf32>
    %238 = arith.cmpf ole, %218, %237 : vector<1x16xf32>
    %c16_i32_85 = arith.constant 16 : i32
    %239 = vector.broadcast %c16_i32_85 : i32 to vector<1x16xi32>
    %240 = arith.select %238, %40, %239 : vector<1x16xi1>, vector<1x16xi32>
    %cst_86 = arith.constant dense<2147483647> : vector<1xi32>
    %241 = vector.multi_reduction <minsi>, %240, %cst_86 [1] : vector<1x16xi32> to vector<1xi32>
    %242 = vector.shape_cast %241 : vector<1xi32> to vector<1x1xi32>
    %cst_87 = arith.constant dense<0xFF800000> : vector<1xf32>
    %243 = vector.multi_reduction <maximumf>, %234, %cst_87 [1] : vector<1x16xf32> to vector<1xf32>
    %244 = vector.shape_cast %243 : vector<1xf32> to vector<1x1xf32>
    %cst_88 = arith.constant dense<0.000000e+00> : vector<1xf32>
    %245 = vector.multi_reduction <add>, %234, %cst_88 [1] : vector<1x16xf32> to vector<1xf32>
    %246 = vector.shape_cast %245 : vector<1xf32> to vector<1x1xf32>
    %247 = tpu.reciprocal %246 {approx = true} : vector<1x1xf32> -> vector<1x1xf32>
    %248 = arith.mulf %244, %247 : vector<1x1xf32>
    %249 = arith.cmpi ne, %242, %213 : vector<1x1xi32>
    %cst_89 = arith.constant 9.99999974E-5 : f32
    %250 = vector.broadcast %cst_89 : f32 to vector<1x1xf32>
    %251 = arith.addf %248, %250 : vector<1x1xf32>
    %252 = math.log %251 : vector<1x1xf32>
    %cst_90 = arith.constant 0.000000e+00 : f32
    %253 = vector.broadcast %cst_90 : f32 to vector<1x1xf32>
    %254 = arith.select %249, %252, %253 : vector<1x1xi1>, vector<1x1xf32>
    %255 = arith.addf %201, %254 : vector<1x1xf32>
    %256 = vector.broadcast %242 : vector<1x1xi32> to vector<1x16xi32>
    %257 = arith.cmpi eq, %40, %256 : vector<1x16xi32>
    %258 = arith.extui %257 : vector<1x16xi1> to vector<1x16xi32>
    %259 = vector.shape_cast %249 : vector<1x1xi1> to vector<1x1xi1>
    %260 = vector.broadcast %259 : vector<1x1xi1> to vector<1x16xi1>
    %261 = arith.select %260, %258, %207 : vector<1x16xi1>, vector<1x16xi32>
    %c4_i32 = arith.constant 4 : i32
    %c0_i32_91 = arith.constant 0 : i32
    %262 = vector.broadcast %c0_i32_91 : i32 to vector<1x16xi32>
    %263 = arith.cmpi sgt, %261, %262 : vector<1x16xi32>
    %c16_i32_92 = arith.constant 16 : i32
    %264 = vector.broadcast %c16_i32_92 : i32 to vector<1x16xi32>
    %265 = arith.select %263, %40, %264 : vector<1x16xi1>, vector<1x16xi32>
    %cst_93 = arith.constant dense<2147483647> : vector<1xi32>
    %266 = vector.multi_reduction <minsi>, %265, %cst_93 [1] : vector<1x16xi32> to vector<1xi32>
    %267 = vector.shape_cast %266 : vector<1xi32> to vector<1x1xi32>
    %268 = vector.broadcast %267 : vector<1x1xi32> to vector<1x16xi32>
    %269 = arith.cmpi eq, %41, %268 : vector<1x16xi32>
    %270 = arith.ori %263, %269 : vector<1x16xi1>
    %cst_94 = arith.constant 1.000000e+30 : f32
    %271 = vector.broadcast %cst_94 : f32 to vector<1x16xf32>
    %272 = arith.select %270, %39, %271 : vector<1x16xi1>, vector<1x16xf32>
    %cst_95 = arith.constant 0.000000e+00 : f32
    %273 = vector.broadcast %cst_95 : f32 to vector<1x16xf32>
    %274 = arith.subf %273, %39 : vector<1x16xf32>
    %cst_96 = arith.constant -1.000000e+30 : f32
    %275 = vector.broadcast %cst_96 : f32 to vector<1x16xf32>
    %276 = arith.select %270, %274, %275 : vector<1x16xi1>, vector<1x16xf32>
    %cst_97 = arith.constant dense<0xFF800000> : vector<1xf32>
    %277 = vector.multi_reduction <maximumf>, %276, %cst_97 [1] : vector<1x16xf32> to vector<1xf32>
    %278 = vector.shape_cast %277 : vector<1xf32> to vector<1x1xf32>
    %279 = vector.broadcast %278 : vector<1x1xf32> to vector<1x16xf32>
    %280 = arith.subf %276, %279 : vector<1x16xf32>
    %281 = math.exp %280 : vector<1x16xf32>
    %cst_98 = arith.constant 0.000000e+00 : f32
    %282 = vector.broadcast %cst_98 : f32 to vector<1x16xf32>
    %283 = arith.select %270, %281, %282 : vector<1x16xi1>, vector<1x16xf32>
    %cst_99 = arith.constant dense<0.000000e+00> : vector<1xf32>
    %284 = vector.multi_reduction <add>, %283, %cst_99 [1] : vector<1x16xf32> to vector<1xf32>
    %285 = vector.shape_cast %284 : vector<1xf32> to vector<1x1xf32>
    %286 = tpu.reciprocal %285 {approx = true} : vector<1x1xf32> -> vector<1x1xf32>
    %287 = vector.broadcast %286 : vector<1x1xf32> to vector<1x16xf32>
    %288 = arith.mulf %283, %287 : vector<1x16xf32>
    %cst_100 = arith.constant dense<0x7F800000> : vector<1xf32>
    %289 = vector.multi_reduction <minimumf>, %272, %cst_100 [1] : vector<1x16xf32> to vector<1xf32>
    %290 = vector.shape_cast %289 : vector<1xf32> to vector<1x1xf32>
    %291 = vector.broadcast %290 : vector<1x1xf32> to vector<1x16xf32>
    %292 = arith.cmpf ole, %272, %291 : vector<1x16xf32>
    %c16_i32_101 = arith.constant 16 : i32
    %293 = vector.broadcast %c16_i32_101 : i32 to vector<1x16xi32>
    %294 = arith.select %292, %40, %293 : vector<1x16xi1>, vector<1x16xi32>
    %cst_102 = arith.constant dense<2147483647> : vector<1xi32>
    %295 = vector.multi_reduction <minsi>, %294, %cst_102 [1] : vector<1x16xi32> to vector<1xi32>
    %296 = vector.shape_cast %295 : vector<1xi32> to vector<1x1xi32>
    %cst_103 = arith.constant dense<0xFF800000> : vector<1xf32>
    %297 = vector.multi_reduction <maximumf>, %288, %cst_103 [1] : vector<1x16xf32> to vector<1xf32>
    %298 = vector.shape_cast %297 : vector<1xf32> to vector<1x1xf32>
    %cst_104 = arith.constant dense<0.000000e+00> : vector<1xf32>
    %299 = vector.multi_reduction <add>, %288, %cst_104 [1] : vector<1x16xf32> to vector<1xf32>
    %300 = vector.shape_cast %299 : vector<1xf32> to vector<1x1xf32>
    %301 = tpu.reciprocal %300 {approx = true} : vector<1x1xf32> -> vector<1x1xf32>
    %302 = arith.mulf %298, %301 : vector<1x1xf32>
    %303 = arith.cmpi ne, %296, %267 : vector<1x1xi32>
    %cst_105 = arith.constant 9.99999974E-5 : f32
    %304 = vector.broadcast %cst_105 : f32 to vector<1x1xf32>
    %305 = arith.addf %302, %304 : vector<1x1xf32>
    %306 = math.log %305 : vector<1x1xf32>
    %cst_106 = arith.constant 0.000000e+00 : f32
    %307 = vector.broadcast %cst_106 : f32 to vector<1x1xf32>
    %308 = arith.select %303, %306, %307 : vector<1x1xi1>, vector<1x1xf32>
    %309 = arith.addf %255, %308 : vector<1x1xf32>
    %310 = vector.broadcast %296 : vector<1x1xi32> to vector<1x16xi32>
    %311 = arith.cmpi eq, %40, %310 : vector<1x16xi32>
    %312 = arith.extui %311 : vector<1x16xi1> to vector<1x16xi32>
    %313 = vector.shape_cast %303 : vector<1x1xi1> to vector<1x1xi1>
    %314 = vector.broadcast %313 : vector<1x1xi1> to vector<1x16xi1>
    %315 = arith.select %314, %312, %261 : vector<1x16xi1>, vector<1x16xi32>
    %c5_i32 = arith.constant 5 : i32
    %c0_i32_107 = arith.constant 0 : i32
    %316 = vector.broadcast %c0_i32_107 : i32 to vector<1x16xi32>
    %317 = arith.cmpi sgt, %315, %316 : vector<1x16xi32>
    %c16_i32_108 = arith.constant 16 : i32
    %318 = vector.broadcast %c16_i32_108 : i32 to vector<1x16xi32>
    %319 = arith.select %317, %40, %318 : vector<1x16xi1>, vector<1x16xi32>
    %cst_109 = arith.constant dense<2147483647> : vector<1xi32>
    %320 = vector.multi_reduction <minsi>, %319, %cst_109 [1] : vector<1x16xi32> to vector<1xi32>
    %321 = vector.shape_cast %320 : vector<1xi32> to vector<1x1xi32>
    %322 = vector.broadcast %321 : vector<1x1xi32> to vector<1x16xi32>
    %323 = arith.cmpi eq, %41, %322 : vector<1x16xi32>
    %324 = arith.ori %317, %323 : vector<1x16xi1>
    %cst_110 = arith.constant 1.000000e+30 : f32
    %325 = vector.broadcast %cst_110 : f32 to vector<1x16xf32>
    %326 = arith.select %324, %39, %325 : vector<1x16xi1>, vector<1x16xf32>
    %cst_111 = arith.constant 0.000000e+00 : f32
    %327 = vector.broadcast %cst_111 : f32 to vector<1x16xf32>
    %328 = arith.subf %327, %39 : vector<1x16xf32>
    %cst_112 = arith.constant -1.000000e+30 : f32
    %329 = vector.broadcast %cst_112 : f32 to vector<1x16xf32>
    %330 = arith.select %324, %328, %329 : vector<1x16xi1>, vector<1x16xf32>
    %cst_113 = arith.constant dense<0xFF800000> : vector<1xf32>
    %331 = vector.multi_reduction <maximumf>, %330, %cst_113 [1] : vector<1x16xf32> to vector<1xf32>
    %332 = vector.shape_cast %331 : vector<1xf32> to vector<1x1xf32>
    %333 = vector.broadcast %332 : vector<1x1xf32> to vector<1x16xf32>
    %334 = arith.subf %330, %333 : vector<1x16xf32>
    %335 = math.exp %334 : vector<1x16xf32>
    %cst_114 = arith.constant 0.000000e+00 : f32
    %336 = vector.broadcast %cst_114 : f32 to vector<1x16xf32>
    %337 = arith.select %324, %335, %336 : vector<1x16xi1>, vector<1x16xf32>
    %cst_115 = arith.constant dense<0.000000e+00> : vector<1xf32>
    %338 = vector.multi_reduction <add>, %337, %cst_115 [1] : vector<1x16xf32> to vector<1xf32>
    %339 = vector.shape_cast %338 : vector<1xf32> to vector<1x1xf32>
    %340 = tpu.reciprocal %339 {approx = true} : vector<1x1xf32> -> vector<1x1xf32>
    %341 = vector.broadcast %340 : vector<1x1xf32> to vector<1x16xf32>
    %342 = arith.mulf %337, %341 : vector<1x16xf32>
    %cst_116 = arith.constant dense<0x7F800000> : vector<1xf32>
    %343 = vector.multi_reduction <minimumf>, %326, %cst_116 [1] : vector<1x16xf32> to vector<1xf32>
    %344 = vector.shape_cast %343 : vector<1xf32> to vector<1x1xf32>
    %345 = vector.broadcast %344 : vector<1x1xf32> to vector<1x16xf32>
    %346 = arith.cmpf ole, %326, %345 : vector<1x16xf32>
    %c16_i32_117 = arith.constant 16 : i32
    %347 = vector.broadcast %c16_i32_117 : i32 to vector<1x16xi32>
    %348 = arith.select %346, %40, %347 : vector<1x16xi1>, vector<1x16xi32>
    %cst_118 = arith.constant dense<2147483647> : vector<1xi32>
    %349 = vector.multi_reduction <minsi>, %348, %cst_118 [1] : vector<1x16xi32> to vector<1xi32>
    %350 = vector.shape_cast %349 : vector<1xi32> to vector<1x1xi32>
    %cst_119 = arith.constant dense<0xFF800000> : vector<1xf32>
    %351 = vector.multi_reduction <maximumf>, %342, %cst_119 [1] : vector<1x16xf32> to vector<1xf32>
    %352 = vector.shape_cast %351 : vector<1xf32> to vector<1x1xf32>
    %cst_120 = arith.constant dense<0.000000e+00> : vector<1xf32>
    %353 = vector.multi_reduction <add>, %342, %cst_120 [1] : vector<1x16xf32> to vector<1xf32>
    %354 = vector.shape_cast %353 : vector<1xf32> to vector<1x1xf32>
    %355 = tpu.reciprocal %354 {approx = true} : vector<1x1xf32> -> vector<1x1xf32>
    %356 = arith.mulf %352, %355 : vector<1x1xf32>
    %357 = arith.cmpi ne, %350, %321 : vector<1x1xi32>
    %cst_121 = arith.constant 9.99999974E-5 : f32
    %358 = vector.broadcast %cst_121 : f32 to vector<1x1xf32>
    %359 = arith.addf %356, %358 : vector<1x1xf32>
    %360 = math.log %359 : vector<1x1xf32>
    %cst_122 = arith.constant 0.000000e+00 : f32
    %361 = vector.broadcast %cst_122 : f32 to vector<1x1xf32>
    %362 = arith.select %357, %360, %361 : vector<1x1xi1>, vector<1x1xf32>
    %363 = arith.addf %309, %362 : vector<1x1xf32>
    %364 = vector.broadcast %350 : vector<1x1xi32> to vector<1x16xi32>
    %365 = arith.cmpi eq, %40, %364 : vector<1x16xi32>
    %366 = arith.extui %365 : vector<1x16xi1> to vector<1x16xi32>
    %367 = vector.shape_cast %357 : vector<1x1xi1> to vector<1x1xi1>
    %368 = vector.broadcast %367 : vector<1x1xi1> to vector<1x16xi1>
    %369 = arith.select %368, %366, %315 : vector<1x16xi1>, vector<1x16xi32>
    %c6_i32 = arith.constant 6 : i32
    %c0_i32_123 = arith.constant 0 : i32
    %370 = vector.broadcast %c0_i32_123 : i32 to vector<1x16xi32>
    %371 = arith.cmpi sgt, %369, %370 : vector<1x16xi32>
    %c16_i32_124 = arith.constant 16 : i32
    %372 = vector.broadcast %c16_i32_124 : i32 to vector<1x16xi32>
    %373 = arith.select %371, %40, %372 : vector<1x16xi1>, vector<1x16xi32>
    %cst_125 = arith.constant dense<2147483647> : vector<1xi32>
    %374 = vector.multi_reduction <minsi>, %373, %cst_125 [1] : vector<1x16xi32> to vector<1xi32>
    %375 = vector.shape_cast %374 : vector<1xi32> to vector<1x1xi32>
    %376 = vector.broadcast %375 : vector<1x1xi32> to vector<1x16xi32>
    %377 = arith.cmpi eq, %41, %376 : vector<1x16xi32>
    %378 = arith.ori %371, %377 : vector<1x16xi1>
    %cst_126 = arith.constant 1.000000e+30 : f32
    %379 = vector.broadcast %cst_126 : f32 to vector<1x16xf32>
    %380 = arith.select %378, %39, %379 : vector<1x16xi1>, vector<1x16xf32>
    %cst_127 = arith.constant 0.000000e+00 : f32
    %381 = vector.broadcast %cst_127 : f32 to vector<1x16xf32>
    %382 = arith.subf %381, %39 : vector<1x16xf32>
    %cst_128 = arith.constant -1.000000e+30 : f32
    %383 = vector.broadcast %cst_128 : f32 to vector<1x16xf32>
    %384 = arith.select %378, %382, %383 : vector<1x16xi1>, vector<1x16xf32>
    %cst_129 = arith.constant dense<0xFF800000> : vector<1xf32>
    %385 = vector.multi_reduction <maximumf>, %384, %cst_129 [1] : vector<1x16xf32> to vector<1xf32>
    %386 = vector.shape_cast %385 : vector<1xf32> to vector<1x1xf32>
    %387 = vector.broadcast %386 : vector<1x1xf32> to vector<1x16xf32>
    %388 = arith.subf %384, %387 : vector<1x16xf32>
    %389 = math.exp %388 : vector<1x16xf32>
    %cst_130 = arith.constant 0.000000e+00 : f32
    %390 = vector.broadcast %cst_130 : f32 to vector<1x16xf32>
    %391 = arith.select %378, %389, %390 : vector<1x16xi1>, vector<1x16xf32>
    %cst_131 = arith.constant dense<0.000000e+00> : vector<1xf32>
    %392 = vector.multi_reduction <add>, %391, %cst_131 [1] : vector<1x16xf32> to vector<1xf32>
    %393 = vector.shape_cast %392 : vector<1xf32> to vector<1x1xf32>
    %394 = tpu.reciprocal %393 {approx = true} : vector<1x1xf32> -> vector<1x1xf32>
    %395 = vector.broadcast %394 : vector<1x1xf32> to vector<1x16xf32>
    %396 = arith.mulf %391, %395 : vector<1x16xf32>
    %cst_132 = arith.constant dense<0x7F800000> : vector<1xf32>
    %397 = vector.multi_reduction <minimumf>, %380, %cst_132 [1] : vector<1x16xf32> to vector<1xf32>
    %398 = vector.shape_cast %397 : vector<1xf32> to vector<1x1xf32>
    %399 = vector.broadcast %398 : vector<1x1xf32> to vector<1x16xf32>
    %400 = arith.cmpf ole, %380, %399 : vector<1x16xf32>
    %c16_i32_133 = arith.constant 16 : i32
    %401 = vector.broadcast %c16_i32_133 : i32 to vector<1x16xi32>
    %402 = arith.select %400, %40, %401 : vector<1x16xi1>, vector<1x16xi32>
    %cst_134 = arith.constant dense<2147483647> : vector<1xi32>
    %403 = vector.multi_reduction <minsi>, %402, %cst_134 [1] : vector<1x16xi32> to vector<1xi32>
    %404 = vector.shape_cast %403 : vector<1xi32> to vector<1x1xi32>
    %cst_135 = arith.constant dense<0xFF800000> : vector<1xf32>
    %405 = vector.multi_reduction <maximumf>, %396, %cst_135 [1] : vector<1x16xf32> to vector<1xf32>
    %406 = vector.shape_cast %405 : vector<1xf32> to vector<1x1xf32>
    %cst_136 = arith.constant dense<0.000000e+00> : vector<1xf32>
    %407 = vector.multi_reduction <add>, %396, %cst_136 [1] : vector<1x16xf32> to vector<1xf32>
    %408 = vector.shape_cast %407 : vector<1xf32> to vector<1x1xf32>
    %409 = tpu.reciprocal %408 {approx = true} : vector<1x1xf32> -> vector<1x1xf32>
    %410 = arith.mulf %406, %409 : vector<1x1xf32>
    %411 = arith.cmpi ne, %404, %375 : vector<1x1xi32>
    %cst_137 = arith.constant 9.99999974E-5 : f32
    %412 = vector.broadcast %cst_137 : f32 to vector<1x1xf32>
    %413 = arith.addf %410, %412 : vector<1x1xf32>
    %414 = math.log %413 : vector<1x1xf32>
    %cst_138 = arith.constant 0.000000e+00 : f32
    %415 = vector.broadcast %cst_138 : f32 to vector<1x1xf32>
    %416 = arith.select %411, %414, %415 : vector<1x1xi1>, vector<1x1xf32>
    %417 = arith.addf %363, %416 : vector<1x1xf32>
    %418 = vector.broadcast %404 : vector<1x1xi32> to vector<1x16xi32>
    %419 = arith.cmpi eq, %40, %418 : vector<1x16xi32>
    %420 = arith.extui %419 : vector<1x16xi1> to vector<1x16xi32>
    %421 = vector.shape_cast %411 : vector<1x1xi1> to vector<1x1xi1>
    %422 = vector.broadcast %421 : vector<1x1xi1> to vector<1x16xi1>
    %423 = arith.select %422, %420, %369 : vector<1x16xi1>, vector<1x16xi32>
    %c7_i32 = arith.constant 7 : i32
    %c0_i32_139 = arith.constant 0 : i32
    %424 = vector.broadcast %c0_i32_139 : i32 to vector<1x16xi32>
    %425 = arith.cmpi sgt, %423, %424 : vector<1x16xi32>
    %c16_i32_140 = arith.constant 16 : i32
    %426 = vector.broadcast %c16_i32_140 : i32 to vector<1x16xi32>
    %427 = arith.select %425, %40, %426 : vector<1x16xi1>, vector<1x16xi32>
    %cst_141 = arith.constant dense<2147483647> : vector<1xi32>
    %428 = vector.multi_reduction <minsi>, %427, %cst_141 [1] : vector<1x16xi32> to vector<1xi32>
    %429 = vector.shape_cast %428 : vector<1xi32> to vector<1x1xi32>
    %430 = vector.broadcast %429 : vector<1x1xi32> to vector<1x16xi32>
    %431 = arith.cmpi eq, %41, %430 : vector<1x16xi32>
    %432 = arith.ori %425, %431 : vector<1x16xi1>
    %cst_142 = arith.constant 1.000000e+30 : f32
    %433 = vector.broadcast %cst_142 : f32 to vector<1x16xf32>
    %434 = arith.select %432, %39, %433 : vector<1x16xi1>, vector<1x16xf32>
    %cst_143 = arith.constant 0.000000e+00 : f32
    %435 = vector.broadcast %cst_143 : f32 to vector<1x16xf32>
    %436 = arith.subf %435, %39 : vector<1x16xf32>
    %cst_144 = arith.constant -1.000000e+30 : f32
    %437 = vector.broadcast %cst_144 : f32 to vector<1x16xf32>
    %438 = arith.select %432, %436, %437 : vector<1x16xi1>, vector<1x16xf32>
    %cst_145 = arith.constant dense<0xFF800000> : vector<1xf32>
    %439 = vector.multi_reduction <maximumf>, %438, %cst_145 [1] : vector<1x16xf32> to vector<1xf32>
    %440 = vector.shape_cast %439 : vector<1xf32> to vector<1x1xf32>
    %441 = vector.broadcast %440 : vector<1x1xf32> to vector<1x16xf32>
    %442 = arith.subf %438, %441 : vector<1x16xf32>
    %443 = math.exp %442 : vector<1x16xf32>
    %cst_146 = arith.constant 0.000000e+00 : f32
    %444 = vector.broadcast %cst_146 : f32 to vector<1x16xf32>
    %445 = arith.select %432, %443, %444 : vector<1x16xi1>, vector<1x16xf32>
    %cst_147 = arith.constant dense<0.000000e+00> : vector<1xf32>
    %446 = vector.multi_reduction <add>, %445, %cst_147 [1] : vector<1x16xf32> to vector<1xf32>
    %447 = vector.shape_cast %446 : vector<1xf32> to vector<1x1xf32>
    %448 = tpu.reciprocal %447 {approx = true} : vector<1x1xf32> -> vector<1x1xf32>
    %449 = vector.broadcast %448 : vector<1x1xf32> to vector<1x16xf32>
    %450 = arith.mulf %445, %449 : vector<1x16xf32>
    %cst_148 = arith.constant dense<0x7F800000> : vector<1xf32>
    %451 = vector.multi_reduction <minimumf>, %434, %cst_148 [1] : vector<1x16xf32> to vector<1xf32>
    %452 = vector.shape_cast %451 : vector<1xf32> to vector<1x1xf32>
    %453 = vector.broadcast %452 : vector<1x1xf32> to vector<1x16xf32>
    %454 = arith.cmpf ole, %434, %453 : vector<1x16xf32>
    %c16_i32_149 = arith.constant 16 : i32
    %455 = vector.broadcast %c16_i32_149 : i32 to vector<1x16xi32>
    %456 = arith.select %454, %40, %455 : vector<1x16xi1>, vector<1x16xi32>
    %cst_150 = arith.constant dense<2147483647> : vector<1xi32>
    %457 = vector.multi_reduction <minsi>, %456, %cst_150 [1] : vector<1x16xi32> to vector<1xi32>
    %458 = vector.shape_cast %457 : vector<1xi32> to vector<1x1xi32>
    %cst_151 = arith.constant dense<0xFF800000> : vector<1xf32>
    %459 = vector.multi_reduction <maximumf>, %450, %cst_151 [1] : vector<1x16xf32> to vector<1xf32>
    %460 = vector.shape_cast %459 : vector<1xf32> to vector<1x1xf32>
    %cst_152 = arith.constant dense<0.000000e+00> : vector<1xf32>
    %461 = vector.multi_reduction <add>, %450, %cst_152 [1] : vector<1x16xf32> to vector<1xf32>
    %462 = vector.shape_cast %461 : vector<1xf32> to vector<1x1xf32>
    %463 = tpu.reciprocal %462 {approx = true} : vector<1x1xf32> -> vector<1x1xf32>
    %464 = arith.mulf %460, %463 : vector<1x1xf32>
    %465 = arith.cmpi ne, %458, %429 : vector<1x1xi32>
    %cst_153 = arith.constant 9.99999974E-5 : f32
    %466 = vector.broadcast %cst_153 : f32 to vector<1x1xf32>
    %467 = arith.addf %464, %466 : vector<1x1xf32>
    %468 = math.log %467 : vector<1x1xf32>
    %cst_154 = arith.constant 0.000000e+00 : f32
    %469 = vector.broadcast %cst_154 : f32 to vector<1x1xf32>
    %470 = arith.select %465, %468, %469 : vector<1x1xi1>, vector<1x1xf32>
    %471 = arith.addf %417, %470 : vector<1x1xf32>
    %472 = vector.broadcast %458 : vector<1x1xi32> to vector<1x16xi32>
    %473 = arith.cmpi eq, %40, %472 : vector<1x16xi32>
    %474 = arith.extui %473 : vector<1x16xi1> to vector<1x16xi32>
    %475 = vector.shape_cast %465 : vector<1x1xi1> to vector<1x1xi1>
    %476 = vector.broadcast %475 : vector<1x1xi1> to vector<1x16xi1>
    %477 = arith.select %476, %474, %423 : vector<1x16xi1>, vector<1x16xi32>
    %c8_i32 = arith.constant 8 : i32
    %c0_i32_155 = arith.constant 0 : i32
    %478 = vector.broadcast %c0_i32_155 : i32 to vector<1x16xi32>
    %479 = arith.cmpi sgt, %477, %478 : vector<1x16xi32>
    %c16_i32_156 = arith.constant 16 : i32
    %480 = vector.broadcast %c16_i32_156 : i32 to vector<1x16xi32>
    %481 = arith.select %479, %40, %480 : vector<1x16xi1>, vector<1x16xi32>
    %cst_157 = arith.constant dense<2147483647> : vector<1xi32>
    %482 = vector.multi_reduction <minsi>, %481, %cst_157 [1] : vector<1x16xi32> to vector<1xi32>
    %483 = vector.shape_cast %482 : vector<1xi32> to vector<1x1xi32>
    %484 = vector.broadcast %483 : vector<1x1xi32> to vector<1x16xi32>
    %485 = arith.cmpi eq, %41, %484 : vector<1x16xi32>
    %486 = arith.ori %479, %485 : vector<1x16xi1>
    %cst_158 = arith.constant 1.000000e+30 : f32
    %487 = vector.broadcast %cst_158 : f32 to vector<1x16xf32>
    %488 = arith.select %486, %39, %487 : vector<1x16xi1>, vector<1x16xf32>
    %cst_159 = arith.constant 0.000000e+00 : f32
    %489 = vector.broadcast %cst_159 : f32 to vector<1x16xf32>
    %490 = arith.subf %489, %39 : vector<1x16xf32>
    %cst_160 = arith.constant -1.000000e+30 : f32
    %491 = vector.broadcast %cst_160 : f32 to vector<1x16xf32>
    %492 = arith.select %486, %490, %491 : vector<1x16xi1>, vector<1x16xf32>
    %cst_161 = arith.constant dense<0xFF800000> : vector<1xf32>
    %493 = vector.multi_reduction <maximumf>, %492, %cst_161 [1] : vector<1x16xf32> to vector<1xf32>
    %494 = vector.shape_cast %493 : vector<1xf32> to vector<1x1xf32>
    %495 = vector.broadcast %494 : vector<1x1xf32> to vector<1x16xf32>
    %496 = arith.subf %492, %495 : vector<1x16xf32>
    %497 = math.exp %496 : vector<1x16xf32>
    %cst_162 = arith.constant 0.000000e+00 : f32
    %498 = vector.broadcast %cst_162 : f32 to vector<1x16xf32>
    %499 = arith.select %486, %497, %498 : vector<1x16xi1>, vector<1x16xf32>
    %cst_163 = arith.constant dense<0.000000e+00> : vector<1xf32>
    %500 = vector.multi_reduction <add>, %499, %cst_163 [1] : vector<1x16xf32> to vector<1xf32>
    %501 = vector.shape_cast %500 : vector<1xf32> to vector<1x1xf32>
    %502 = tpu.reciprocal %501 {approx = true} : vector<1x1xf32> -> vector<1x1xf32>
    %503 = vector.broadcast %502 : vector<1x1xf32> to vector<1x16xf32>
    %504 = arith.mulf %499, %503 : vector<1x16xf32>
    %cst_164 = arith.constant dense<0x7F800000> : vector<1xf32>
    %505 = vector.multi_reduction <minimumf>, %488, %cst_164 [1] : vector<1x16xf32> to vector<1xf32>
    %506 = vector.shape_cast %505 : vector<1xf32> to vector<1x1xf32>
    %507 = vector.broadcast %506 : vector<1x1xf32> to vector<1x16xf32>
    %508 = arith.cmpf ole, %488, %507 : vector<1x16xf32>
    %c16_i32_165 = arith.constant 16 : i32
    %509 = vector.broadcast %c16_i32_165 : i32 to vector<1x16xi32>
    %510 = arith.select %508, %40, %509 : vector<1x16xi1>, vector<1x16xi32>
    %cst_166 = arith.constant dense<2147483647> : vector<1xi32>
    %511 = vector.multi_reduction <minsi>, %510, %cst_166 [1] : vector<1x16xi32> to vector<1xi32>
    %512 = vector.shape_cast %511 : vector<1xi32> to vector<1x1xi32>
    %cst_167 = arith.constant dense<0xFF800000> : vector<1xf32>
    %513 = vector.multi_reduction <maximumf>, %504, %cst_167 [1] : vector<1x16xf32> to vector<1xf32>
    %514 = vector.shape_cast %513 : vector<1xf32> to vector<1x1xf32>
    %cst_168 = arith.constant dense<0.000000e+00> : vector<1xf32>
    %515 = vector.multi_reduction <add>, %504, %cst_168 [1] : vector<1x16xf32> to vector<1xf32>
    %516 = vector.shape_cast %515 : vector<1xf32> to vector<1x1xf32>
    %517 = tpu.reciprocal %516 {approx = true} : vector<1x1xf32> -> vector<1x1xf32>
    %518 = arith.mulf %514, %517 : vector<1x1xf32>
    %519 = arith.cmpi ne, %512, %483 : vector<1x1xi32>
    %cst_169 = arith.constant 9.99999974E-5 : f32
    %520 = vector.broadcast %cst_169 : f32 to vector<1x1xf32>
    %521 = arith.addf %518, %520 : vector<1x1xf32>
    %522 = math.log %521 : vector<1x1xf32>
    %cst_170 = arith.constant 0.000000e+00 : f32
    %523 = vector.broadcast %cst_170 : f32 to vector<1x1xf32>
    %524 = arith.select %519, %522, %523 : vector<1x1xi1>, vector<1x1xf32>
    %525 = arith.addf %471, %524 : vector<1x1xf32>
    %526 = vector.broadcast %512 : vector<1x1xi32> to vector<1x16xi32>
    %527 = arith.cmpi eq, %40, %526 : vector<1x16xi32>
    %528 = arith.extui %527 : vector<1x16xi1> to vector<1x16xi32>
    %529 = vector.shape_cast %519 : vector<1x1xi1> to vector<1x1xi1>
    %530 = vector.broadcast %529 : vector<1x1xi1> to vector<1x16xi1>
    %531 = arith.select %530, %528, %477 : vector<1x16xi1>, vector<1x16xi32>
    %c9_i32 = arith.constant 9 : i32
    %c0_i32_171 = arith.constant 0 : i32
    %532 = vector.broadcast %c0_i32_171 : i32 to vector<1x16xi32>
    %533 = arith.cmpi sgt, %531, %532 : vector<1x16xi32>
    %c16_i32_172 = arith.constant 16 : i32
    %534 = vector.broadcast %c16_i32_172 : i32 to vector<1x16xi32>
    %535 = arith.select %533, %40, %534 : vector<1x16xi1>, vector<1x16xi32>
    %cst_173 = arith.constant dense<2147483647> : vector<1xi32>
    %536 = vector.multi_reduction <minsi>, %535, %cst_173 [1] : vector<1x16xi32> to vector<1xi32>
    %537 = vector.shape_cast %536 : vector<1xi32> to vector<1x1xi32>
    %538 = vector.broadcast %537 : vector<1x1xi32> to vector<1x16xi32>
    %539 = arith.cmpi eq, %41, %538 : vector<1x16xi32>
    %540 = arith.ori %533, %539 : vector<1x16xi1>
    %cst_174 = arith.constant 1.000000e+30 : f32
    %541 = vector.broadcast %cst_174 : f32 to vector<1x16xf32>
    %542 = arith.select %540, %39, %541 : vector<1x16xi1>, vector<1x16xf32>
    %cst_175 = arith.constant 0.000000e+00 : f32
    %543 = vector.broadcast %cst_175 : f32 to vector<1x16xf32>
    %544 = arith.subf %543, %39 : vector<1x16xf32>
    %cst_176 = arith.constant -1.000000e+30 : f32
    %545 = vector.broadcast %cst_176 : f32 to vector<1x16xf32>
    %546 = arith.select %540, %544, %545 : vector<1x16xi1>, vector<1x16xf32>
    %cst_177 = arith.constant dense<0xFF800000> : vector<1xf32>
    %547 = vector.multi_reduction <maximumf>, %546, %cst_177 [1] : vector<1x16xf32> to vector<1xf32>
    %548 = vector.shape_cast %547 : vector<1xf32> to vector<1x1xf32>
    %549 = vector.broadcast %548 : vector<1x1xf32> to vector<1x16xf32>
    %550 = arith.subf %546, %549 : vector<1x16xf32>
    %551 = math.exp %550 : vector<1x16xf32>
    %cst_178 = arith.constant 0.000000e+00 : f32
    %552 = vector.broadcast %cst_178 : f32 to vector<1x16xf32>
    %553 = arith.select %540, %551, %552 : vector<1x16xi1>, vector<1x16xf32>
    %cst_179 = arith.constant dense<0.000000e+00> : vector<1xf32>
    %554 = vector.multi_reduction <add>, %553, %cst_179 [1] : vector<1x16xf32> to vector<1xf32>
    %555 = vector.shape_cast %554 : vector<1xf32> to vector<1x1xf32>
    %556 = tpu.reciprocal %555 {approx = true} : vector<1x1xf32> -> vector<1x1xf32>
    %557 = vector.broadcast %556 : vector<1x1xf32> to vector<1x16xf32>
    %558 = arith.mulf %553, %557 : vector<1x16xf32>
    %cst_180 = arith.constant dense<0x7F800000> : vector<1xf32>
    %559 = vector.multi_reduction <minimumf>, %542, %cst_180 [1] : vector<1x16xf32> to vector<1xf32>
    %560 = vector.shape_cast %559 : vector<1xf32> to vector<1x1xf32>
    %561 = vector.broadcast %560 : vector<1x1xf32> to vector<1x16xf32>
    %562 = arith.cmpf ole, %542, %561 : vector<1x16xf32>
    %c16_i32_181 = arith.constant 16 : i32
    %563 = vector.broadcast %c16_i32_181 : i32 to vector<1x16xi32>
    %564 = arith.select %562, %40, %563 : vector<1x16xi1>, vector<1x16xi32>
    %cst_182 = arith.constant dense<2147483647> : vector<1xi32>
    %565 = vector.multi_reduction <minsi>, %564, %cst_182 [1] : vector<1x16xi32> to vector<1xi32>
    %566 = vector.shape_cast %565 : vector<1xi32> to vector<1x1xi32>
    %cst_183 = arith.constant dense<0xFF800000> : vector<1xf32>
    %567 = vector.multi_reduction <maximumf>, %558, %cst_183 [1] : vector<1x16xf32> to vector<1xf32>
    %568 = vector.shape_cast %567 : vector<1xf32> to vector<1x1xf32>
    %cst_184 = arith.constant dense<0.000000e+00> : vector<1xf32>
    %569 = vector.multi_reduction <add>, %558, %cst_184 [1] : vector<1x16xf32> to vector<1xf32>
    %570 = vector.shape_cast %569 : vector<1xf32> to vector<1x1xf32>
    %571 = tpu.reciprocal %570 {approx = true} : vector<1x1xf32> -> vector<1x1xf32>
    %572 = arith.mulf %568, %571 : vector<1x1xf32>
    %573 = arith.cmpi ne, %566, %537 : vector<1x1xi32>
    %cst_185 = arith.constant 9.99999974E-5 : f32
    %574 = vector.broadcast %cst_185 : f32 to vector<1x1xf32>
    %575 = arith.addf %572, %574 : vector<1x1xf32>
    %576 = math.log %575 : vector<1x1xf32>
    %cst_186 = arith.constant 0.000000e+00 : f32
    %577 = vector.broadcast %cst_186 : f32 to vector<1x1xf32>
    %578 = arith.select %573, %576, %577 : vector<1x1xi1>, vector<1x1xf32>
    %579 = arith.addf %525, %578 : vector<1x1xf32>
    %580 = vector.broadcast %566 : vector<1x1xi32> to vector<1x16xi32>
    %581 = arith.cmpi eq, %40, %580 : vector<1x16xi32>
    %582 = arith.extui %581 : vector<1x16xi1> to vector<1x16xi32>
    %583 = vector.shape_cast %573 : vector<1x1xi1> to vector<1x1xi1>
    %584 = vector.broadcast %583 : vector<1x1xi1> to vector<1x16xi1>
    %585 = arith.select %584, %582, %531 : vector<1x16xi1>, vector<1x16xi32>
    %c10_i32 = arith.constant 10 : i32
    %c0_i32_187 = arith.constant 0 : i32
    %586 = vector.broadcast %c0_i32_187 : i32 to vector<1x16xi32>
    %587 = arith.cmpi sgt, %585, %586 : vector<1x16xi32>
    %c16_i32_188 = arith.constant 16 : i32
    %588 = vector.broadcast %c16_i32_188 : i32 to vector<1x16xi32>
    %589 = arith.select %587, %40, %588 : vector<1x16xi1>, vector<1x16xi32>
    %cst_189 = arith.constant dense<2147483647> : vector<1xi32>
    %590 = vector.multi_reduction <minsi>, %589, %cst_189 [1] : vector<1x16xi32> to vector<1xi32>
    %591 = vector.shape_cast %590 : vector<1xi32> to vector<1x1xi32>
    %592 = vector.broadcast %591 : vector<1x1xi32> to vector<1x16xi32>
    %593 = arith.cmpi eq, %41, %592 : vector<1x16xi32>
    %594 = arith.ori %587, %593 : vector<1x16xi1>
    %cst_190 = arith.constant 1.000000e+30 : f32
    %595 = vector.broadcast %cst_190 : f32 to vector<1x16xf32>
    %596 = arith.select %594, %39, %595 : vector<1x16xi1>, vector<1x16xf32>
    %cst_191 = arith.constant 0.000000e+00 : f32
    %597 = vector.broadcast %cst_191 : f32 to vector<1x16xf32>
    %598 = arith.subf %597, %39 : vector<1x16xf32>
    %cst_192 = arith.constant -1.000000e+30 : f32
    %599 = vector.broadcast %cst_192 : f32 to vector<1x16xf32>
    %600 = arith.select %594, %598, %599 : vector<1x16xi1>, vector<1x16xf32>
    %cst_193 = arith.constant dense<0xFF800000> : vector<1xf32>
    %601 = vector.multi_reduction <maximumf>, %600, %cst_193 [1] : vector<1x16xf32> to vector<1xf32>
    %602 = vector.shape_cast %601 : vector<1xf32> to vector<1x1xf32>
    %603 = vector.broadcast %602 : vector<1x1xf32> to vector<1x16xf32>
    %604 = arith.subf %600, %603 : vector<1x16xf32>
    %605 = math.exp %604 : vector<1x16xf32>
    %cst_194 = arith.constant 0.000000e+00 : f32
    %606 = vector.broadcast %cst_194 : f32 to vector<1x16xf32>
    %607 = arith.select %594, %605, %606 : vector<1x16xi1>, vector<1x16xf32>
    %cst_195 = arith.constant dense<0.000000e+00> : vector<1xf32>
    %608 = vector.multi_reduction <add>, %607, %cst_195 [1] : vector<1x16xf32> to vector<1xf32>
    %609 = vector.shape_cast %608 : vector<1xf32> to vector<1x1xf32>
    %610 = tpu.reciprocal %609 {approx = true} : vector<1x1xf32> -> vector<1x1xf32>
    %611 = vector.broadcast %610 : vector<1x1xf32> to vector<1x16xf32>
    %612 = arith.mulf %607, %611 : vector<1x16xf32>
    %cst_196 = arith.constant dense<0x7F800000> : vector<1xf32>
    %613 = vector.multi_reduction <minimumf>, %596, %cst_196 [1] : vector<1x16xf32> to vector<1xf32>
    %614 = vector.shape_cast %613 : vector<1xf32> to vector<1x1xf32>
    %615 = vector.broadcast %614 : vector<1x1xf32> to vector<1x16xf32>
    %616 = arith.cmpf ole, %596, %615 : vector<1x16xf32>
    %c16_i32_197 = arith.constant 16 : i32
    %617 = vector.broadcast %c16_i32_197 : i32 to vector<1x16xi32>
    %618 = arith.select %616, %40, %617 : vector<1x16xi1>, vector<1x16xi32>
    %cst_198 = arith.constant dense<2147483647> : vector<1xi32>
    %619 = vector.multi_reduction <minsi>, %618, %cst_198 [1] : vector<1x16xi32> to vector<1xi32>
    %620 = vector.shape_cast %619 : vector<1xi32> to vector<1x1xi32>
    %cst_199 = arith.constant dense<0xFF800000> : vector<1xf32>
    %621 = vector.multi_reduction <maximumf>, %612, %cst_199 [1] : vector<1x16xf32> to vector<1xf32>
    %622 = vector.shape_cast %621 : vector<1xf32> to vector<1x1xf32>
    %cst_200 = arith.constant dense<0.000000e+00> : vector<1xf32>
    %623 = vector.multi_reduction <add>, %612, %cst_200 [1] : vector<1x16xf32> to vector<1xf32>
    %624 = vector.shape_cast %623 : vector<1xf32> to vector<1x1xf32>
    %625 = tpu.reciprocal %624 {approx = true} : vector<1x1xf32> -> vector<1x1xf32>
    %626 = arith.mulf %622, %625 : vector<1x1xf32>
    %627 = arith.cmpi ne, %620, %591 : vector<1x1xi32>
    %cst_201 = arith.constant 9.99999974E-5 : f32
    %628 = vector.broadcast %cst_201 : f32 to vector<1x1xf32>
    %629 = arith.addf %626, %628 : vector<1x1xf32>
    %630 = math.log %629 : vector<1x1xf32>
    %cst_202 = arith.constant 0.000000e+00 : f32
    %631 = vector.broadcast %cst_202 : f32 to vector<1x1xf32>
    %632 = arith.select %627, %630, %631 : vector<1x1xi1>, vector<1x1xf32>
    %633 = arith.addf %579, %632 : vector<1x1xf32>
    %634 = vector.broadcast %620 : vector<1x1xi32> to vector<1x16xi32>
    %635 = arith.cmpi eq, %40, %634 : vector<1x16xi32>
    %636 = arith.extui %635 : vector<1x16xi1> to vector<1x16xi32>
    %637 = vector.shape_cast %627 : vector<1x1xi1> to vector<1x1xi1>
    %638 = vector.broadcast %637 : vector<1x1xi1> to vector<1x16xi1>
    %639 = arith.select %638, %636, %585 : vector<1x16xi1>, vector<1x16xi32>
    %c11_i32 = arith.constant 11 : i32
    %c0_i32_203 = arith.constant 0 : i32
    %640 = vector.broadcast %c0_i32_203 : i32 to vector<1x16xi32>
    %641 = arith.cmpi sgt, %639, %640 : vector<1x16xi32>
    %c16_i32_204 = arith.constant 16 : i32
    %642 = vector.broadcast %c16_i32_204 : i32 to vector<1x16xi32>
    %643 = arith.select %641, %40, %642 : vector<1x16xi1>, vector<1x16xi32>
    %cst_205 = arith.constant dense<2147483647> : vector<1xi32>
    %644 = vector.multi_reduction <minsi>, %643, %cst_205 [1] : vector<1x16xi32> to vector<1xi32>
    %645 = vector.shape_cast %644 : vector<1xi32> to vector<1x1xi32>
    %646 = vector.broadcast %645 : vector<1x1xi32> to vector<1x16xi32>
    %647 = arith.cmpi eq, %41, %646 : vector<1x16xi32>
    %648 = arith.ori %641, %647 : vector<1x16xi1>
    %cst_206 = arith.constant 1.000000e+30 : f32
    %649 = vector.broadcast %cst_206 : f32 to vector<1x16xf32>
    %650 = arith.select %648, %39, %649 : vector<1x16xi1>, vector<1x16xf32>
    %cst_207 = arith.constant 0.000000e+00 : f32
    %651 = vector.broadcast %cst_207 : f32 to vector<1x16xf32>
    %652 = arith.subf %651, %39 : vector<1x16xf32>
    %cst_208 = arith.constant -1.000000e+30 : f32
    %653 = vector.broadcast %cst_208 : f32 to vector<1x16xf32>
    %654 = arith.select %648, %652, %653 : vector<1x16xi1>, vector<1x16xf32>
    %cst_209 = arith.constant dense<0xFF800000> : vector<1xf32>
    %655 = vector.multi_reduction <maximumf>, %654, %cst_209 [1] : vector<1x16xf32> to vector<1xf32>
    %656 = vector.shape_cast %655 : vector<1xf32> to vector<1x1xf32>
    %657 = vector.broadcast %656 : vector<1x1xf32> to vector<1x16xf32>
    %658 = arith.subf %654, %657 : vector<1x16xf32>
    %659 = math.exp %658 : vector<1x16xf32>
    %cst_210 = arith.constant 0.000000e+00 : f32
    %660 = vector.broadcast %cst_210 : f32 to vector<1x16xf32>
    %661 = arith.select %648, %659, %660 : vector<1x16xi1>, vector<1x16xf32>
    %cst_211 = arith.constant dense<0.000000e+00> : vector<1xf32>
    %662 = vector.multi_reduction <add>, %661, %cst_211 [1] : vector<1x16xf32> to vector<1xf32>
    %663 = vector.shape_cast %662 : vector<1xf32> to vector<1x1xf32>
    %664 = tpu.reciprocal %663 {approx = true} : vector<1x1xf32> -> vector<1x1xf32>
    %665 = vector.broadcast %664 : vector<1x1xf32> to vector<1x16xf32>
    %666 = arith.mulf %661, %665 : vector<1x16xf32>
    %cst_212 = arith.constant dense<0x7F800000> : vector<1xf32>
    %667 = vector.multi_reduction <minimumf>, %650, %cst_212 [1] : vector<1x16xf32> to vector<1xf32>
    %668 = vector.shape_cast %667 : vector<1xf32> to vector<1x1xf32>
    %669 = vector.broadcast %668 : vector<1x1xf32> to vector<1x16xf32>
    %670 = arith.cmpf ole, %650, %669 : vector<1x16xf32>
    %c16_i32_213 = arith.constant 16 : i32
    %671 = vector.broadcast %c16_i32_213 : i32 to vector<1x16xi32>
    %672 = arith.select %670, %40, %671 : vector<1x16xi1>, vector<1x16xi32>
    %cst_214 = arith.constant dense<2147483647> : vector<1xi32>
    %673 = vector.multi_reduction <minsi>, %672, %cst_214 [1] : vector<1x16xi32> to vector<1xi32>
    %674 = vector.shape_cast %673 : vector<1xi32> to vector<1x1xi32>
    %cst_215 = arith.constant dense<0xFF800000> : vector<1xf32>
    %675 = vector.multi_reduction <maximumf>, %666, %cst_215 [1] : vector<1x16xf32> to vector<1xf32>
    %676 = vector.shape_cast %675 : vector<1xf32> to vector<1x1xf32>
    %cst_216 = arith.constant dense<0.000000e+00> : vector<1xf32>
    %677 = vector.multi_reduction <add>, %666, %cst_216 [1] : vector<1x16xf32> to vector<1xf32>
    %678 = vector.shape_cast %677 : vector<1xf32> to vector<1x1xf32>
    %679 = tpu.reciprocal %678 {approx = true} : vector<1x1xf32> -> vector<1x1xf32>
    %680 = arith.mulf %676, %679 : vector<1x1xf32>
    %681 = arith.cmpi ne, %674, %645 : vector<1x1xi32>
    %cst_217 = arith.constant 9.99999974E-5 : f32
    %682 = vector.broadcast %cst_217 : f32 to vector<1x1xf32>
    %683 = arith.addf %680, %682 : vector<1x1xf32>
    %684 = math.log %683 : vector<1x1xf32>
    %cst_218 = arith.constant 0.000000e+00 : f32
    %685 = vector.broadcast %cst_218 : f32 to vector<1x1xf32>
    %686 = arith.select %681, %684, %685 : vector<1x1xi1>, vector<1x1xf32>
    %687 = arith.addf %633, %686 : vector<1x1xf32>
    %688 = vector.broadcast %674 : vector<1x1xi32> to vector<1x16xi32>
    %689 = arith.cmpi eq, %40, %688 : vector<1x16xi32>
    %690 = arith.extui %689 : vector<1x16xi1> to vector<1x16xi32>
    %691 = vector.shape_cast %681 : vector<1x1xi1> to vector<1x1xi1>
    %692 = vector.broadcast %691 : vector<1x1xi1> to vector<1x16xi1>
    %693 = arith.select %692, %690, %639 : vector<1x16xi1>, vector<1x16xi32>
    %c12_i32 = arith.constant 12 : i32
    %c0_i32_219 = arith.constant 0 : i32
    %694 = vector.broadcast %c0_i32_219 : i32 to vector<1x16xi32>
    %695 = arith.cmpi sgt, %693, %694 : vector<1x16xi32>
    %c16_i32_220 = arith.constant 16 : i32
    %696 = vector.broadcast %c16_i32_220 : i32 to vector<1x16xi32>
    %697 = arith.select %695, %40, %696 : vector<1x16xi1>, vector<1x16xi32>
    %cst_221 = arith.constant dense<2147483647> : vector<1xi32>
    %698 = vector.multi_reduction <minsi>, %697, %cst_221 [1] : vector<1x16xi32> to vector<1xi32>
    %699 = vector.shape_cast %698 : vector<1xi32> to vector<1x1xi32>
    %700 = vector.broadcast %699 : vector<1x1xi32> to vector<1x16xi32>
    %701 = arith.cmpi eq, %41, %700 : vector<1x16xi32>
    %702 = arith.ori %695, %701 : vector<1x16xi1>
    %cst_222 = arith.constant 1.000000e+30 : f32
    %703 = vector.broadcast %cst_222 : f32 to vector<1x16xf32>
    %704 = arith.select %702, %39, %703 : vector<1x16xi1>, vector<1x16xf32>
    %cst_223 = arith.constant 0.000000e+00 : f32
    %705 = vector.broadcast %cst_223 : f32 to vector<1x16xf32>
    %706 = arith.subf %705, %39 : vector<1x16xf32>
    %cst_224 = arith.constant -1.000000e+30 : f32
    %707 = vector.broadcast %cst_224 : f32 to vector<1x16xf32>
    %708 = arith.select %702, %706, %707 : vector<1x16xi1>, vector<1x16xf32>
    %cst_225 = arith.constant dense<0xFF800000> : vector<1xf32>
    %709 = vector.multi_reduction <maximumf>, %708, %cst_225 [1] : vector<1x16xf32> to vector<1xf32>
    %710 = vector.shape_cast %709 : vector<1xf32> to vector<1x1xf32>
    %711 = vector.broadcast %710 : vector<1x1xf32> to vector<1x16xf32>
    %712 = arith.subf %708, %711 : vector<1x16xf32>
    %713 = math.exp %712 : vector<1x16xf32>
    %cst_226 = arith.constant 0.000000e+00 : f32
    %714 = vector.broadcast %cst_226 : f32 to vector<1x16xf32>
    %715 = arith.select %702, %713, %714 : vector<1x16xi1>, vector<1x16xf32>
    %cst_227 = arith.constant dense<0.000000e+00> : vector<1xf32>
    %716 = vector.multi_reduction <add>, %715, %cst_227 [1] : vector<1x16xf32> to vector<1xf32>
    %717 = vector.shape_cast %716 : vector<1xf32> to vector<1x1xf32>
    %718 = tpu.reciprocal %717 {approx = true} : vector<1x1xf32> -> vector<1x1xf32>
    %719 = vector.broadcast %718 : vector<1x1xf32> to vector<1x16xf32>
    %720 = arith.mulf %715, %719 : vector<1x16xf32>
    %cst_228 = arith.constant dense<0x7F800000> : vector<1xf32>
    %721 = vector.multi_reduction <minimumf>, %704, %cst_228 [1] : vector<1x16xf32> to vector<1xf32>
    %722 = vector.shape_cast %721 : vector<1xf32> to vector<1x1xf32>
    %723 = vector.broadcast %722 : vector<1x1xf32> to vector<1x16xf32>
    %724 = arith.cmpf ole, %704, %723 : vector<1x16xf32>
    %c16_i32_229 = arith.constant 16 : i32
    %725 = vector.broadcast %c16_i32_229 : i32 to vector<1x16xi32>
    %726 = arith.select %724, %40, %725 : vector<1x16xi1>, vector<1x16xi32>
    %cst_230 = arith.constant dense<2147483647> : vector<1xi32>
    %727 = vector.multi_reduction <minsi>, %726, %cst_230 [1] : vector<1x16xi32> to vector<1xi32>
    %728 = vector.shape_cast %727 : vector<1xi32> to vector<1x1xi32>
    %cst_231 = arith.constant dense<0xFF800000> : vector<1xf32>
    %729 = vector.multi_reduction <maximumf>, %720, %cst_231 [1] : vector<1x16xf32> to vector<1xf32>
    %730 = vector.shape_cast %729 : vector<1xf32> to vector<1x1xf32>
    %cst_232 = arith.constant dense<0.000000e+00> : vector<1xf32>
    %731 = vector.multi_reduction <add>, %720, %cst_232 [1] : vector<1x16xf32> to vector<1xf32>
    %732 = vector.shape_cast %731 : vector<1xf32> to vector<1x1xf32>
    %733 = tpu.reciprocal %732 {approx = true} : vector<1x1xf32> -> vector<1x1xf32>
    %734 = arith.mulf %730, %733 : vector<1x1xf32>
    %735 = arith.cmpi ne, %728, %699 : vector<1x1xi32>
    %cst_233 = arith.constant 9.99999974E-5 : f32
    %736 = vector.broadcast %cst_233 : f32 to vector<1x1xf32>
    %737 = arith.addf %734, %736 : vector<1x1xf32>
    %738 = math.log %737 : vector<1x1xf32>
    %cst_234 = arith.constant 0.000000e+00 : f32
    %739 = vector.broadcast %cst_234 : f32 to vector<1x1xf32>
    %740 = arith.select %735, %738, %739 : vector<1x1xi1>, vector<1x1xf32>
    %741 = arith.addf %687, %740 : vector<1x1xf32>
    %742 = vector.broadcast %728 : vector<1x1xi32> to vector<1x16xi32>
    %743 = arith.cmpi eq, %40, %742 : vector<1x16xi32>
    %744 = arith.extui %743 : vector<1x16xi1> to vector<1x16xi32>
    %745 = vector.shape_cast %735 : vector<1x1xi1> to vector<1x1xi1>
    %746 = vector.broadcast %745 : vector<1x1xi1> to vector<1x16xi1>
    %747 = arith.select %746, %744, %693 : vector<1x16xi1>, vector<1x16xi32>
    %c13_i32 = arith.constant 13 : i32
    %c0_i32_235 = arith.constant 0 : i32
    %748 = vector.broadcast %c0_i32_235 : i32 to vector<1x16xi32>
    %749 = arith.cmpi sgt, %747, %748 : vector<1x16xi32>
    %c16_i32_236 = arith.constant 16 : i32
    %750 = vector.broadcast %c16_i32_236 : i32 to vector<1x16xi32>
    %751 = arith.select %749, %40, %750 : vector<1x16xi1>, vector<1x16xi32>
    %cst_237 = arith.constant dense<2147483647> : vector<1xi32>
    %752 = vector.multi_reduction <minsi>, %751, %cst_237 [1] : vector<1x16xi32> to vector<1xi32>
    %753 = vector.shape_cast %752 : vector<1xi32> to vector<1x1xi32>
    %754 = vector.broadcast %753 : vector<1x1xi32> to vector<1x16xi32>
    %755 = arith.cmpi eq, %41, %754 : vector<1x16xi32>
    %756 = arith.ori %749, %755 : vector<1x16xi1>
    %cst_238 = arith.constant 1.000000e+30 : f32
    %757 = vector.broadcast %cst_238 : f32 to vector<1x16xf32>
    %758 = arith.select %756, %39, %757 : vector<1x16xi1>, vector<1x16xf32>
    %cst_239 = arith.constant 0.000000e+00 : f32
    %759 = vector.broadcast %cst_239 : f32 to vector<1x16xf32>
    %760 = arith.subf %759, %39 : vector<1x16xf32>
    %cst_240 = arith.constant -1.000000e+30 : f32
    %761 = vector.broadcast %cst_240 : f32 to vector<1x16xf32>
    %762 = arith.select %756, %760, %761 : vector<1x16xi1>, vector<1x16xf32>
    %cst_241 = arith.constant dense<0xFF800000> : vector<1xf32>
    %763 = vector.multi_reduction <maximumf>, %762, %cst_241 [1] : vector<1x16xf32> to vector<1xf32>
    %764 = vector.shape_cast %763 : vector<1xf32> to vector<1x1xf32>
    %765 = vector.broadcast %764 : vector<1x1xf32> to vector<1x16xf32>
    %766 = arith.subf %762, %765 : vector<1x16xf32>
    %767 = math.exp %766 : vector<1x16xf32>
    %cst_242 = arith.constant 0.000000e+00 : f32
    %768 = vector.broadcast %cst_242 : f32 to vector<1x16xf32>
    %769 = arith.select %756, %767, %768 : vector<1x16xi1>, vector<1x16xf32>
    %cst_243 = arith.constant dense<0.000000e+00> : vector<1xf32>
    %770 = vector.multi_reduction <add>, %769, %cst_243 [1] : vector<1x16xf32> to vector<1xf32>
    %771 = vector.shape_cast %770 : vector<1xf32> to vector<1x1xf32>
    %772 = tpu.reciprocal %771 {approx = true} : vector<1x1xf32> -> vector<1x1xf32>
    %773 = vector.broadcast %772 : vector<1x1xf32> to vector<1x16xf32>
    %774 = arith.mulf %769, %773 : vector<1x16xf32>
    %cst_244 = arith.constant dense<0x7F800000> : vector<1xf32>
    %775 = vector.multi_reduction <minimumf>, %758, %cst_244 [1] : vector<1x16xf32> to vector<1xf32>
    %776 = vector.shape_cast %775 : vector<1xf32> to vector<1x1xf32>
    %777 = vector.broadcast %776 : vector<1x1xf32> to vector<1x16xf32>
    %778 = arith.cmpf ole, %758, %777 : vector<1x16xf32>
    %c16_i32_245 = arith.constant 16 : i32
    %779 = vector.broadcast %c16_i32_245 : i32 to vector<1x16xi32>
    %780 = arith.select %778, %40, %779 : vector<1x16xi1>, vector<1x16xi32>
    %cst_246 = arith.constant dense<2147483647> : vector<1xi32>
    %781 = vector.multi_reduction <minsi>, %780, %cst_246 [1] : vector<1x16xi32> to vector<1xi32>
    %782 = vector.shape_cast %781 : vector<1xi32> to vector<1x1xi32>
    %cst_247 = arith.constant dense<0xFF800000> : vector<1xf32>
    %783 = vector.multi_reduction <maximumf>, %774, %cst_247 [1] : vector<1x16xf32> to vector<1xf32>
    %784 = vector.shape_cast %783 : vector<1xf32> to vector<1x1xf32>
    %cst_248 = arith.constant dense<0.000000e+00> : vector<1xf32>
    %785 = vector.multi_reduction <add>, %774, %cst_248 [1] : vector<1x16xf32> to vector<1xf32>
    %786 = vector.shape_cast %785 : vector<1xf32> to vector<1x1xf32>
    %787 = tpu.reciprocal %786 {approx = true} : vector<1x1xf32> -> vector<1x1xf32>
    %788 = arith.mulf %784, %787 : vector<1x1xf32>
    %789 = arith.cmpi ne, %782, %753 : vector<1x1xi32>
    %cst_249 = arith.constant 9.99999974E-5 : f32
    %790 = vector.broadcast %cst_249 : f32 to vector<1x1xf32>
    %791 = arith.addf %788, %790 : vector<1x1xf32>
    %792 = math.log %791 : vector<1x1xf32>
    %cst_250 = arith.constant 0.000000e+00 : f32
    %793 = vector.broadcast %cst_250 : f32 to vector<1x1xf32>
    %794 = arith.select %789, %792, %793 : vector<1x1xi1>, vector<1x1xf32>
    %795 = arith.addf %741, %794 : vector<1x1xf32>
    %796 = vector.broadcast %782 : vector<1x1xi32> to vector<1x16xi32>
    %797 = arith.cmpi eq, %40, %796 : vector<1x16xi32>
    %798 = arith.extui %797 : vector<1x16xi1> to vector<1x16xi32>
    %799 = vector.shape_cast %789 : vector<1x1xi1> to vector<1x1xi1>
    %800 = vector.broadcast %799 : vector<1x1xi1> to vector<1x16xi1>
    %801 = arith.select %800, %798, %747 : vector<1x16xi1>, vector<1x16xi32>
    %c14_i32 = arith.constant 14 : i32
    %c0_i32_251 = arith.constant 0 : i32
    %802 = vector.broadcast %c0_i32_251 : i32 to vector<1x16xi32>
    %803 = arith.cmpi sgt, %801, %802 : vector<1x16xi32>
    %c16_i32_252 = arith.constant 16 : i32
    %804 = vector.broadcast %c16_i32_252 : i32 to vector<1x16xi32>
    %805 = arith.select %803, %40, %804 : vector<1x16xi1>, vector<1x16xi32>
    %cst_253 = arith.constant dense<2147483647> : vector<1xi32>
    %806 = vector.multi_reduction <minsi>, %805, %cst_253 [1] : vector<1x16xi32> to vector<1xi32>
    %807 = vector.shape_cast %806 : vector<1xi32> to vector<1x1xi32>
    %808 = vector.broadcast %807 : vector<1x1xi32> to vector<1x16xi32>
    %809 = arith.cmpi eq, %41, %808 : vector<1x16xi32>
    %810 = arith.ori %803, %809 : vector<1x16xi1>
    %cst_254 = arith.constant 1.000000e+30 : f32
    %811 = vector.broadcast %cst_254 : f32 to vector<1x16xf32>
    %812 = arith.select %810, %39, %811 : vector<1x16xi1>, vector<1x16xf32>
    %cst_255 = arith.constant 0.000000e+00 : f32
    %813 = vector.broadcast %cst_255 : f32 to vector<1x16xf32>
    %814 = arith.subf %813, %39 : vector<1x16xf32>
    %cst_256 = arith.constant -1.000000e+30 : f32
    %815 = vector.broadcast %cst_256 : f32 to vector<1x16xf32>
    %816 = arith.select %810, %814, %815 : vector<1x16xi1>, vector<1x16xf32>
    %cst_257 = arith.constant dense<0xFF800000> : vector<1xf32>
    %817 = vector.multi_reduction <maximumf>, %816, %cst_257 [1] : vector<1x16xf32> to vector<1xf32>
    %818 = vector.shape_cast %817 : vector<1xf32> to vector<1x1xf32>
    %819 = vector.broadcast %818 : vector<1x1xf32> to vector<1x16xf32>
    %820 = arith.subf %816, %819 : vector<1x16xf32>
    %821 = math.exp %820 : vector<1x16xf32>
    %cst_258 = arith.constant 0.000000e+00 : f32
    %822 = vector.broadcast %cst_258 : f32 to vector<1x16xf32>
    %823 = arith.select %810, %821, %822 : vector<1x16xi1>, vector<1x16xf32>
    %cst_259 = arith.constant dense<0.000000e+00> : vector<1xf32>
    %824 = vector.multi_reduction <add>, %823, %cst_259 [1] : vector<1x16xf32> to vector<1xf32>
    %825 = vector.shape_cast %824 : vector<1xf32> to vector<1x1xf32>
    %826 = tpu.reciprocal %825 {approx = true} : vector<1x1xf32> -> vector<1x1xf32>
    %827 = vector.broadcast %826 : vector<1x1xf32> to vector<1x16xf32>
    %828 = arith.mulf %823, %827 : vector<1x16xf32>
    %cst_260 = arith.constant dense<0x7F800000> : vector<1xf32>
    %829 = vector.multi_reduction <minimumf>, %812, %cst_260 [1] : vector<1x16xf32> to vector<1xf32>
    %830 = vector.shape_cast %829 : vector<1xf32> to vector<1x1xf32>
    %831 = vector.broadcast %830 : vector<1x1xf32> to vector<1x16xf32>
    %832 = arith.cmpf ole, %812, %831 : vector<1x16xf32>
    %c16_i32_261 = arith.constant 16 : i32
    %833 = vector.broadcast %c16_i32_261 : i32 to vector<1x16xi32>
    %834 = arith.select %832, %40, %833 : vector<1x16xi1>, vector<1x16xi32>
    %cst_262 = arith.constant dense<2147483647> : vector<1xi32>
    %835 = vector.multi_reduction <minsi>, %834, %cst_262 [1] : vector<1x16xi32> to vector<1xi32>
    %836 = vector.shape_cast %835 : vector<1xi32> to vector<1x1xi32>
    %cst_263 = arith.constant dense<0xFF800000> : vector<1xf32>
    %837 = vector.multi_reduction <maximumf>, %828, %cst_263 [1] : vector<1x16xf32> to vector<1xf32>
    %838 = vector.shape_cast %837 : vector<1xf32> to vector<1x1xf32>
    %cst_264 = arith.constant dense<0.000000e+00> : vector<1xf32>
    %839 = vector.multi_reduction <add>, %828, %cst_264 [1] : vector<1x16xf32> to vector<1xf32>
    %840 = vector.shape_cast %839 : vector<1xf32> to vector<1x1xf32>
    %841 = tpu.reciprocal %840 {approx = true} : vector<1x1xf32> -> vector<1x1xf32>
    %842 = arith.mulf %838, %841 : vector<1x1xf32>
    %843 = arith.cmpi ne, %836, %807 : vector<1x1xi32>
    %cst_265 = arith.constant 9.99999974E-5 : f32
    %844 = vector.broadcast %cst_265 : f32 to vector<1x1xf32>
    %845 = arith.addf %842, %844 : vector<1x1xf32>
    %846 = math.log %845 : vector<1x1xf32>
    %cst_266 = arith.constant 0.000000e+00 : f32
    %847 = vector.broadcast %cst_266 : f32 to vector<1x1xf32>
    %848 = arith.select %843, %846, %847 : vector<1x1xi1>, vector<1x1xf32>
    %849 = arith.addf %795, %848 : vector<1x1xf32>
    %850 = vector.broadcast %836 : vector<1x1xi32> to vector<1x16xi32>
    %851 = arith.cmpi eq, %40, %850 : vector<1x16xi32>
    %852 = arith.extui %851 : vector<1x16xi1> to vector<1x16xi32>
    %853 = vector.shape_cast %843 : vector<1x1xi1> to vector<1x1xi1>
    %854 = vector.broadcast %853 : vector<1x1xi1> to vector<1x16xi1>
    %855 = arith.select %854, %852, %801 : vector<1x16xi1>, vector<1x16xi32>
    %c15_i32 = arith.constant 15 : i32
    %c0_i32_267 = arith.constant 0 : i32
    %856 = vector.broadcast %c0_i32_267 : i32 to vector<1x16xi32>
    %857 = arith.cmpi sgt, %855, %856 : vector<1x16xi32>
    %c16_i32_268 = arith.constant 16 : i32
    %858 = vector.broadcast %c16_i32_268 : i32 to vector<1x16xi32>
    %859 = arith.select %857, %40, %858 : vector<1x16xi1>, vector<1x16xi32>
    %cst_269 = arith.constant dense<2147483647> : vector<1xi32>
    %860 = vector.multi_reduction <minsi>, %859, %cst_269 [1] : vector<1x16xi32> to vector<1xi32>
    %861 = vector.shape_cast %860 : vector<1xi32> to vector<1x1xi32>
    %862 = vector.broadcast %861 : vector<1x1xi32> to vector<1x16xi32>
    %863 = arith.cmpi eq, %41, %862 : vector<1x16xi32>
    %864 = arith.ori %857, %863 : vector<1x16xi1>
    %cst_270 = arith.constant 1.000000e+30 : f32
    %865 = vector.broadcast %cst_270 : f32 to vector<1x16xf32>
    %866 = arith.select %864, %39, %865 : vector<1x16xi1>, vector<1x16xf32>
    %cst_271 = arith.constant 0.000000e+00 : f32
    %867 = vector.broadcast %cst_271 : f32 to vector<1x16xf32>
    %868 = arith.subf %867, %39 : vector<1x16xf32>
    %cst_272 = arith.constant -1.000000e+30 : f32
    %869 = vector.broadcast %cst_272 : f32 to vector<1x16xf32>
    %870 = arith.select %864, %868, %869 : vector<1x16xi1>, vector<1x16xf32>
    %cst_273 = arith.constant dense<0xFF800000> : vector<1xf32>
    %871 = vector.multi_reduction <maximumf>, %870, %cst_273 [1] : vector<1x16xf32> to vector<1xf32>
    %872 = vector.shape_cast %871 : vector<1xf32> to vector<1x1xf32>
    %873 = vector.broadcast %872 : vector<1x1xf32> to vector<1x16xf32>
    %874 = arith.subf %870, %873 : vector<1x16xf32>
    %875 = math.exp %874 : vector<1x16xf32>
    %cst_274 = arith.constant 0.000000e+00 : f32
    %876 = vector.broadcast %cst_274 : f32 to vector<1x16xf32>
    %877 = arith.select %864, %875, %876 : vector<1x16xi1>, vector<1x16xf32>
    %cst_275 = arith.constant dense<0.000000e+00> : vector<1xf32>
    %878 = vector.multi_reduction <add>, %877, %cst_275 [1] : vector<1x16xf32> to vector<1xf32>
    %879 = vector.shape_cast %878 : vector<1xf32> to vector<1x1xf32>
    %880 = tpu.reciprocal %879 {approx = true} : vector<1x1xf32> -> vector<1x1xf32>
    %881 = vector.broadcast %880 : vector<1x1xf32> to vector<1x16xf32>
    %882 = arith.mulf %877, %881 : vector<1x16xf32>
    %cst_276 = arith.constant dense<0x7F800000> : vector<1xf32>
    %883 = vector.multi_reduction <minimumf>, %866, %cst_276 [1] : vector<1x16xf32> to vector<1xf32>
    %884 = vector.shape_cast %883 : vector<1xf32> to vector<1x1xf32>
    %885 = vector.broadcast %884 : vector<1x1xf32> to vector<1x16xf32>
    %886 = arith.cmpf ole, %866, %885 : vector<1x16xf32>
    %c16_i32_277 = arith.constant 16 : i32
    %887 = vector.broadcast %c16_i32_277 : i32 to vector<1x16xi32>
    %888 = arith.select %886, %40, %887 : vector<1x16xi1>, vector<1x16xi32>
    %cst_278 = arith.constant dense<2147483647> : vector<1xi32>
    %889 = vector.multi_reduction <minsi>, %888, %cst_278 [1] : vector<1x16xi32> to vector<1xi32>
    %890 = vector.shape_cast %889 : vector<1xi32> to vector<1x1xi32>
    %cst_279 = arith.constant dense<0xFF800000> : vector<1xf32>
    %891 = vector.multi_reduction <maximumf>, %882, %cst_279 [1] : vector<1x16xf32> to vector<1xf32>
    %892 = vector.shape_cast %891 : vector<1xf32> to vector<1x1xf32>
    %cst_280 = arith.constant dense<0.000000e+00> : vector<1xf32>
    %893 = vector.multi_reduction <add>, %882, %cst_280 [1] : vector<1x16xf32> to vector<1xf32>
    %894 = vector.shape_cast %893 : vector<1xf32> to vector<1x1xf32>
    %895 = tpu.reciprocal %894 {approx = true} : vector<1x1xf32> -> vector<1x1xf32>
    %896 = arith.mulf %892, %895 : vector<1x1xf32>
    %897 = arith.cmpi ne, %890, %861 : vector<1x1xi32>
    %cst_281 = arith.constant 9.99999974E-5 : f32
    %898 = vector.broadcast %cst_281 : f32 to vector<1x1xf32>
    %899 = arith.addf %896, %898 : vector<1x1xf32>
    %900 = math.log %899 : vector<1x1xf32>
    %cst_282 = arith.constant 0.000000e+00 : f32
    %901 = vector.broadcast %cst_282 : f32 to vector<1x1xf32>
    %902 = arith.select %897, %900, %901 : vector<1x1xi1>, vector<1x1xf32>
    %903 = arith.addf %849, %902 : vector<1x1xf32>
    %904 = vector.broadcast %890 : vector<1x1xi32> to vector<1x16xi32>
    %905 = arith.cmpi eq, %40, %904 : vector<1x16xi32>
    %906 = arith.extui %905 : vector<1x16xi1> to vector<1x16xi32>
    %907 = vector.shape_cast %897 : vector<1x1xi1> to vector<1x1xi1>
    %908 = vector.broadcast %907 : vector<1x1xi1> to vector<1x16xi1>
    %909 = arith.select %908, %906, %855 : vector<1x16xi1>, vector<1x16xi32>
    %c0_i32_283 = arith.constant 0 : i32
    %910 = vector.broadcast %c0_i32_283 : i32 to vector<1x16xi32>
    %911 = arith.cmpi sgt, %909, %910 : vector<1x16xi32>
    %c16_i32_284 = arith.constant 16 : i32
    %912 = vector.broadcast %c16_i32_284 : i32 to vector<1x16xi32>
    %913 = arith.select %911, %40, %912 : vector<1x16xi1>, vector<1x16xi32>
    %cst_285 = arith.constant dense<2147483647> : vector<1xi32>
    %914 = vector.multi_reduction <minsi>, %913, %cst_285 [1] : vector<1x16xi32> to vector<1xi32>
    %915 = vector.shape_cast %914 : vector<1xi32> to vector<1x1xi32>
    %c16_i32_286 = arith.constant 16 : i32
    %916 = vector.broadcast %c16_i32_286 : i32 to vector<1x16xi32>
    %917 = arith.select %911, %41, %916 : vector<1x16xi1>, vector<1x16xi32>
    %cst_287 = arith.constant dense<2147483647> : vector<1xi32>
    %918 = vector.multi_reduction <minsi>, %917, %cst_287 [1] : vector<1x16xi32> to vector<1xi32>
    %919 = vector.shape_cast %918 : vector<1xi32> to vector<1x1xi32>
    %c0_i32_288 = arith.constant 0 : i32
    %920 = vector.broadcast %c0_i32_288 : i32 to vector<1x1xi32>
    %921 = arith.cmpi sge, %919, %920 : vector<1x1xi32>
    %922 = arith.select %921, %919, %915 : vector<1x1xi1>, vector<1x1xi32>
    %923 = vector.broadcast %922 : vector<1x1xi32> to vector<1x16xi32>
    %924 = arith.cmpi eq, %40, %923 : vector<1x16xi32>
    %925 = vector.broadcast %922 : vector<1x1xi32> to vector<1x16xi32>
    %926 = arith.cmpi eq, %41, %925 : vector<1x16xi32>
    %927 = arith.ori %924, %926 : vector<1x16xi1>
    %cst_289 = arith.constant 0.000000e+00 : f32
    %928 = vector.broadcast %cst_289 : f32 to vector<1x16xf32>
    %929 = arith.subf %928, %39 : vector<1x16xf32>
    %cst_290 = arith.constant -1.000000e+30 : f32
    %930 = vector.broadcast %cst_290 : f32 to vector<1x16xf32>
    %931 = arith.select %927, %929, %930 : vector<1x16xi1>, vector<1x16xf32>
    %cst_291 = arith.constant dense<0xFF800000> : vector<1xf32>
    %932 = vector.multi_reduction <maximumf>, %931, %cst_291 [1] : vector<1x16xf32> to vector<1xf32>
    %933 = vector.shape_cast %932 : vector<1xf32> to vector<1x1xf32>
    %934 = vector.broadcast %933 : vector<1x1xf32> to vector<1x16xf32>
    %935 = arith.subf %931, %934 : vector<1x16xf32>
    %936 = math.exp %935 : vector<1x16xf32>
    %cst_292 = arith.constant 0.000000e+00 : f32
    %937 = vector.broadcast %cst_292 : f32 to vector<1x16xf32>
    %938 = arith.select %927, %936, %937 : vector<1x16xi1>, vector<1x16xf32>
    %cst_293 = arith.constant dense<0.000000e+00> : vector<1xf32>
    %939 = vector.multi_reduction <add>, %938, %cst_293 [1] : vector<1x16xf32> to vector<1xf32>
    %940 = vector.shape_cast %939 : vector<1xf32> to vector<1x1xf32>
    %941 = tpu.reciprocal %940 {approx = true} : vector<1x1xf32> -> vector<1x1xf32>
    %942 = vector.broadcast %941 : vector<1x1xf32> to vector<1x16xf32>
    %943 = arith.mulf %938, %942 : vector<1x16xf32>
    %c0_294 = arith.constant 0 : index
    %c0_295 = arith.constant 0 : index
    %944 = vector.load %arg2[%c0_294, %c0_295] : memref<16x3xf32, #tpu.memory_space<vmem>>, vector<16x3xf32>
    %cst_296 = arith.constant dense<0.000000e+00> : vector<1x3xf32>
    %945 = tpu.matmul %943, %944, %cst_296 {dimension_numbers = #tpu.dot_dimension_numbers<[1], [0], [0], [1], [0, 0, 1, 1], [], []>} : vector<1x16xf32>, vector<16x3xf32>, vector<1x3xf32> -> vector<1x3xf32>
    %cst_297 = arith.constant 9.99999974E-5 : f32
    %946 = vector.broadcast %cst_297 : f32 to vector<1x3xf32>
    %947 = arith.addf %945, %946 : vector<1x3xf32>
    %948 = math.log %947 : vector<1x3xf32>
    %949 = vector.broadcast %903 : vector<1x1xf32> to vector<1x3xf32>
    %950 = arith.addf %948, %949 : vector<1x3xf32>
    %c0_298 = arith.constant 0 : index
    %c0_299 = arith.constant 0 : index
    %951 = vector.load %arg11[%c0_298, %c0_299] : memref<1x3xf32, #tpu.memory_space<vmem>>, vector<1x3xf32>
    tpu.vector_store %arg11[%c0_298, %c0_299], %950 {strides = array<i32>} : memref<1x3xf32, #tpu.memory_space<vmem>>, vector<1x3xf32>,
    %c0_300 = arith.constant 0 : index
    %c0_301 = arith.constant 0 : index
    %952 = vector.load %arg12[%c0_300, %c0_301] : memref<1x1xi32, #tpu.memory_space<vmem>>, vector<1x1xi32>
    tpu.vector_store %arg12[%c0_300, %c0_301], %915 {strides = array<i32>} : memref<1x1xi32, #tpu.memory_space<vmem>>, vector<1x1xi32>,
    return
  }
}

</mosaic_0001>

<llo_original>
// kernel: tpu_custom_call.1
$region0: #{tpu_custom_call.1}
  #allocation0 [shape = 'u32[]', space=smem, size = 0x4, offset = 0x4, fixed_abs, tag = 'smem constant byte address 0x4 - core index']
  #allocation1 [shape = 'u32[144,128]{1,0:T(1,128)}', space=vmem, size = 0x12000, scoped, tag = 'internal scratch']
  %s0 = inlined_call_operand.vmem [shape: f32[2,16], index: 0, kind: input, shape index: {}]
  %s1 = inlined_call_operand.vmem [shape: s32[1,16], index: 1, kind: input, shape index: {}]
  %s2 = inlined_call_operand.vmem [shape: f32[16,3], index: 2, kind: input, shape index: {}]
  %s3 = inlined_call_operand.vmem [shape: f32[128,2], index: 3, kind: input, shape index: {}]
  %s4 = inlined_call_operand.vmem [shape: f32[128,1], index: 4, kind: input, shape index: {}]
  %s5 = inlined_call_operand.vmem [shape: f32[128,128], index: 5, kind: input, shape index: {}]
  %s6 = inlined_call_operand.vmem [shape: f32[128,1], index: 6, kind: input, shape index: {}]
  %s7 = inlined_call_operand.vmem [shape: f32[128,128], index: 7, kind: input, shape index: {}]
  %s8 = inlined_call_operand.vmem [shape: f32[128,1], index: 8, kind: input, shape index: {}]
  %s9 = inlined_call_operand.vmem [shape: f32[2,128], index: 9, kind: input, shape index: {}]
  %s10 = inlined_call_operand.vmem [shape: f32[2,1], index: 10, kind: input, shape index: {}]
  %s11 = inlined_call_operand.hbm [shape: f32[1,3], index: 11, kind: output, shape index: {0}]
  %s12 = inlined_call_operand.hbm [shape: s32[1,1], index: 12, kind: output, shape index: {1}]
  %13 = xla_tuple %s11, %s12
  %s14 = sld [smem:[#allocation0]]
  $region62: #{tpu_custom_call.1} parent=0
    _
  %s16 = ssub.s32 1, %s14
  %s17 = scalar_select 0, %s16, %s14
  $region1: #{tpu_custom_call.1} parent=0
    #allocation2 [shape = 'u8[512]{0}', space=vmem, size = 0x400, scoped, tag = 'output window, operand 0, single buffered']
    #allocation3 [shape = 's32[1]{0}', space=sflag, size = 0x4, scoped, tag = 'scoped memory for tpu_custom_call.1']
    #allocation4 [shape = 'u8[512]{0}', space=vmem, size = 0x400, scoped, tag = 'output window, operand 1, single buffered']
    #allocation5 [shape = 's32[1]{0}', space=sflag, size = 0x4, scoped, tag = 'scoped memory for tpu_custom_call.1']
    %18 = vsyncpa [#allocation3], 0
    %19 = vsyncpa [#allocation5], 0
    // Predicated region
    $region2: #{tpu_custom_call.1} parent=1 // pred_check
      _
    $region3: #{tpu_custom_call.1} parent=1 // pred_check_branch
      %21 = sbr.rel (0) target = $region5
    $region4: #{tpu_custom_call.1} parent=1 // pred_region
      _
    $region5: #{tpu_custom_call.1} parent=1 // pred_fallthru
      _
    // Predicated region
    $region6: #{tpu_custom_call.1} parent=1 // pred_check
      _
    $region7: #{tpu_custom_call.1} parent=1 // pred_check_branch
      %23 = sbr.rel (0) target = $region9
    $region8: #{tpu_custom_call.1} parent=1 // pred_region
      _
    $region9: #{tpu_custom_call.1} parent=1 // pred_fallthru
      _
    // Predicated region
    $region10: #{tpu_custom_call.1} parent=1 // pred_check
      _
    $region11: #{tpu_custom_call.1} parent=1 // pred_check_branch
      %25 = sbr.rel (0) target = $region13
    $region12: #{tpu_custom_call.1} parent=1 // pred_region
      _
    $region13: #{tpu_custom_call.1} parent=1 // pred_fallthru
      _
    // Predicated region
    $region14: #{tpu_custom_call.1} parent=1 // pred_check
      _
    $region15: #{tpu_custom_call.1} parent=1 // pred_check_branch
      %27 = sbr.rel (0) target = $region17
    $region16: #{tpu_custom_call.1} parent=1 // pred_region
      _
    $region17: #{tpu_custom_call.1} parent=1 // pred_fallthru
      _
    // Predicated region
    $region18: #{tpu_custom_call.1} parent=1 // pred_check
      _
    $region19: #{tpu_custom_call.1} parent=1 // pred_check_branch
      %29 = sbr.rel (0) target = $region21
    $region20: #{tpu_custom_call.1} parent=1 // pred_region
      _
    $region21: #{tpu_custom_call.1} parent=1 // pred_fallthru
      _
    // Predicated region
    $region22: #{tpu_custom_call.1} parent=1 // pred_check
      _
    $region23: #{tpu_custom_call.1} parent=1 // pred_check_branch
      %31 = sbr.rel (0) target = $region25
    $region24: #{tpu_custom_call.1} parent=1 // pred_region
      _
    $region25: #{tpu_custom_call.1} parent=1 // pred_fallthru
      _
    // Predicated region
    $region26: #{tpu_custom_call.1} parent=1 // pred_check
      _
    $region27: #{tpu_custom_call.1} parent=1 // pred_check_branch
      %33 = sbr.rel (0) target = $region29
    $region28: #{tpu_custom_call.1} parent=1 // pred_region
      _
    $region29: #{tpu_custom_call.1} parent=1 // pred_fallthru
      _
    // Predicated region
    $region30: #{tpu_custom_call.1} parent=1 // pred_check
      _
    $region31: #{tpu_custom_call.1} parent=1 // pred_check_branch
      %35 = sbr.rel (0) target = $region33
    $region32: #{tpu_custom_call.1} parent=1 // pred_region
      _
    $region33: #{tpu_custom_call.1} parent=1 // pred_fallthru
      _
    // Predicated region
    $region34: #{tpu_custom_call.1} parent=1 // pred_check
      _
    $region35: #{tpu_custom_call.1} parent=1 // pred_check_branch
      %37 = sbr.rel (0) target = $region37
    $region36: #{tpu_custom_call.1} parent=1 // pred_region
      _
    $region37: #{tpu_custom_call.1} parent=1 // pred_fallthru
      _
    // Predicated region
    $region38: #{tpu_custom_call.1} parent=1 // pred_check
      _
    $region39: #{tpu_custom_call.1} parent=1 // pred_check_branch
      %39 = sbr.rel (0) target = $region41
    $region40: #{tpu_custom_call.1} parent=1 // pred_region
      _
    $region41: #{tpu_custom_call.1} parent=1 // pred_fallthru
      _
    // Predicated region
    $region42: #{tpu_custom_call.1} parent=1 // pred_check
      _
    $region43: #{tpu_custom_call.1} parent=1 // pred_check_branch
      %41 = sbr.rel (0) target = $region45
    $region44: #{tpu_custom_call.1} parent=1 // pred_region
      _
    $region45: #{tpu_custom_call.1} parent=1 // pred_fallthru
      _
    %v42 = vld [vmem:[%s0] sm:$0x3]
    %v43 = vld [vmem:[%s3] sm:$0xff]
    %v44 = vld [vmem:[%s3 + $0x8] sm:$0xff]
    %v45 = vld [vmem:[%s3 + $0x10] sm:$0xff]
    %v46 = vld [vmem:[%s3 + $0x18] sm:$0xff]
    %v47 = vld [vmem:[%s3 + $0x20] sm:$0xff]
    %v48 = vld [vmem:[%s3 + $0x28] sm:$0xff]
    %v49 = vld [vmem:[%s3 + $0x30] sm:$0xff]
    %v50 = vld [vmem:[%s3 + $0x38] sm:$0xff]
    %v51 = vld [vmem:[%s3 + $0x40] sm:$0xff]
    %v52 = vld [vmem:[%s3 + $0x48] sm:$0xff]
    %v53 = vld [vmem:[%s3 + $0x50] sm:$0xff]
    %v54 = vld [vmem:[%s3 + $0x58] sm:$0xff]
    %v55 = vld [vmem:[%s3 + $0x60] sm:$0xff]
    %v56 = vld [vmem:[%s3 + $0x68] sm:$0xff]
    %v57 = vld [vmem:[%s3 + $0x70] sm:$0xff]
    %v58 = vld [vmem:[%s3 + $0x78] sm:$0xff]
    %v59 = vld [vmem:[%s4] sm:$0xff]
    %v60 = vld [vmem:[%s4 + $0x8] sm:$0xff]
    %v61 = vld [vmem:[%s4 + $0x10] sm:$0xff]
    %v62 = vld [vmem:[%s4 + $0x18] sm:$0xff]
    %v63 = vld [vmem:[%s4 + $0x20] sm:$0xff]
    %v64 = vld [vmem:[%s4 + $0x28] sm:$0xff]
    %v65 = vld [vmem:[%s4 + $0x30] sm:$0xff]
    %v66 = vld [vmem:[%s4 + $0x38] sm:$0xff]
    %v67 = vld [vmem:[%s4 + $0x40] sm:$0xff]
    %v68 = vld [vmem:[%s4 + $0x48] sm:$0xff]
    %v69 = vld [vmem:[%s4 + $0x50] sm:$0xff]
    %v70 = vld [vmem:[%s4 + $0x58] sm:$0xff]
    %v71 = vld [vmem:[%s4 + $0x60] sm:$0xff]
    %v72 = vld [vmem:[%s4 + $0x68] sm:$0xff]
    %v73 = vld [vmem:[%s4 + $0x70] sm:$0xff]
    %v74 = vld [vmem:[%s4 + $0x78] sm:$0xff]
    %76 = vset.pattern.permute.xlu0 0
    %77 = vperm.xlu0 %76, %v59
    %v78 = vpop.permute.xlu0 %77
    %81 = vset.pattern.permute.xlu0 0
    %82 = vperm.xlu0 %81, %v60
    %v83 = vpop.permute.xlu0 %82
    %86 = vset.pattern.permute.xlu0 0
    %87 = vperm.xlu0 %86, %v61
    %v88 = vpop.permute.xlu0 %87
    %91 = vset.pattern.permute.xlu0 0
    %92 = vperm.xlu0 %91, %v62
    %v93 = vpop.permute.xlu0 %92
    %96 = vset.pattern.permute.xlu0 0
    %97 = vperm.xlu0 %96, %v63
    %v98 = vpop.permute.xlu0 %97
    %101 = vset.pattern.permute.xlu0 0
    %102 = vperm.xlu0 %101, %v64
    %v103 = vpop.permute.xlu0 %102
    %106 = vset.pattern.permute.xlu0 0
    %107 = vperm.xlu0 %106, %v65
    %v108 = vpop.permute.xlu0 %107
    %111 = vset.pattern.permute.xlu0 0
    %112 = vperm.xlu0 %111, %v66
    %v113 = vpop.permute.xlu0 %112
    %116 = vset.pattern.permute.xlu0 0
    %117 = vperm.xlu0 %116, %v67
    %v118 = vpop.permute.xlu0 %117
    %121 = vset.pattern.permute.xlu0 0
    %122 = vperm.xlu0 %121, %v68
    %v123 = vpop.permute.xlu0 %122
    %126 = vset.pattern.permute.xlu0 0
    %127 = vperm.xlu0 %126, %v69
    %v128 = vpop.permute.xlu0 %127
    %131 = vset.pattern.permute.xlu0 0
    %132 = vperm.xlu0 %131, %v70
    %v133 = vpop.permute.xlu0 %132
    %136 = vset.pattern.permute.xlu0 0
    %137 = vperm.xlu0 %136, %v71
    %v138 = vpop.permute.xlu0 %137
    %141 = vset.pattern.permute.xlu0 0
    %142 = vperm.xlu0 %141, %v72
    %v143 = vpop.permute.xlu0 %142
    %146 = vset.pattern.permute.xlu0 0
    %147 = vperm.xlu0 %146, %v73
    %v148 = vpop.permute.xlu0 %147
    %151 = vset.pattern.permute.xlu0 0
    %152 = vperm.xlu0 %151, %v74
    %v153 = vpop.permute.xlu0 %152
    %vm155 = vcmask 15360
    %v157 = vsel %vm155, %v43, 0
    %v160 = vsel %vm155, %v44, 0
    %v163 = vsel %vm155, %v45, 0
    %v166 = vsel %vm155, %v46, 0
    %v169 = vsel %vm155, %v47, 0
    %v172 = vsel %vm155, %v48, 0
    %v175 = vsel %vm155, %v49, 0
    %v178 = vsel %vm155, %v50, 0
    %v181 = vsel %vm155, %v51, 0
    %v184 = vsel %vm155, %v52, 0
    %v187 = vsel %vm155, %v53, 0
    %v190 = vsel %vm155, %v54, 0
    %v193 = vsel %vm155, %v55, 0
    %v196 = vsel %vm155, %v56, 0
    %v199 = vsel %vm155, %v57, 0
    %v202 = vsel %vm155, %v58, 0
    %vm204 = vcmask 1041408
    %v206 = vsel %vm204, %v42, 0
    %208 = vmatprep.subr.mxu0 0.0
    %209 = vmatpush1.msra.mxu0 0.0
    %210 = vmatprep.subr.mxu0 0.0
    %211 = vmatpush1.msra.mxu0 0.0
    %212 = vmatprep.subr.mxu0 0.0
    %213 = vmatpush1.msra.mxu0 0.0
    %214 = vmatprep.subr.mxu0 0.0
    %215 = vmatpush1.msra.mxu0 0.0
    %216 = vmatprep.subr.mxu0 0.0
    %217 = vmatpush1.msra.mxu0 0.0
    %218 = vmatprep.subr.mxu0 0.0
    %219 = vmatpush1.msra.mxu0 0.0
    %220 = vmatprep.subr.mxu0 0.0
    %221 = vmatpush1.msra.mxu0 0.0
    %222 = vmatprep.subr.mxu0 0.0
    %223 = vmatpush1.msra.mxu0 0.0
    %224 = vmatprep.subr.mxu0 0.0
    %225 = vmatpush1.msra.mxu0 0.0
    %226 = vmatprep.subr.mxu0 0.0
    %227 = vmatpush1.msra.mxu0 0.0
    %228 = vmatprep.subr.mxu0 0.0
    %229 = vmatpush1.msra.mxu0 0.0
    %230 = vmatprep.subr.mxu0 0.0
    %231 = vmatpush1.msra.mxu0 0.0
    %232 = vmatprep.subr.mxu0 0.0
    %233 = vmatpush1.msra.mxu0 0.0
    %234 = vmatprep.subr.mxu0 0.0
    %235 = vmatpush1.msra.mxu0 0.0
    %236 = vmatprep.subr.mxu0 0.0
    %237 = vmatpush1.msra.mxu0 0.0
    %238 = vmatprep.subr.mxu0 0.0
    %239 = vmatpush1.msra.mxu0 %v206
    %240 = vmatprep.subr.mxu0 0.0
    %241 = vmatpush2.msra.mxu0 0.0
    %242 = vmatprep.subr.mxu0 0.0
    %243 = vmatpush2.msra.mxu0 0.0
    %244 = vmatprep.subr.mxu0 0.0
    %245 = vmatpush2.msra.mxu0 0.0
    %246 = vmatprep.subr.mxu0 0.0
    %247 = vmatpush2.msra.mxu0 0.0
    %248 = vmatprep.subr.mxu0 0.0
    %249 = vmatpush2.msra.mxu0 0.0
    %250 = vmatprep.subr.mxu0 0.0
    %251 = vmatpush2.msra.mxu0 0.0
    %252 = vmatprep.subr.mxu0 0.0
    %253 = vmatpush2.msra.mxu0 0.0
    %254 = vmatprep.subr.mxu0 0.0
    %255 = vmatpush2.msra.mxu0 0.0
    %256 = vmatprep.subr.mxu0 0.0
    %257 = vmatpush2.msra.mxu0 0.0
    %258 = vmatprep.subr.mxu0 0.0
    %259 = vmatpush2.msra.mxu0 0.0
    %260 = vmatprep.subr.mxu0 0.0
    %261 = vmatpush2.msra.mxu0 0.0
    %262 = vmatprep.subr.mxu0 0.0
    %263 = vmatpush2.msra.mxu0 0.0
    %264 = vmatprep.subr.mxu0 0.0
    %265 = vmatpush2.msra.mxu0 0.0
    %266 = vmatprep.subr.mxu0 0.0
    %267 = vmatpush2.msra.mxu0 0.0
    %268 = vmatprep.subr.mxu0 0.0
    %269 = vmatpush2.msra.mxu0 0.0
    %270 = vmatprep.subr.mxu0 0.0
    %271 = vmatpush2.msra.mxu0 0.0
    %272 = vmatprep.mubr.f32.mxu0 0.0
    %273 = vmatmul.mubr.f32.gmra.mxu0 %v157
    %v274 = vpop.f32.mrf.mxu0
    %v275 = vadd.f32 %v78, %v274
    %v276 = vpop.f32.mrf.mxu0
    %277 = vmatprep.mubr.f32.mxu0 0.0
    %278 = vmatmul.mubr.f32.gmra.mxu0 %v160
    %v279 = vpop.f32.mrf.mxu0
    %v280 = vadd.f32 %v83, %v279
    %v281 = vpop.f32.mrf.mxu0
    %282 = vmatprep.mubr.f32.mxu0 0.0
    %283 = vmatmul.mubr.f32.gmra.mxu0 %v163
    %v284 = vpop.f32.mrf.mxu0
    %v285 = vadd.f32 %v88, %v284
    %v286 = vpop.f32.mrf.mxu0
    %287 = vmatprep.mubr.f32.mxu0 0.0
    %288 = vmatmul.mubr.f32.gmra.mxu0 %v166
    %v289 = vpop.f32.mrf.mxu0
    %v290 = vadd.f32 %v93, %v289
    %v291 = vpop.f32.mrf.mxu0
    %292 = vmatprep.mubr.f32.mxu0 0.0
    %293 = vmatmul.mubr.f32.gmra.mxu0 %v169
    %v294 = vpop.f32.mrf.mxu0
    %v295 = vadd.f32 %v98, %v294
    %v296 = vpop.f32.mrf.mxu0
    %297 = vmatprep.mubr.f32.mxu0 0.0
    %298 = vmatmul.mubr.f32.gmra.mxu0 %v172
    %v299 = vpop.f32.mrf.mxu0
    %v300 = vadd.f32 %v103, %v299
    %v301 = vpop.f32.mrf.mxu0
    %302 = vmatprep.mubr.f32.mxu0 0.0
    %303 = vmatmul.mubr.f32.gmra.mxu0 %v175
    %v304 = vpop.f32.mrf.mxu0
    %v305 = vadd.f32 %v108, %v304
    %v306 = vpop.f32.mrf.mxu0
    %307 = vmatprep.mubr.f32.mxu0 0.0
    %308 = vmatmul.mubr.f32.gmra.mxu0 %v178
    %v309 = vpop.f32.mrf.mxu0
    %v310 = vadd.f32 %v113, %v309
    %v311 = vpop.f32.mrf.mxu0
    %312 = vmatprep.mubr.f32.mxu0 0.0
    %313 = vmatmul.mubr.f32.gmra.mxu0 %v181
    %v314 = vpop.f32.mrf.mxu0
    %v315 = vadd.f32 %v118, %v314
    %v316 = vpop.f32.mrf.mxu0
    %317 = vmatprep.mubr.f32.mxu0 0.0
    %318 = vmatmul.mubr.f32.gmra.mxu0 %v184
    %v319 = vpop.f32.mrf.mxu0
    %v320 = vadd.f32 %v123, %v319
    %v321 = vpop.f32.mrf.mxu0
    %322 = vmatprep.mubr.f32.mxu0 0.0
    %323 = vmatmul.mubr.f32.gmra.mxu0 %v187
    %v324 = vpop.f32.mrf.mxu0
    %v325 = vadd.f32 %v128, %v324
    %v326 = vpop.f32.mrf.mxu0
    %327 = vmatprep.mubr.f32.mxu0 0.0
    %328 = vmatmul.mubr.f32.gmra.mxu0 %v190
    %v329 = vpop.f32.mrf.mxu0
    %v330 = vadd.f32 %v133, %v329
    %v331 = vpop.f32.mrf.mxu0
    %332 = vmatprep.mubr.f32.mxu0 0.0
    %333 = vmatmul.mubr.f32.gmra.mxu0 %v193
    %v334 = vpop.f32.mrf.mxu0
    %v335 = vadd.f32 %v138, %v334
    %v336 = vpop.f32.mrf.mxu0
    %337 = vmatprep.mubr.f32.mxu0 0.0
    %338 = vmatmul.mubr.f32.gmra.mxu0 %v196
    %v339 = vpop.f32.mrf.mxu0
    %v340 = vadd.f32 %v143, %v339
    %v341 = vpop.f32.mrf.mxu0
    %342 = vmatprep.mubr.f32.mxu0 0.0
    %343 = vmatmul.mubr.f32.gmra.mxu0 %v199
    %v344 = vpop.f32.mrf.mxu0
    %v345 = vadd.f32 %v148, %v344
    %v346 = vpop.f32.mrf.mxu0
    %347 = vmatprep.mubr.f32.mxu0 0.0
    %348 = vmatmul.mubr.f32.gmra.mxu0 %v202
    %v349 = vpop.f32.mrf.mxu0
    %v350 = vadd.f32 %v153, %v349
    %v351 = vpop.f32.mrf.mxu0
    %352 = vdwg.mxu0
    %v353 = vmax.f32 %v275, 0.0
    %v354 = vmax.f32 %v280, 0.0
    %v355 = vmax.f32 %v285, 0.0
    %v356 = vmax.f32 %v290, 0.0
    %v357 = vmax.f32 %v295, 0.0
    %v358 = vmax.f32 %v300, 0.0
    %v359 = vmax.f32 %v305, 0.0
    %v360 = vmax.f32 %v310, 0.0
    %v361 = vmax.f32 %v315, 0.0
    %v362 = vmax.f32 %v320, 0.0
    %v363 = vmax.f32 %v325, 0.0
    %v364 = vmax.f32 %v330, 0.0
    %v365 = vmax.f32 %v335, 0.0
    %v366 = vmax.f32 %v340, 0.0
    %v367 = vmax.f32 %v345, 0.0
    %v368 = vmax.f32 %v350, 0.0
    %v369 = vld [vmem:[%s5] sm:$0xff]
    %v370 = vld [vmem:[%s5 + $0x8] sm:$0xff]
    %v371 = vld [vmem:[%s5 + $0x10] sm:$0xff]
    %v372 = vld [vmem:[%s5 + $0x18] sm:$0xff]
    %v373 = vld [vmem:[%s5 + $0x20] sm:$0xff]
    %v374 = vld [vmem:[%s5 + $0x28] sm:$0xff]
    %v375 = vld [vmem:[%s5 + $0x30] sm:$0xff]
    %v376 = vld [vmem:[%s5 + $0x38] sm:$0xff]
    %v377 = vld [vmem:[%s5 + $0x40] sm:$0xff]
    %v378 = vld [vmem:[%s5 + $0x48] sm:$0xff]
    %v379 = vld [vmem:[%s5 + $0x50] sm:$0xff]
    %v380 = vld [vmem:[%s5 + $0x58] sm:$0xff]
    %v381 = vld [vmem:[%s5 + $0x60] sm:$0xff]
    %v382 = vld [vmem:[%s5 + $0x68] sm:$0xff]
    %v383 = vld [vmem:[%s5 + $0x70] sm:$0xff]
    %v384 = vld [vmem:[%s5 + $0x78] sm:$0xff]
    %v385 = vld [vmem:[%s6] sm:$0xff]
    %v386 = vld [vmem:[%s6 + $0x8] sm:$0xff]
    %v387 = vld [vmem:[%s6 + $0x10] sm:$0xff]
    %v388 = vld [vmem:[%s6 + $0x18] sm:$0xff]
    %v389 = vld [vmem:[%s6 + $0x20] sm:$0xff]
    %v390 = vld [vmem:[%s6 + $0x28] sm:$0xff]
    %v391 = vld [vmem:[%s6 + $0x30] sm:$0xff]
    %v392 = vld [vmem:[%s6 + $0x38] sm:$0xff]
    %v393 = vld [vmem:[%s6 + $0x40] sm:$0xff]
    %v394 = vld [vmem:[%s6 + $0x48] sm:$0xff]
    %v395 = vld [vmem:[%s6 + $0x50] sm:$0xff]
    %v396 = vld [vmem:[%s6 + $0x58] sm:$0xff]
    %v397 = vld [vmem:[%s6 + $0x60] sm:$0xff]
    %v398 = vld [vmem:[%s6 + $0x68] sm:$0xff]
    %v399 = vld [vmem:[%s6 + $0x70] sm:$0xff]
    %v400 = vld [vmem:[%s6 + $0x78] sm:$0xff]
    %402 = vset.pattern.permute.xlu0 0
    %403 = vperm.xlu0 %402, %v385
    %v404 = vpop.permute.xlu0 %403
    %407 = vset.pattern.permute.xlu0 0
    %408 = vperm.xlu0 %407, %v386
    %v409 = vpop.permute.xlu0 %408
    %412 = vset.pattern.permute.xlu0 0
    %413 = vperm.xlu0 %412, %v387
    %v414 = vpop.permute.xlu0 %413
    %417 = vset.pattern.permute.xlu0 0
    %418 = vperm.xlu0 %417, %v388
    %v419 = vpop.permute.xlu0 %418
    %422 = vset.pattern.permute.xlu0 0
    %423 = vperm.xlu0 %422, %v389
    %v424 = vpop.permute.xlu0 %423
    %427 = vset.pattern.permute.xlu0 0
    %428 = vperm.xlu0 %427, %v390
    %v429 = vpop.permute.xlu0 %428
    %432 = vset.pattern.permute.xlu0 0
    %433 = vperm.xlu0 %432, %v391
    %v434 = vpop.permute.xlu0 %433
    %437 = vset.pattern.permute.xlu0 0
    %438 = vperm.xlu0 %437, %v392
    %v439 = vpop.permute.xlu0 %438
    %442 = vset.pattern.permute.xlu0 0
    %443 = vperm.xlu0 %442, %v393
    %v444 = vpop.permute.xlu0 %443
    %447 = vset.pattern.permute.xlu0 0
    %448 = vperm.xlu0 %447, %v394
    %v449 = vpop.permute.xlu0 %448
    %452 = vset.pattern.permute.xlu0 0
    %453 = vperm.xlu0 %452, %v395
    %v454 = vpop.permute.xlu0 %453
    %457 = vset.pattern.permute.xlu0 0
    %458 = vperm.xlu0 %457, %v396
    %v459 = vpop.permute.xlu0 %458
    %462 = vset.pattern.permute.xlu0 0
    %463 = vperm.xlu0 %462, %v397
    %v464 = vpop.permute.xlu0 %463
    %467 = vset.pattern.permute.xlu0 0
    %468 = vperm.xlu0 %467, %v398
    %v469 = vpop.permute.xlu0 %468
    %472 = vset.pattern.permute.xlu0 0
    %473 = vperm.xlu0 %472, %v399
    %v474 = vpop.permute.xlu0 %473
    %477 = vset.pattern.permute.xlu0 0
    %478 = vperm.xlu0 %477, %v400
    %v479 = vpop.permute.xlu0 %478
    %481 = vmatprep.subr.mxu0 0.0
    %482 = vmatpush1.msra.mxu0 %v368
    %483 = vmatprep.subr.mxu0 0.0
    %484 = vmatpush1.msra.mxu0 %v367
    %485 = vmatprep.subr.mxu0 0.0
    %486 = vmatpush1.msra.mxu0 %v366
    %487 = vmatprep.subr.mxu0 0.0
    %488 = vmatpush1.msra.mxu0 %v365
    %489 = vmatprep.subr.mxu0 0.0
    %490 = vmatpush1.msra.mxu0 %v364
    %491 = vmatprep.subr.mxu0 0.0
    %492 = vmatpush1.msra.mxu0 %v363
    %493 = vmatprep.subr.mxu0 0.0
    %494 = vmatpush1.msra.mxu0 %v362
    %495 = vmatprep.subr.mxu0 0.0
    %496 = vmatpush1.msra.mxu0 %v361
    %497 = vmatprep.subr.mxu0 0.0
    %498 = vmatpush1.msra.mxu0 %v360
    %499 = vmatprep.subr.mxu0 0.0
    %500 = vmatpush1.msra.mxu0 %v359
    %501 = vmatprep.subr.mxu0 0.0
    %502 = vmatpush1.msra.mxu0 %v358
    %503 = vmatprep.subr.mxu0 0.0
    %504 = vmatpush1.msra.mxu0 %v357
    %505 = vmatprep.subr.mxu0 0.0
    %506 = vmatpush1.msra.mxu0 %v356
    %507 = vmatprep.subr.mxu0 0.0
    %508 = vmatpush1.msra.mxu0 %v355
    %509 = vmatprep.subr.mxu0 0.0
    %510 = vmatpush1.msra.mxu0 %v354
    %511 = vmatprep.subr.mxu0 0.0
    %512 = vmatpush1.msra.mxu0 %v353
    %513 = vmatprep.subr.mxu0 0.0
    %514 = vmatpush2.msra.mxu0 0.0
    %515 = vmatprep.subr.mxu0 0.0
    %516 = vmatpush2.msra.mxu0 0.0
    %517 = vmatprep.subr.mxu0 0.0
    %518 = vmatpush2.msra.mxu0 0.0
    %519 = vmatprep.subr.mxu0 0.0
    %520 = vmatpush2.msra.mxu0 0.0
    %521 = vmatprep.subr.mxu0 0.0
    %522 = vmatpush2.msra.mxu0 0.0
    %523 = vmatprep.subr.mxu0 0.0
    %524 = vmatpush2.msra.mxu0 0.0
    %525 = vmatprep.subr.mxu0 0.0
    %526 = vmatpush2.msra.mxu0 0.0
    %527 = vmatprep.subr.mxu0 0.0
    %528 = vmatpush2.msra.mxu0 0.0
    %529 = vmatprep.subr.mxu0 0.0
    %530 = vmatpush2.msra.mxu0 0.0
    %531 = vmatprep.subr.mxu0 0.0
    %532 = vmatpush2.msra.mxu0 0.0
    %533 = vmatprep.subr.mxu0 0.0
    %534 = vmatpush2.msra.mxu0 0.0
    %535 = vmatprep.subr.mxu0 0.0
    %536 = vmatpush2.msra.mxu0 0.0
    %537 = vmatprep.subr.mxu0 0.0
    %538 = vmatpush2.msra.mxu0 0.0
    %539 = vmatprep.subr.mxu0 0.0
    %540 = vmatpush2.msra.mxu0 0.0
    %541 = vmatprep.subr.mxu0 0.0
    %542 = vmatpush2.msra.mxu0 0.0
    %543 = vmatprep.subr.mxu0 0.0
    %544 = vmatpush2.msra.mxu0 0.0
    %545 = vmatprep.mubr.f32.mxu0 0.0
    %546 = vmatmul.mubr.f32.gmra.mxu0 %v369
    %v547 = vpop.f32.mrf.mxu0
    %v548 = vadd.f32 %v404, %v547
    %v549 = vpop.f32.mrf.mxu0
    %550 = vmatprep.mubr.f32.mxu0 0.0
    %551 = vmatmul.mubr.f32.gmra.mxu0 %v370
    %v552 = vpop.f32.mrf.mxu0
    %v553 = vadd.f32 %v409, %v552
    %v554 = vpop.f32.mrf.mxu0
    %555 = vmatprep.mubr.f32.mxu0 0.0
    %556 = vmatmul.mubr.f32.gmra.mxu0 %v371
    %v557 = vpop.f32.mrf.mxu0
    %v558 = vadd.f32 %v414, %v557
    %v559 = vpop.f32.mrf.mxu0
    %560 = vmatprep.mubr.f32.mxu0 0.0
    %561 = vmatmul.mubr.f32.gmra.mxu0 %v372
    %v562 = vpop.f32.mrf.mxu0
    %v563 = vadd.f32 %v419, %v562
    %v564 = vpop.f32.mrf.mxu0
    %565 = vmatprep.mubr.f32.mxu0 0.0
    %566 = vmatmul.mubr.f32.gmra.mxu0 %v373
    %v567 = vpop.f32.mrf.mxu0
    %v568 = vadd.f32 %v424, %v567
    %v569 = vpop.f32.mrf.mxu0
    %570 = vmatprep.mubr.f32.mxu0 0.0
    %571 = vmatmul.mubr.f32.gmra.mxu0 %v374
    %v572 = vpop.f32.mrf.mxu0
    %v573 = vadd.f32 %v429, %v572
    %v574 = vpop.f32.mrf.mxu0
    %575 = vmatprep.mubr.f32.mxu0 0.0
    %576 = vmatmul.mubr.f32.gmra.mxu0 %v375
    %v577 = vpop.f32.mrf.mxu0
    %v578 = vadd.f32 %v434, %v577
    %v579 = vpop.f32.mrf.mxu0
    %580 = vmatprep.mubr.f32.mxu0 0.0
    %581 = vmatmul.mubr.f32.gmra.mxu0 %v376
    %v582 = vpop.f32.mrf.mxu0
    %v583 = vadd.f32 %v439, %v582
    %v584 = vpop.f32.mrf.mxu0
    %585 = vmatprep.mubr.f32.mxu0 0.0
    %586 = vmatmul.mubr.f32.gmra.mxu0 %v377
    %v587 = vpop.f32.mrf.mxu0
    %v588 = vadd.f32 %v444, %v587
    %v589 = vpop.f32.mrf.mxu0
    %590 = vmatprep.mubr.f32.mxu0 0.0
    %591 = vmatmul.mubr.f32.gmra.mxu0 %v378
    %v592 = vpop.f32.mrf.mxu0
    %v593 = vadd.f32 %v449, %v592
    %v594 = vpop.f32.mrf.mxu0
    %595 = vmatprep.mubr.f32.mxu0 0.0
    %596 = vmatmul.mubr.f32.gmra.mxu0 %v379
    %v597 = vpop.f32.mrf.mxu0
    %v598 = vadd.f32 %v454, %v597
    %v599 = vpop.f32.mrf.mxu0
    %600 = vmatprep.mubr.f32.mxu0 0.0
    %601 = vmatmul.mubr.f32.gmra.mxu0 %v380
    %v602 = vpop.f32.mrf.mxu0
    %v603 = vadd.f32 %v459, %v602
    %v604 = vpop.f32.mrf.mxu0
    %605 = vmatprep.mubr.f32.mxu0 0.0
    %606 = vmatmul.mubr.f32.gmra.mxu0 %v381
    %v607 = vpop.f32.mrf.mxu0
    %v608 = vadd.f32 %v464, %v607
    %v609 = vpop.f32.mrf.mxu0
    %610 = vmatprep.mubr.f32.mxu0 0.0
    %611 = vmatmul.mubr.f32.gmra.mxu0 %v382
    %v612 = vpop.f32.mrf.mxu0
    %v613 = vadd.f32 %v469, %v612
    %v614 = vpop.f32.mrf.mxu0
    %615 = vmatprep.mubr.f32.mxu0 0.0
    %616 = vmatmul.mubr.f32.gmra.mxu0 %v383
    %v617 = vpop.f32.mrf.mxu0
    %v618 = vadd.f32 %v474, %v617
    %v619 = vpop.f32.mrf.mxu0
    %620 = vmatprep.mubr.f32.mxu0 0.0
    %621 = vmatmul.mubr.f32.gmra.mxu0 %v384
    %v622 = vpop.f32.mrf.mxu0
    %v623 = vadd.f32 %v479, %v622
    %v624 = vpop.f32.mrf.mxu0
    %625 = vdwg.mxu0
    %v626 = vmax.f32 %v548, 0.0
    %v627 = vmax.f32 %v553, 0.0
    %v628 = vmax.f32 %v558, 0.0
    %v629 = vmax.f32 %v563, 0.0
    %v630 = vmax.f32 %v568, 0.0
    %v631 = vmax.f32 %v573, 0.0
    %v632 = vmax.f32 %v578, 0.0
    %v633 = vmax.f32 %v583, 0.0
    %v634 = vmax.f32 %v588, 0.0
    %v635 = vmax.f32 %v593, 0.0
    %v636 = vmax.f32 %v598, 0.0
    %v637 = vmax.f32 %v603, 0.0
    %v638 = vmax.f32 %v608, 0.0
    %v639 = vmax.f32 %v613, 0.0
    %v640 = vmax.f32 %v618, 0.0
    %v641 = vmax.f32 %v623, 0.0
    %v642 = vld [vmem:[%s7] sm:$0xff]
    %v643 = vld [vmem:[%s7 + $0x8] sm:$0xff]
    %v644 = vld [vmem:[%s7 + $0x10] sm:$0xff]
    %v645 = vld [vmem:[%s7 + $0x18] sm:$0xff]
    %v646 = vld [vmem:[%s7 + $0x20] sm:$0xff]
    %v647 = vld [vmem:[%s7 + $0x28] sm:$0xff]
    %v648 = vld [vmem:[%s7 + $0x30] sm:$0xff]
    %v649 = vld [vmem:[%s7 + $0x38] sm:$0xff]
    %v650 = vld [vmem:[%s7 + $0x40] sm:$0xff]
    %v651 = vld [vmem:[%s7 + $0x48] sm:$0xff]
    %v652 = vld [vmem:[%s7 + $0x50] sm:$0xff]
    %v653 = vld [vmem:[%s7 + $0x58] sm:$0xff]
    %v654 = vld [vmem:[%s7 + $0x60] sm:$0xff]
    %v655 = vld [vmem:[%s7 + $0x68] sm:$0xff]
    %v656 = vld [vmem:[%s7 + $0x70] sm:$0xff]
    %v657 = vld [vmem:[%s7 + $0x78] sm:$0xff]
    %v658 = vld [vmem:[%s8] sm:$0xff]
    %v659 = vld [vmem:[%s8 + $0x8] sm:$0xff]
    %v660 = vld [vmem:[%s8 + $0x10] sm:$0xff]
    %v661 = vld [vmem:[%s8 + $0x18] sm:$0xff]
    %v662 = vld [vmem:[%s8 + $0x20] sm:$0xff]
    %v663 = vld [vmem:[%s8 + $0x28] sm:$0xff]
    %v664 = vld [vmem:[%s8 + $0x30] sm:$0xff]
    %v665 = vld [vmem:[%s8 + $0x38] sm:$0xff]
    %v666 = vld [vmem:[%s8 + $0x40] sm:$0xff]
    %v667 = vld [vmem:[%s8 + $0x48] sm:$0xff]
    %v668 = vld [vmem:[%s8 + $0x50] sm:$0xff]
    %v669 = vld [vmem:[%s8 + $0x58] sm:$0xff]
    %v670 = vld [vmem:[%s8 + $0x60] sm:$0xff]
    %v671 = vld [vmem:[%s8 + $0x68] sm:$0xff]
    %v672 = vld [vmem:[%s8 + $0x70] sm:$0xff]
    %v673 = vld [vmem:[%s8 + $0x78] sm:$0xff]
    %675 = vset.pattern.permute.xlu0 0
    %676 = vperm.xlu0 %675, %v658
    %v677 = vpop.permute.xlu0 %676
    %680 = vset.pattern.permute.xlu0 0
    %681 = vperm.xlu0 %680, %v659
    %v682 = vpop.permute.xlu0 %681
    %685 = vset.pattern.permute.xlu0 0
    %686 = vperm.xlu0 %685, %v660
    %v687 = vpop.permute.xlu0 %686
    %690 = vset.pattern.permute.xlu0 0
    %691 = vperm.xlu0 %690, %v661
    %v692 = vpop.permute.xlu0 %691
    %695 = vset.pattern.permute.xlu0 0
    %696 = vperm.xlu0 %695, %v662
    %v697 = vpop.permute.xlu0 %696
    %700 = vset.pattern.permute.xlu0 0
    %701 = vperm.xlu0 %700, %v663
    %v702 = vpop.permute.xlu0 %701
    %705 = vset.pattern.permute.xlu0 0
    %706 = vperm.xlu0 %705, %v664
    %v707 = vpop.permute.xlu0 %706
    %710 = vset.pattern.permute.xlu0 0
    %711 = vperm.xlu0 %710, %v665
    %v712 = vpop.permute.xlu0 %711
    %715 = vset.pattern.permute.xlu0 0
    %716 = vperm.xlu0 %715, %v666
    %v717 = vpop.permute.xlu0 %716
    %720 = vset.pattern.permute.xlu0 0
    %721 = vperm.xlu0 %720, %v667
    %v722 = vpop.permute.xlu0 %721
    %725 = vset.pattern.permute.xlu0 0
    %726 = vperm.xlu0 %725, %v668
    %v727 = vpop.permute.xlu0 %726
    %730 = vset.pattern.permute.xlu0 0
    %731 = vperm.xlu0 %730, %v669
    %v732 = vpop.permute.xlu0 %731
    %735 = vset.pattern.permute.xlu0 0
    %736 = vperm.xlu0 %735, %v670
    %v737 = vpop.permute.xlu0 %736
    %740 = vset.pattern.permute.xlu0 0
    %741 = vperm.xlu0 %740, %v671
    %v742 = vpop.permute.xlu0 %741
    %745 = vset.pattern.permute.xlu0 0
    %746 = vperm.xlu0 %745, %v672
    %v747 = vpop.permute.xlu0 %746
    %750 = vset.pattern.permute.xlu0 0
    %751 = vperm.xlu0 %750, %v673
    %v752 = vpop.permute.xlu0 %751
    %754 = vmatprep.subr.mxu0 0.0
    %755 = vmatpush1.msra.mxu0 %v641
    %756 = vmatprep.subr.mxu0 0.0
    %757 = vmatpush1.msra.mxu0 %v640
    %758 = vmatprep.subr.mxu0 0.0
    %759 = vmatpush1.msra.mxu0 %v639
    %760 = vmatprep.subr.mxu0 0.0
    %761 = vmatpush1.msra.mxu0 %v638
    %762 = vmatprep.subr.mxu0 0.0
    %763 = vmatpush1.msra.mxu0 %v637
    %764 = vmatprep.subr.mxu0 0.0
    %765 = vmatpush1.msra.mxu0 %v636
    %766 = vmatprep.subr.mxu0 0.0
    %767 = vmatpush1.msra.mxu0 %v635
    %768 = vmatprep.subr.mxu0 0.0
    %769 = vmatpush1.msra.mxu0 %v634
    %770 = vmatprep.subr.mxu0 0.0
    %771 = vmatpush1.msra.mxu0 %v633
    %772 = vmatprep.subr.mxu0 0.0
    %773 = vmatpush1.msra.mxu0 %v632
    %774 = vmatprep.subr.mxu0 0.0
    %775 = vmatpush1.msra.mxu0 %v631
    %776 = vmatprep.subr.mxu0 0.0
    %777 = vmatpush1.msra.mxu0 %v630
    %778 = vmatprep.subr.mxu0 0.0
    %779 = vmatpush1.msra.mxu0 %v629
    %780 = vmatprep.subr.mxu0 0.0
    %781 = vmatpush1.msra.mxu0 %v628
    %782 = vmatprep.subr.mxu0 0.0
    %783 = vmatpush1.msra.mxu0 %v627
    %784 = vmatprep.subr.mxu0 0.0
    %785 = vmatpush1.msra.mxu0 %v626
    %786 = vmatprep.subr.mxu0 0.0
    %787 = vmatpush2.msra.mxu0 0.0
    %788 = vmatprep.subr.mxu0 0.0
    %789 = vmatpush2.msra.mxu0 0.0
    %790 = vmatprep.subr.mxu0 0.0
    %791 = vmatpush2.msra.mxu0 0.0
    %792 = vmatprep.subr.mxu0 0.0
    %793 = vmatpush2.msra.mxu0 0.0
    %794 = vmatprep.subr.mxu0 0.0
    %795 = vmatpush2.msra.mxu0 0.0
    %796 = vmatprep.subr.mxu0 0.0
    %797 = vmatpush2.msra.mxu0 0.0
    %798 = vmatprep.subr.mxu0 0.0
    %799 = vmatpush2.msra.mxu0 0.0
    %800 = vmatprep.subr.mxu0 0.0
    %801 = vmatpush2.msra.mxu0 0.0
    %802 = vmatprep.subr.mxu0 0.0
    %803 = vmatpush2.msra.mxu0 0.0
    %804 = vmatprep.subr.mxu0 0.0
    %805 = vmatpush2.msra.mxu0 0.0
    %806 = vmatprep.subr.mxu0 0.0
    %807 = vmatpush2.msra.mxu0 0.0
    %808 = vmatprep.subr.mxu0 0.0
    %809 = vmatpush2.msra.mxu0 0.0
    %810 = vmatprep.subr.mxu0 0.0
    %811 = vmatpush2.msra.mxu0 0.0
    %812 = vmatprep.subr.mxu0 0.0
    %813 = vmatpush2.msra.mxu0 0.0
    %814 = vmatprep.subr.mxu0 0.0
    %815 = vmatpush2.msra.mxu0 0.0
    %816 = vmatprep.subr.mxu0 0.0
    %817 = vmatpush2.msra.mxu0 0.0
    %818 = vmatprep.mubr.f32.mxu0 0.0
    %819 = vmatmul.mubr.f32.gmra.mxu0 %v642
    %v820 = vpop.f32.mrf.mxu0
    %v821 = vadd.f32 %v677, %v820
    %v822 = vpop.f32.mrf.mxu0
    %823 = vmatprep.mubr.f32.mxu0 0.0
    %824 = vmatmul.mubr.f32.gmra.mxu0 %v643
    %v825 = vpop.f32.mrf.mxu0
    %v826 = vadd.f32 %v682, %v825
    %v827 = vpop.f32.mrf.mxu0
    %828 = vmatprep.mubr.f32.mxu0 0.0
    %829 = vmatmul.mubr.f32.gmra.mxu0 %v644
    %v830 = vpop.f32.mrf.mxu0
    %v831 = vadd.f32 %v687, %v830
    %v832 = vpop.f32.mrf.mxu0
    %833 = vmatprep.mubr.f32.mxu0 0.0
    %834 = vmatmul.mubr.f32.gmra.mxu0 %v645
    %v835 = vpop.f32.mrf.mxu0
    %v836 = vadd.f32 %v692, %v835
    %v837 = vpop.f32.mrf.mxu0
    %838 = vmatprep.mubr.f32.mxu0 0.0
    %839 = vmatmul.mubr.f32.gmra.mxu0 %v646
    %v840 = vpop.f32.mrf.mxu0
    %v841 = vadd.f32 %v697, %v840
    %v842 = vpop.f32.mrf.mxu0
    %843 = vmatprep.mubr.f32.mxu0 0.0
    %844 = vmatmul.mubr.f32.gmra.mxu0 %v647
    %v845 = vpop.f32.mrf.mxu0
    %v846 = vadd.f32 %v702, %v845
    %v847 = vpop.f32.mrf.mxu0
    %848 = vmatprep.mubr.f32.mxu0 0.0
    %849 = vmatmul.mubr.f32.gmra.mxu0 %v648
    %v850 = vpop.f32.mrf.mxu0
    %v851 = vadd.f32 %v707, %v850
    %v852 = vpop.f32.mrf.mxu0
    %853 = vmatprep.mubr.f32.mxu0 0.0
    %854 = vmatmul.mubr.f32.gmra.mxu0 %v649
    %v855 = vpop.f32.mrf.mxu0
    %v856 = vadd.f32 %v712, %v855
    %v857 = vpop.f32.mrf.mxu0
    %858 = vmatprep.mubr.f32.mxu0 0.0
    %859 = vmatmul.mubr.f32.gmra.mxu0 %v650
    %v860 = vpop.f32.mrf.mxu0
    %v861 = vadd.f32 %v717, %v860
    %v862 = vpop.f32.mrf.mxu0
    %863 = vmatprep.mubr.f32.mxu0 0.0
    %864 = vmatmul.mubr.f32.gmra.mxu0 %v651
    %v865 = vpop.f32.mrf.mxu0
    %v866 = vadd.f32 %v722, %v865
    %v867 = vpop.f32.mrf.mxu0
    %868 = vmatprep.mubr.f32.mxu0 0.0
    %869 = vmatmul.mubr.f32.gmra.mxu0 %v652
    %v870 = vpop.f32.mrf.mxu0
    %v871 = vadd.f32 %v727, %v870
    %v872 = vpop.f32.mrf.mxu0
    %873 = vmatprep.mubr.f32.mxu0 0.0
    %874 = vmatmul.mubr.f32.gmra.mxu0 %v653
    %v875 = vpop.f32.mrf.mxu0
    %v876 = vadd.f32 %v732, %v875
    %v877 = vpop.f32.mrf.mxu0
    %878 = vmatprep.mubr.f32.mxu0 0.0
    %879 = vmatmul.mubr.f32.gmra.mxu0 %v654
    %v880 = vpop.f32.mrf.mxu0
    %v881 = vadd.f32 %v737, %v880
    %v882 = vpop.f32.mrf.mxu0
    %883 = vmatprep.mubr.f32.mxu0 0.0
    %884 = vmatmul.mubr.f32.gmra.mxu0 %v655
    %v885 = vpop.f32.mrf.mxu0
    %v886 = vadd.f32 %v742, %v885
    %v887 = vpop.f32.mrf.mxu0
    %888 = vmatprep.mubr.f32.mxu0 0.0
    %889 = vmatmul.mubr.f32.gmra.mxu0 %v656
    %v890 = vpop.f32.mrf.mxu0
    %v891 = vadd.f32 %v747, %v890
    %v892 = vpop.f32.mrf.mxu0
    %893 = vmatprep.mubr.f32.mxu0 0.0
    %894 = vmatmul.mubr.f32.gmra.mxu0 %v657
    %v895 = vpop.f32.mrf.mxu0
    %v896 = vadd.f32 %v752, %v895
    %v897 = vpop.f32.mrf.mxu0
    %898 = vdwg.mxu0
    %v899 = vmax.f32 %v821, 0.0
    %v900 = vmax.f32 %v826, 0.0
    %v901 = vmax.f32 %v831, 0.0
    %v902 = vmax.f32 %v836, 0.0
    %v903 = vmax.f32 %v841, 0.0
    %v904 = vmax.f32 %v846, 0.0
    %v905 = vmax.f32 %v851, 0.0
    %v906 = vmax.f32 %v856, 0.0
    %v907 = vmax.f32 %v861, 0.0
    %v908 = vmax.f32 %v866, 0.0
    %v909 = vmax.f32 %v871, 0.0
    %v910 = vmax.f32 %v876, 0.0
    %v911 = vmax.f32 %v881, 0.0
    %v912 = vmax.f32 %v886, 0.0
    %v913 = vmax.f32 %v891, 0.0
    %v914 = vmax.f32 %v896, 0.0
    %v915 = vld [vmem:[%s9] sm:$0x3]
    %v916 = vld [vmem:[%s10] sm:$0x3]
    %918 = vset.pattern.permute.xlu0 0
    %919 = vperm.xlu0 %918, %v916
    %v920 = vpop.permute.xlu0 %919
    %922 = vmatprep.subr.mxu0 0.0
    %923 = vmatpush1.msra.mxu0 %v914
    %924 = vmatprep.subr.mxu0 0.0
    %925 = vmatpush1.msra.mxu0 %v913
    %926 = vmatprep.subr.mxu0 0.0
    %927 = vmatpush1.msra.mxu0 %v912
    %928 = vmatprep.subr.mxu0 0.0
    %929 = vmatpush1.msra.mxu0 %v911
    %930 = vmatprep.subr.mxu0 0.0
    %931 = vmatpush1.msra.mxu0 %v910
    %932 = vmatprep.subr.mxu0 0.0
    %933 = vmatpush1.msra.mxu0 %v909
    %934 = vmatprep.subr.mxu0 0.0
    %935 = vmatpush1.msra.mxu0 %v908
    %936 = vmatprep.subr.mxu0 0.0
    %937 = vmatpush1.msra.mxu0 %v907
    %938 = vmatprep.subr.mxu0 0.0
    %939 = vmatpush1.msra.mxu0 %v906
    %940 = vmatprep.subr.mxu0 0.0
    %941 = vmatpush1.msra.mxu0 %v905
    %942 = vmatprep.subr.mxu0 0.0
    %943 = vmatpush1.msra.mxu0 %v904
    %944 = vmatprep.subr.mxu0 0.0
    %945 = vmatpush1.msra.mxu0 %v903
    %946 = vmatprep.subr.mxu0 0.0
    %947 = vmatpush1.msra.mxu0 %v902
    %948 = vmatprep.subr.mxu0 0.0
    %949 = vmatpush1.msra.mxu0 %v901
    %950 = vmatprep.subr.mxu0 0.0
    %951 = vmatpush1.msra.mxu0 %v900
    %952 = vmatprep.subr.mxu0 0.0
    %953 = vmatpush1.msra.mxu0 %v899
    %954 = vmatprep.subr.mxu0 0.0
    %955 = vmatpush2.msra.mxu0 0.0
    %956 = vmatprep.subr.mxu0 0.0
    %957 = vmatpush2.msra.mxu0 0.0
    %958 = vmatprep.subr.mxu0 0.0
    %959 = vmatpush2.msra.mxu0 0.0
    %960 = vmatprep.subr.mxu0 0.0
    %961 = vmatpush2.msra.mxu0 0.0
    %962 = vmatprep.subr.mxu0 0.0
    %963 = vmatpush2.msra.mxu0 0.0
    %964 = vmatprep.subr.mxu0 0.0
    %965 = vmatpush2.msra.mxu0 0.0
    %966 = vmatprep.subr.mxu0 0.0
    %967 = vmatpush2.msra.mxu0 0.0
    %968 = vmatprep.subr.mxu0 0.0
    %969 = vmatpush2.msra.mxu0 0.0
    %970 = vmatprep.subr.mxu0 0.0
    %971 = vmatpush2.msra.mxu0 0.0
    %972 = vmatprep.subr.mxu0 0.0
    %973 = vmatpush2.msra.mxu0 0.0
    %974 = vmatprep.subr.mxu0 0.0
    %975 = vmatpush2.msra.mxu0 0.0
    %976 = vmatprep.subr.mxu0 0.0
    %977 = vmatpush2.msra.mxu0 0.0
    %978 = vmatprep.subr.mxu0 0.0
    %979 = vmatpush2.msra.mxu0 0.0
    %980 = vmatprep.subr.mxu0 0.0
    %981 = vmatpush2.msra.mxu0 0.0
    %982 = vmatprep.subr.mxu0 0.0
    %983 = vmatpush2.msra.mxu0 0.0
    %984 = vmatprep.subr.mxu0 0.0
    %985 = vmatpush2.msra.mxu0 0.0
    %986 = vmatprep.mubr.f32.mxu0 0.0
    %987 = vmatmul.mubr.f32.gmra.mxu0 %v915
    %v988 = vpop.f32.mrf.mxu0
    %v989 = vadd.f32 %v920, %v988
    %v990 = vpop.f32.mrf.mxu0
    %991 = vdwg.mxu0
    %993 = vset.pattern.permute.xlu0 15
    %994 = vperm.xlu0 %993, %v989
    %v995 = vpop.permute.xlu0 %994
    %v997 = vsub.f32 %v989, %v995
    %v998 = vadd.f32 %v997, 1e-06
    %v999 = vmul.f32 %v998, %v998
    %v1001 = vrot.slane %v999, 1
    %v1003 = vadd.f32 %v999, %v1001
    %v1004 = vrsqrt.pop %v1003
    %v1005 = vmul.f32 %v1003, %v1004
    %vm1006 = vcmp.eq.f32.partialorder %v1003, inf
    %v1007 = vsel %vm1006, %v1003, %v1005
    %vm1008 = vcmp.eq.f32.partialorder %v1003, 0.0
    %v1009 = vand.u32 %v1003, 2147483648
    %v1010 = vsel %vm1008, %v1009, %v1007
    %v1011 = vlaneseq
    %v1012 = vand.u32 %v1011, 127
    %v1013 = vld [vmem:[%s1] sm:$0x1]
    %vm1014 = vcmp.eq.s32.totalorder %v1012, 0
    %v1015 = vsel %vm1014, 1, 0
    %vm1016 = vcmp.gt.s32.totalorder %v1015, 0
    %v1017 = vsel %vm1016, %v1012, 16
    %vm1018 = vcmask 130048
    %v1019 = vsel %vm1018, %v1017, 2147483647
    %v1020 = vand.u32 %v1019, 65535
    %v1021 = vshra.s32 %v1019, 16
    %v1022 = vcvt.s32.f32 %v1020
    %v1023 = vcvt.s32.f32 %v1021
    %1024 = vmin.xlane.f32.xlu0 %v1023
    %v1025 = vpop.xlane.xlu0 %1024
    %vm1026 = vcmp.eq.f32.partialorder %v1023, %v1025
    %v1027 = vsel %vm1026, %v1022, inf
    %1028 = vmin.xlane.f32.xlu0 %v1027
    %v1029 = vpop.xlane.xlu0 %1028
    %v1030 = vcvt.f32.s32 %v1029
    %v1031 = vcvt.f32.s32 %v1025
    %v1032 = vshll.u32 %v1031, 16
    %v1033 = vadd.s32 %v1032, %v1030
    %vm1034 = vcmp.eq.s32.totalorder %v1013, %v1033
    %vm1035 = vmor %vm1016, %vm1034
    %v1036 = vsel %vm1035, %v1010, 1e+30
    %v1037 = vsub.f32 0.0, %v1010
    %v1038 = vsel %vm1035, %v1037, -1e+30
    %vm1039 = vcmask 122880
    %v1040 = vsel %vm1039, %v1038, -inf
    %1041 = vmax.xlane.f32.xlu0 %v1040
    %v1042 = vpop.xlane.xlu0 %1041
    %v1043 = vsub.f32 %v1038, %v1042
    %v1044 = vmul.f32 %v1043, 1.442695
    %v1045 = vpow.pop %v1044
    %v1046 = vsel %vm1035, %v1045, 0.0
    %v1047 = vsel %vm1039, %v1046, 0.0
    %1048 = vadd.xlane.f32.xlu0 %v1047
    %v1049 = vpop.xlane.xlu0 %1048
    %v1050 = vrcp.pop %v1049
    %v1051 = vmul.f32 %v1046, %v1050
    %v1052 = vsel %vm1039, %v1036, inf
    %1053 = vmin.xlane.f32.xlu0 %v1052
    %v1054 = vpop.xlane.xlu0 %1053
    %vm1055 = vcmp.le.f32.partialorder %v1036, %v1054
    %v1056 = vsel %vm1055, %v1012, 16
    %v1057 = vsel %vm1039, %v1056, 2147483647
    %v1058 = vand.u32 %v1057, 65535
    %v1059 = vshra.s32 %v1057, 16
    %v1060 = vcvt.s32.f32 %v1058
    %v1061 = vcvt.s32.f32 %v1059
    %1062 = vmin.xlane.f32.xlu0 %v1061
    %v1063 = vpop.xlane.xlu0 %1062
    %vm1064 = vcmp.eq.f32.partialorder %v1061, %v1063
    %v1065 = vsel %vm1064, %v1060, inf
    %1066 = vmin.xlane.f32.xlu0 %v1065
    %v1067 = vpop.xlane.xlu0 %1066
    %v1068 = vcvt.f32.s32 %v1067
    %v1069 = vcvt.f32.s32 %v1063
    %v1070 = vshll.u32 %v1069, 16
    %v1071 = vadd.s32 %v1070, %v1068
    %v1072 = vsel %vm1039, %v1051, -inf
    %1073 = vmax.xlane.f32.xlu0 %v1072
    %v1074 = vpop.xlane.xlu0 %1073
    %v1075 = vsel %vm1039, %v1051, 0.0
    %1076 = vadd.xlane.f32.xlu0 %v1075
    %v1077 = vpop.xlane.xlu0 %1076
    %v1078 = vrcp.pop %v1077
    %v1079 = vmul.f32 %v1074, %v1078
    %vm1080 = vcmp.ne.s32.totalorder %v1071, %v1033
    %v1081 = vadd.f32 %v1079, 0.0001
    %v1082 = vlog2.pop %v1081
    %v1083 = vmul.f32 %v1082, 0.6931472
    %v1084 = vsel %vm1080, %v1083, 0.0
    %v1085 = vadd.f32 %v1084, 0.0
    %vm1086 = vcmp.eq.s32.totalorder %v1012, %v1071
    %v1087 = vsel %vm1086, 1, 0
    %v1088 = vsel %vm1080, 1, 0
    %vm1089 = vcmp.eq.s32.totalorder %v1088, 1
    %v1090 = vsel %vm1089, %v1087, %v1015
    %vm1091 = vcmp.gt.s32.totalorder %v1090, 0
    %v1092 = vsel %vm1091, %v1012, 16
    %v1093 = vsel %vm1039, %v1092, 2147483647
    %v1094 = vand.u32 %v1093, 65535
    %v1095 = vshra.s32 %v1093, 16
    %v1096 = vcvt.s32.f32 %v1094
    %v1097 = vcvt.s32.f32 %v1095
    %1098 = vmin.xlane.f32.xlu0 %v1097
    %v1099 = vpop.xlane.xlu0 %1098
    %vm1100 = vcmp.eq.f32.partialorder %v1097, %v1099
    %v1101 = vsel %vm1100, %v1096, inf
    %1102 = vmin.xlane.f32.xlu0 %v1101
    %v1103 = vpop.xlane.xlu0 %1102
    %v1104 = vcvt.f32.s32 %v1103
    %v1105 = vcvt.f32.s32 %v1099
    %v1106 = vshll.u32 %v1105, 16
    %v1107 = vadd.s32 %v1106, %v1104
    %vm1108 = vcmp.eq.s32.totalorder %v1013, %v1107
    %vm1109 = vmor %vm1091, %vm1108
    %v1110 = vsel %vm1109, %v1010, 1e+30
    %v1111 = vsel %vm1109, %v1037, -1e+30
    %v1112 = vsel %vm1039, %v1111, -inf
    %1113 = vmax.xlane.f32.xlu0 %v1112
    %v1114 = vpop.xlane.xlu0 %1113
    %v1115 = vsub.f32 %v1111, %v1114
    %v1116 = vmul.f32 %v1115, 1.442695
    %v1117 = vpow.pop %v1116
    %v1118 = vsel %vm1109, %v1117, 0.0
    %v1119 = vsel %vm1039, %v1118, 0.0
    %1120 = vadd.xlane.f32.xlu0 %v1119
    %v1121 = vpop.xlane.xlu0 %1120
    %v1122 = vrcp.pop %v1121
    %v1123 = vmul.f32 %v1118, %v1122
    %v1124 = vsel %vm1039, %v1110, inf
    %1125 = vmin.xlane.f32.xlu0 %v1124
    %v1126 = vpop.xlane.xlu0 %1125
    %vm1127 = vcmp.le.f32.partialorder %v1110, %v1126
    %v1128 = vsel %vm1127, %v1012, 16
    %v1129 = vsel %vm1039, %v1128, 2147483647
    %v1130 = vand.u32 %v1129, 65535
    %v1131 = vshra.s32 %v1129, 16
    %v1132 = vcvt.s32.f32 %v1130
    %v1133 = vcvt.s32.f32 %v1131
    %1134 = vmin.xlane.f32.xlu0 %v1133
    %v1135 = vpop.xlane.xlu0 %1134
    %vm1136 = vcmp.eq.f32.partialorder %v1133, %v1135
    %v1137 = vsel %vm1136, %v1132, inf
    %1138 = vmin.xlane.f32.xlu0 %v1137
    %v1139 = vpop.xlane.xlu0 %1138
    %v1140 = vcvt.f32.s32 %v1139
    %v1141 = vcvt.f32.s32 %v1135
    %v1142 = vshll.u32 %v1141, 16
    %v1143 = vadd.s32 %v1142, %v1140
    %v1144 = vsel %vm1039, %v1123, -inf
    %1145 = vmax.xlane.f32.xlu0 %v1144
    %v1146 = vpop.xlane.xlu0 %1145
    %v1147 = vsel %vm1039, %v1123, 0.0
    %1148 = vadd.xlane.f32.xlu0 %v1147
    %v1149 = vpop.xlane.xlu0 %1148
    %v1150 = vrcp.pop %v1149
    %v1151 = vmul.f32 %v1146, %v1150
    %vm1152 = vcmp.ne.s32.totalorder %v1143, %v1107
    %v1153 = vadd.f32 %v1151, 0.0001
    %v1154 = vlog2.pop %v1153
    %v1155 = vmul.f32 %v1154, 0.6931472
    %v1156 = vsel %vm1152, %v1155, 0.0
    %v1157 = vadd.f32 %v1085, %v1156
    %vm1158 = vcmp.eq.s32.totalorder %v1012, %v1143
    %v1159 = vsel %vm1158, 1, 0
    %v1160 = vsel %vm1152, 1, 0
    %vm1161 = vcmp.eq.s32.totalorder %v1160, 1
    %v1162 = vsel %vm1161, %v1159, %v1090
    %vm1163 = vcmp.gt.s32.totalorder %v1162, 0
    %v1164 = vsel %vm1163, %v1012, 16
    %v1165 = vsel %vm1039, %v1164, 2147483647
    %v1166 = vand.u32 %v1165, 65535
    %v1167 = vshra.s32 %v1165, 16
    %v1168 = vcvt.s32.f32 %v1166
    %v1169 = vcvt.s32.f32 %v1167
    %1170 = vmin.xlane.f32.xlu0 %v1169
    %v1171 = vpop.xlane.xlu0 %1170
    %vm1172 = vcmp.eq.f32.partialorder %v1169, %v1171
    %v1173 = vsel %vm1172, %v1168, inf
    %1174 = vmin.xlane.f32.xlu0 %v1173
    %v1175 = vpop.xlane.xlu0 %1174
    %v1176 = vcvt.f32.s32 %v1175
    %v1177 = vcvt.f32.s32 %v1171
    %v1178 = vshll.u32 %v1177, 16
    %v1179 = vadd.s32 %v1178, %v1176
    %vm1180 = vcmp.eq.s32.totalorder %v1013, %v1179
    %vm1181 = vmor %vm1163, %vm1180
    %v1182 = vsel %vm1181, %v1010, 1e+30
    %v1183 = vsel %vm1181, %v1037, -1e+30
    %v1184 = vsel %vm1039, %v1183, -inf
    %1185 = vmax.xlane.f32.xlu0 %v1184
    %v1186 = vpop.xlane.xlu0 %1185
    %v1187 = vsub.f32 %v1183, %v1186
    %v1188 = vmul.f32 %v1187, 1.442695
    %v1189 = vpow.pop %v1188
    %v1190 = vsel %vm1181, %v1189, 0.0
    %v1191 = vsel %vm1039, %v1190, 0.0
    %1192 = vadd.xlane.f32.xlu0 %v1191
    %v1193 = vpop.xlane.xlu0 %1192
    %v1194 = vrcp.pop %v1193
    %v1195 = vmul.f32 %v1190, %v1194
    %v1196 = vsel %vm1039, %v1182, inf
    %1197 = vmin.xlane.f32.xlu0 %v1196
    %v1198 = vpop.xlane.xlu0 %1197
    %vm1199 = vcmp.le.f32.partialorder %v1182, %v1198
    %v1200 = vsel %vm1199, %v1012, 16
    %v1201 = vsel %vm1039, %v1200, 2147483647
    %v1202 = vand.u32 %v1201, 65535
    %v1203 = vshra.s32 %v1201, 16
    %v1204 = vcvt.s32.f32 %v1202
    %v1205 = vcvt.s32.f32 %v1203
    %1206 = vmin.xlane.f32.xlu0 %v1205
    %v1207 = vpop.xlane.xlu0 %1206
    %vm1208 = vcmp.eq.f32.partialorder %v1205, %v1207
    %v1209 = vsel %vm1208, %v1204, inf
    %1210 = vmin.xlane.f32.xlu0 %v1209
    %v1211 = vpop.xlane.xlu0 %1210
    %v1212 = vcvt.f32.s32 %v1211
    %v1213 = vcvt.f32.s32 %v1207
    %v1214 = vshll.u32 %v1213, 16
    %v1215 = vadd.s32 %v1214, %v1212
    %v1216 = vsel %vm1039, %v1195, -inf
    %1217 = vmax.xlane.f32.xlu0 %v1216
    %v1218 = vpop.xlane.xlu0 %1217
    %v1219 = vsel %vm1039, %v1195, 0.0
    %1220 = vadd.xlane.f32.xlu0 %v1219
    %v1221 = vpop.xlane.xlu0 %1220
    %v1222 = vrcp.pop %v1221
    %v1223 = vmul.f32 %v1218, %v1222
    %vm1224 = vcmp.ne.s32.totalorder %v1215, %v1179
    %v1225 = vadd.f32 %v1223, 0.0001
    %v1226 = vlog2.pop %v1225
    %v1227 = vmul.f32 %v1226, 0.6931472
    %v1228 = vsel %vm1224, %v1227, 0.0
    %v1229 = vadd.f32 %v1157, %v1228
    %vm1230 = vcmp.eq.s32.totalorder %v1012, %v1215
    %v1231 = vsel %vm1230, 1, 0
    %v1232 = vsel %vm1224, 1, 0
    %vm1233 = vcmp.eq.s32.totalorder %v1232, 1
    %v1234 = vsel %vm1233, %v1231, %v1162
    %vm1235 = vcmp.gt.s32.totalorder %v1234, 0
    %v1236 = vsel %vm1235, %v1012, 16
    %v1237 = vsel %vm1039, %v1236, 2147483647
    %v1238 = vand.u32 %v1237, 65535
    %v1239 = vshra.s32 %v1237, 16
    %v1240 = vcvt.s32.f32 %v1238
    %v1241 = vcvt.s32.f32 %v1239
    %1242 = vmin.xlane.f32.xlu0 %v1241
    %v1243 = vpop.xlane.xlu0 %1242
    %vm1244 = vcmp.eq.f32.partialorder %v1241, %v1243
    %v1245 = vsel %vm1244, %v1240, inf
    %1246 = vmin.xlane.f32.xlu0 %v1245
    %v1247 = vpop.xlane.xlu0 %1246
    %v1248 = vcvt.f32.s32 %v1247
    %v1249 = vcvt.f32.s32 %v1243
    %v1250 = vshll.u32 %v1249, 16
    %v1251 = vadd.s32 %v1250, %v1248
    %vm1252 = vcmp.eq.s32.totalorder %v1013, %v1251
    %vm1253 = vmor %vm1235, %vm1252
    %v1254 = vsel %vm1253, %v1010, 1e+30
    %v1255 = vsel %vm1253, %v1037, -1e+30
    %v1256 = vsel %vm1039, %v1255, -inf
    %1257 = vmax.xlane.f32.xlu0 %v1256
    %v1258 = vpop.xlane.xlu0 %1257
    %v1259 = vsub.f32 %v1255, %v1258
    %v1260 = vmul.f32 %v1259, 1.442695
    %v1261 = vpow.pop %v1260
    %v1262 = vsel %vm1253, %v1261, 0.0
    %v1263 = vsel %vm1039, %v1262, 0.0
    %1264 = vadd.xlane.f32.xlu0 %v1263
    %v1265 = vpop.xlane.xlu0 %1264
    %v1266 = vrcp.pop %v1265
    %v1267 = vmul.f32 %v1262, %v1266
    %v1268 = vsel %vm1039, %v1254, inf
    %1269 = vmin.xlane.f32.xlu0 %v1268
    %v1270 = vpop.xlane.xlu0 %1269
    %vm1271 = vcmp.le.f32.partialorder %v1254, %v1270
    %v1272 = vsel %vm1271, %v1012, 16
    %v1273 = vsel %vm1039, %v1272, 2147483647
    %v1274 = vand.u32 %v1273, 65535
    %v1275 = vshra.s32 %v1273, 16
    %v1276 = vcvt.s32.f32 %v1274
    %v1277 = vcvt.s32.f32 %v1275
    %1278 = vmin.xlane.f32.xlu0 %v1277
    %v1279 = vpop.xlane.xlu0 %1278
    %vm1280 = vcmp.eq.f32.partialorder %v1277, %v1279
    %v1281 = vsel %vm1280, %v1276, inf
    %1282 = vmin.xlane.f32.xlu0 %v1281
    %v1283 = vpop.xlane.xlu0 %1282
    %v1284 = vcvt.f32.s32 %v1283
    %v1285 = vcvt.f32.s32 %v1279
    %v1286 = vshll.u32 %v1285, 16
    %v1287 = vadd.s32 %v1286, %v1284
    %v1288 = vsel %vm1039, %v1267, -inf
    %1289 = vmax.xlane.f32.xlu0 %v1288
    %v1290 = vpop.xlane.xlu0 %1289
    %v1291 = vsel %vm1039, %v1267, 0.0
    %1292 = vadd.xlane.f32.xlu0 %v1291
    %v1293 = vpop.xlane.xlu0 %1292
    %v1294 = vrcp.pop %v1293
    %v1295 = vmul.f32 %v1290, %v1294
    %vm1296 = vcmp.ne.s32.totalorder %v1287, %v1251
    %v1297 = vadd.f32 %v1295, 0.0001
    %v1298 = vlog2.pop %v1297
    %v1299 = vmul.f32 %v1298, 0.6931472
    %v1300 = vsel %vm1296, %v1299, 0.0
    %v1301 = vadd.f32 %v1229, %v1300
    %vm1302 = vcmp.eq.s32.totalorder %v1012, %v1287
    %v1303 = vsel %vm1302, 1, 0
    %v1304 = vsel %vm1296, 1, 0
    %vm1305 = vcmp.eq.s32.totalorder %v1304, 1
    %v1306 = vsel %vm1305, %v1303, %v1234
    %vm1307 = vcmp.gt.s32.totalorder %v1306, 0
    %v1308 = vsel %vm1307, %v1012, 16
    %v1309 = vsel %vm1039, %v1308, 2147483647
    %v1310 = vand.u32 %v1309, 65535
    %v1311 = vshra.s32 %v1309, 16
    %v1312 = vcvt.s32.f32 %v1310
    %v1313 = vcvt.s32.f32 %v1311
    %1314 = vmin.xlane.f32.xlu0 %v1313
    %v1315 = vpop.xlane.xlu0 %1314
    %vm1316 = vcmp.eq.f32.partialorder %v1313, %v1315
    %v1317 = vsel %vm1316, %v1312, inf
    %1318 = vmin.xlane.f32.xlu0 %v1317
    %v1319 = vpop.xlane.xlu0 %1318
    %v1320 = vcvt.f32.s32 %v1319
    %v1321 = vcvt.f32.s32 %v1315
    %v1322 = vshll.u32 %v1321, 16
    %v1323 = vadd.s32 %v1322, %v1320
    %vm1324 = vcmp.eq.s32.totalorder %v1013, %v1323
    %vm1325 = vmor %vm1307, %vm1324
    %v1326 = vsel %vm1325, %v1010, 1e+30
    %v1327 = vsel %vm1325, %v1037, -1e+30
    %v1328 = vsel %vm1039, %v1327, -inf
    %1329 = vmax.xlane.f32.xlu0 %v1328
    %v1330 = vpop.xlane.xlu0 %1329
    %v1331 = vsub.f32 %v1327, %v1330
    %v1332 = vmul.f32 %v1331, 1.442695
    %v1333 = vpow.pop %v1332
    %v1334 = vsel %vm1325, %v1333, 0.0
    %v1335 = vsel %vm1039, %v1334, 0.0
    %1336 = vadd.xlane.f32.xlu0 %v1335
    %v1337 = vpop.xlane.xlu0 %1336
    %v1338 = vrcp.pop %v1337
    %v1339 = vmul.f32 %v1334, %v1338
    %v1340 = vsel %vm1039, %v1326, inf
    %1341 = vmin.xlane.f32.xlu0 %v1340
    %v1342 = vpop.xlane.xlu0 %1341
    %vm1343 = vcmp.le.f32.partialorder %v1326, %v1342
    %v1344 = vsel %vm1343, %v1012, 16
    %v1345 = vsel %vm1039, %v1344, 2147483647
    %v1346 = vand.u32 %v1345, 65535
    %v1347 = vshra.s32 %v1345, 16
    %v1348 = vcvt.s32.f32 %v1346
    %v1349 = vcvt.s32.f32 %v1347
    %1350 = vmin.xlane.f32.xlu0 %v1349
    %v1351 = vpop.xlane.xlu0 %1350
    %vm1352 = vcmp.eq.f32.partialorder %v1349, %v1351
    %v1353 = vsel %vm1352, %v1348, inf
    %1354 = vmin.xlane.f32.xlu0 %v1353
    %v1355 = vpop.xlane.xlu0 %1354
    %v1356 = vcvt.f32.s32 %v1355
    %v1357 = vcvt.f32.s32 %v1351
    %v1358 = vshll.u32 %v1357, 16
    %v1359 = vadd.s32 %v1358, %v1356
    %v1360 = vsel %vm1039, %v1339, -inf
    %1361 = vmax.xlane.f32.xlu0 %v1360
    %v1362 = vpop.xlane.xlu0 %1361
    %v1363 = vsel %vm1039, %v1339, 0.0
    %1364 = vadd.xlane.f32.xlu0 %v1363
    %v1365 = vpop.xlane.xlu0 %1364
    %v1366 = vrcp.pop %v1365
    %v1367 = vmul.f32 %v1362, %v1366
    %vm1368 = vcmp.ne.s32.totalorder %v1359, %v1323
    %v1369 = vadd.f32 %v1367, 0.0001
    %v1370 = vlog2.pop %v1369
    %v1371 = vmul.f32 %v1370, 0.6931472
    %v1372 = vsel %vm1368, %v1371, 0.0
    %v1373 = vadd.f32 %v1301, %v1372
    %vm1374 = vcmp.eq.s32.totalorder %v1012, %v1359
    %v1375 = vsel %vm1374, 1, 0
    %v1376 = vsel %vm1368, 1, 0
    %vm1377 = vcmp.eq.s32.totalorder %v1376, 1
    %v1378 = vsel %vm1377, %v1375, %v1306
    %vm1379 = vcmp.gt.s32.totalorder %v1378, 0
    %v1380 = vsel %vm1379, %v1012, 16
    %v1381 = vsel %vm1039, %v1380, 2147483647
    %v1382 = vand.u32 %v1381, 65535
    %v1383 = vshra.s32 %v1381, 16
    %v1384 = vcvt.s32.f32 %v1382
    %v1385 = vcvt.s32.f32 %v1383
    %1386 = vmin.xlane.f32.xlu0 %v1385
    %v1387 = vpop.xlane.xlu0 %1386
    %vm1388 = vcmp.eq.f32.partialorder %v1385, %v1387
    %v1389 = vsel %vm1388, %v1384, inf
    %1390 = vmin.xlane.f32.xlu0 %v1389
    %v1391 = vpop.xlane.xlu0 %1390
    %v1392 = vcvt.f32.s32 %v1391
    %v1393 = vcvt.f32.s32 %v1387
    %v1394 = vshll.u32 %v1393, 16
    %v1395 = vadd.s32 %v1394, %v1392
    %vm1396 = vcmp.eq.s32.totalorder %v1013, %v1395
    %vm1397 = vmor %vm1379, %vm1396
    %v1398 = vsel %vm1397, %v1010, 1e+30
    %v1399 = vsel %vm1397, %v1037, -1e+30
    %v1400 = vsel %vm1039, %v1399, -inf
    %1401 = vmax.xlane.f32.xlu0 %v1400
    %v1402 = vpop.xlane.xlu0 %1401
    %v1403 = vsub.f32 %v1399, %v1402
    %v1404 = vmul.f32 %v1403, 1.442695
    %v1405 = vpow.pop %v1404
    %v1406 = vsel %vm1397, %v1405, 0.0
    %v1407 = vsel %vm1039, %v1406, 0.0
    %1408 = vadd.xlane.f32.xlu0 %v1407
    %v1409 = vpop.xlane.xlu0 %1408
    %v1410 = vrcp.pop %v1409
    %v1411 = vmul.f32 %v1406, %v1410
    %v1412 = vsel %vm1039, %v1398, inf
    %1413 = vmin.xlane.f32.xlu0 %v1412
    %v1414 = vpop.xlane.xlu0 %1413
    %vm1415 = vcmp.le.f32.partialorder %v1398, %v1414
    %v1416 = vsel %vm1415, %v1012, 16
    %v1417 = vsel %vm1039, %v1416, 2147483647
    %v1418 = vand.u32 %v1417, 65535
    %v1419 = vshra.s32 %v1417, 16
    %v1420 = vcvt.s32.f32 %v1418
    %v1421 = vcvt.s32.f32 %v1419
    %1422 = vmin.xlane.f32.xlu0 %v1421
    %v1423 = vpop.xlane.xlu0 %1422
    %vm1424 = vcmp.eq.f32.partialorder %v1421, %v1423
    %v1425 = vsel %vm1424, %v1420, inf
    %1426 = vmin.xlane.f32.xlu0 %v1425
    %v1427 = vpop.xlane.xlu0 %1426
    %v1428 = vcvt.f32.s32 %v1427
    %v1429 = vcvt.f32.s32 %v1423
    %v1430 = vshll.u32 %v1429, 16
    %v1431 = vadd.s32 %v1430, %v1428
    %v1432 = vsel %vm1039, %v1411, -inf
    %1433 = vmax.xlane.f32.xlu0 %v1432
    %v1434 = vpop.xlane.xlu0 %1433
    %v1435 = vsel %vm1039, %v1411, 0.0
    %1436 = vadd.xlane.f32.xlu0 %v1435
    %v1437 = vpop.xlane.xlu0 %1436
    %v1438 = vrcp.pop %v1437
    %v1439 = vmul.f32 %v1434, %v1438
    %vm1440 = vcmp.ne.s32.totalorder %v1431, %v1395
    %v1441 = vadd.f32 %v1439, 0.0001
    %v1442 = vlog2.pop %v1441
    %v1443 = vmul.f32 %v1442, 0.6931472
    %v1444 = vsel %vm1440, %v1443, 0.0
    %v1445 = vadd.f32 %v1373, %v1444
    %vm1446 = vcmp.eq.s32.totalorder %v1012, %v1431
    %v1447 = vsel %vm1446, 1, 0
    %v1448 = vsel %vm1440, 1, 0
    %vm1449 = vcmp.eq.s32.totalorder %v1448, 1
    %v1450 = vsel %vm1449, %v1447, %v1378
    %vm1451 = vcmp.gt.s32.totalorder %v1450, 0
    %v1452 = vsel %vm1451, %v1012, 16
    %v1453 = vsel %vm1039, %v1452, 2147483647
    %v1454 = vand.u32 %v1453, 65535
    %v1455 = vshra.s32 %v1453, 16
    %v1456 = vcvt.s32.f32 %v1454
    %v1457 = vcvt.s32.f32 %v1455
    %1458 = vmin.xlane.f32.xlu0 %v1457
    %v1459 = vpop.xlane.xlu0 %1458
    %vm1460 = vcmp.eq.f32.partialorder %v1457, %v1459
    %v1461 = vsel %vm1460, %v1456, inf
    %1462 = vmin.xlane.f32.xlu0 %v1461
    %v1463 = vpop.xlane.xlu0 %1462
    %v1464 = vcvt.f32.s32 %v1463
    %v1465 = vcvt.f32.s32 %v1459
    %v1466 = vshll.u32 %v1465, 16
    %v1467 = vadd.s32 %v1466, %v1464
    %vm1468 = vcmp.eq.s32.totalorder %v1013, %v1467
    %vm1469 = vmor %vm1451, %vm1468
    %v1470 = vsel %vm1469, %v1010, 1e+30
    %v1471 = vsel %vm1469, %v1037, -1e+30
    %v1472 = vsel %vm1039, %v1471, -inf
    %1473 = vmax.xlane.f32.xlu0 %v1472
    %v1474 = vpop.xlane.xlu0 %1473
    %v1475 = vsub.f32 %v1471, %v1474
    %v1476 = vmul.f32 %v1475, 1.442695
    %v1477 = vpow.pop %v1476
    %v1478 = vsel %vm1469, %v1477, 0.0
    %v1479 = vsel %vm1039, %v1478, 0.0
    %1480 = vadd.xlane.f32.xlu0 %v1479
    %v1481 = vpop.xlane.xlu0 %1480
    %v1482 = vrcp.pop %v1481
    %v1483 = vmul.f32 %v1478, %v1482
    %v1484 = vsel %vm1039, %v1470, inf
    %1485 = vmin.xlane.f32.xlu0 %v1484
    %v1486 = vpop.xlane.xlu0 %1485
    %vm1487 = vcmp.le.f32.partialorder %v1470, %v1486
    %v1488 = vsel %vm1487, %v1012, 16
    %v1489 = vsel %vm1039, %v1488, 2147483647
    %v1490 = vand.u32 %v1489, 65535
    %v1491 = vshra.s32 %v1489, 16
    %v1492 = vcvt.s32.f32 %v1490
    %v1493 = vcvt.s32.f32 %v1491
    %1494 = vmin.xlane.f32.xlu0 %v1493
    %v1495 = vpop.xlane.xlu0 %1494
    %vm1496 = vcmp.eq.f32.partialorder %v1493, %v1495
    %v1497 = vsel %vm1496, %v1492, inf
    %1498 = vmin.xlane.f32.xlu0 %v1497
    %v1499 = vpop.xlane.xlu0 %1498
    %v1500 = vcvt.f32.s32 %v1499
    %v1501 = vcvt.f32.s32 %v1495
    %v1502 = vshll.u32 %v1501, 16
    %v1503 = vadd.s32 %v1502, %v1500
    %v1504 = vsel %vm1039, %v1483, -inf
    %1505 = vmax.xlane.f32.xlu0 %v1504
    %v1506 = vpop.xlane.xlu0 %1505
    %v1507 = vsel %vm1039, %v1483, 0.0
    %1508 = vadd.xlane.f32.xlu0 %v1507
    %v1509 = vpop.xlane.xlu0 %1508
    %v1510 = vrcp.pop %v1509
    %v1511 = vmul.f32 %v1506, %v1510
    %vm1512 = vcmp.ne.s32.totalorder %v1503, %v1467
    %v1513 = vadd.f32 %v1511, 0.0001
    %v1514 = vlog2.pop %v1513
    %v1515 = vmul.f32 %v1514, 0.6931472
    %v1516 = vsel %vm1512, %v1515, 0.0
    %v1517 = vadd.f32 %v1445, %v1516
    %vm1518 = vcmp.eq.s32.totalorder %v1012, %v1503
    %v1519 = vsel %vm1518, 1, 0
    %v1520 = vsel %vm1512, 1, 0
    %vm1521 = vcmp.eq.s32.totalorder %v1520, 1
    %v1522 = vsel %vm1521, %v1519, %v1450
    %vm1523 = vcmp.gt.s32.totalorder %v1522, 0
    %v1524 = vsel %vm1523, %v1012, 16
    %v1525 = vsel %vm1039, %v1524, 2147483647
    %v1526 = vand.u32 %v1525, 65535
    %v1527 = vshra.s32 %v1525, 16
    %v1528 = vcvt.s32.f32 %v1526
    %v1529 = vcvt.s32.f32 %v1527
    %1530 = vmin.xlane.f32.xlu0 %v1529
    %v1531 = vpop.xlane.xlu0 %1530
    %vm1532 = vcmp.eq.f32.partialorder %v1529, %v1531
    %v1533 = vsel %vm1532, %v1528, inf
    %1534 = vmin.xlane.f32.xlu0 %v1533
    %v1535 = vpop.xlane.xlu0 %1534
    %v1536 = vcvt.f32.s32 %v1535
    %v1537 = vcvt.f32.s32 %v1531
    %v1538 = vshll.u32 %v1537, 16
    %v1539 = vadd.s32 %v1538, %v1536
    %vm1540 = vcmp.eq.s32.totalorder %v1013, %v1539
    %vm1541 = vmor %vm1523, %vm1540
    %v1542 = vsel %vm1541, %v1010, 1e+30
    %v1543 = vsel %vm1541, %v1037, -1e+30
    %v1544 = vsel %vm1039, %v1543, -inf
    %1545 = vmax.xlane.f32.xlu0 %v1544
    %v1546 = vpop.xlane.xlu0 %1545
    %v1547 = vsub.f32 %v1543, %v1546
    %v1548 = vmul.f32 %v1547, 1.442695
    %v1549 = vpow.pop %v1548
    %v1550 = vsel %vm1541, %v1549, 0.0
    %v1551 = vsel %vm1039, %v1550, 0.0
    %1552 = vadd.xlane.f32.xlu0 %v1551
    %v1553 = vpop.xlane.xlu0 %1552
    %v1554 = vrcp.pop %v1553
    %v1555 = vmul.f32 %v1550, %v1554
    %v1556 = vsel %vm1039, %v1542, inf
    %1557 = vmin.xlane.f32.xlu0 %v1556
    %v1558 = vpop.xlane.xlu0 %1557
    %vm1559 = vcmp.le.f32.partialorder %v1542, %v1558
    %v1560 = vsel %vm1559, %v1012, 16
    %v1561 = vsel %vm1039, %v1560, 2147483647
    %v1562 = vand.u32 %v1561, 65535
    %v1563 = vshra.s32 %v1561, 16
    %v1564 = vcvt.s32.f32 %v1562
    %v1565 = vcvt.s32.f32 %v1563
    %1566 = vmin.xlane.f32.xlu0 %v1565
    %v1567 = vpop.xlane.xlu0 %1566
    %vm1568 = vcmp.eq.f32.partialorder %v1565, %v1567
    %v1569 = vsel %vm1568, %v1564, inf
    %1570 = vmin.xlane.f32.xlu0 %v1569
    %v1571 = vpop.xlane.xlu0 %1570
    %v1572 = vcvt.f32.s32 %v1571
    %v1573 = vcvt.f32.s32 %v1567
    %v1574 = vshll.u32 %v1573, 16
    %v1575 = vadd.s32 %v1574, %v1572
    %v1576 = vsel %vm1039, %v1555, -inf
    %1577 = vmax.xlane.f32.xlu0 %v1576
    %v1578 = vpop.xlane.xlu0 %1577
    %v1579 = vsel %vm1039, %v1555, 0.0
    %1580 = vadd.xlane.f32.xlu0 %v1579
    %v1581 = vpop.xlane.xlu0 %1580
    %v1582 = vrcp.pop %v1581
    %v1583 = vmul.f32 %v1578, %v1582
    %vm1584 = vcmp.ne.s32.totalorder %v1575, %v1539
    %v1585 = vadd.f32 %v1583, 0.0001
    %v1586 = vlog2.pop %v1585
    %v1587 = vmul.f32 %v1586, 0.6931472
    %v1588 = vsel %vm1584, %v1587, 0.0
    %v1589 = vadd.f32 %v1517, %v1588
    %vm1590 = vcmp.eq.s32.totalorder %v1012, %v1575
    %v1591 = vsel %vm1590, 1, 0
    %v1592 = vsel %vm1584, 1, 0
    %vm1593 = vcmp.eq.s32.totalorder %v1592, 1
    %v1594 = vsel %vm1593, %v1591, %v1522
    %vm1595 = vcmp.gt.s32.totalorder %v1594, 0
    %v1596 = vsel %vm1595, %v1012, 16
    %v1597 = vsel %vm1039, %v1596, 2147483647
    %v1598 = vand.u32 %v1597, 65535
    %v1599 = vshra.s32 %v1597, 16
    %v1600 = vcvt.s32.f32 %v1598
    %v1601 = vcvt.s32.f32 %v1599
    %1602 = vmin.xlane.f32.xlu0 %v1601
    %v1603 = vpop.xlane.xlu0 %1602
    %vm1604 = vcmp.eq.f32.partialorder %v1601, %v1603
    %v1605 = vsel %vm1604, %v1600, inf
    %1606 = vmin.xlane.f32.xlu0 %v1605
    %v1607 = vpop.xlane.xlu0 %1606
    %v1608 = vcvt.f32.s32 %v1607
    %v1609 = vcvt.f32.s32 %v1603
    %v1610 = vshll.u32 %v1609, 16
    %v1611 = vadd.s32 %v1610, %v1608
    %vm1612 = vcmp.eq.s32.totalorder %v1013, %v1611
    %vm1613 = vmor %vm1595, %vm1612
    %v1614 = vsel %vm1613, %v1010, 1e+30
    %v1615 = vsel %vm1613, %v1037, -1e+30
    %v1616 = vsel %vm1039, %v1615, -inf
    %1617 = vmax.xlane.f32.xlu0 %v1616
    %v1618 = vpop.xlane.xlu0 %1617
    %v1619 = vsub.f32 %v1615, %v1618
    %v1620 = vmul.f32 %v1619, 1.442695
    %v1621 = vpow.pop %v1620
    %v1622 = vsel %vm1613, %v1621, 0.0
    %v1623 = vsel %vm1039, %v1622, 0.0
    %1624 = vadd.xlane.f32.xlu0 %v1623
    %v1625 = vpop.xlane.xlu0 %1624
    %v1626 = vrcp.pop %v1625
    %v1627 = vmul.f32 %v1622, %v1626
    %v1628 = vsel %vm1039, %v1614, inf
    %1629 = vmin.xlane.f32.xlu0 %v1628
    %v1630 = vpop.xlane.xlu0 %1629
    %vm1631 = vcmp.le.f32.partialorder %v1614, %v1630
    %v1632 = vsel %vm1631, %v1012, 16
    %v1633 = vsel %vm1039, %v1632, 2147483647
    %v1634 = vand.u32 %v1633, 65535
    %v1635 = vshra.s32 %v1633, 16
    %v1636 = vcvt.s32.f32 %v1634
    %v1637 = vcvt.s32.f32 %v1635
    %1638 = vmin.xlane.f32.xlu0 %v1637
    %v1639 = vpop.xlane.xlu0 %1638
    %vm1640 = vcmp.eq.f32.partialorder %v1637, %v1639
    %v1641 = vsel %vm1640, %v1636, inf
    %1642 = vmin.xlane.f32.xlu0 %v1641
    %v1643 = vpop.xlane.xlu0 %1642
    %v1644 = vcvt.f32.s32 %v1643
    %v1645 = vcvt.f32.s32 %v1639
    %v1646 = vshll.u32 %v1645, 16
    %v1647 = vadd.s32 %v1646, %v1644
    %v1648 = vsel %vm1039, %v1627, -inf
    %1649 = vmax.xlane.f32.xlu0 %v1648
    %v1650 = vpop.xlane.xlu0 %1649
    %v1651 = vsel %vm1039, %v1627, 0.0
    %1652 = vadd.xlane.f32.xlu0 %v1651
    %v1653 = vpop.xlane.xlu0 %1652
    %v1654 = vrcp.pop %v1653
    %v1655 = vmul.f32 %v1650, %v1654
    %vm1656 = vcmp.ne.s32.totalorder %v1647, %v1611
    %v1657 = vadd.f32 %v1655, 0.0001
    %v1658 = vlog2.pop %v1657
    %v1659 = vmul.f32 %v1658, 0.6931472
    %v1660 = vsel %vm1656, %v1659, 0.0
    %v1661 = vadd.f32 %v1589, %v1660
    %vm1662 = vcmp.eq.s32.totalorder %v1012, %v1647
    %v1663 = vsel %vm1662, 1, 0
    %v1664 = vsel %vm1656, 1, 0
    %vm1665 = vcmp.eq.s32.totalorder %v1664, 1
    %v1666 = vsel %vm1665, %v1663, %v1594
    %vm1667 = vcmp.gt.s32.totalorder %v1666, 0
    %v1668 = vsel %vm1667, %v1012, 16
    %v1669 = vsel %vm1039, %v1668, 2147483647
    %v1670 = vand.u32 %v1669, 65535
    %v1671 = vshra.s32 %v1669, 16
    %v1672 = vcvt.s32.f32 %v1670
    %v1673 = vcvt.s32.f32 %v1671
    %1674 = vmin.xlane.f32.xlu0 %v1673
    %v1675 = vpop.xlane.xlu0 %1674
    %vm1676 = vcmp.eq.f32.partialorder %v1673, %v1675
    %v1677 = vsel %vm1676, %v1672, inf
    %1678 = vmin.xlane.f32.xlu0 %v1677
    %v1679 = vpop.xlane.xlu0 %1678
    %v1680 = vcvt.f32.s32 %v1679
    %v1681 = vcvt.f32.s32 %v1675
    %v1682 = vshll.u32 %v1681, 16
    %v1683 = vadd.s32 %v1682, %v1680
    %vm1684 = vcmp.eq.s32.totalorder %v1013, %v1683
    %vm1685 = vmor %vm1667, %vm1684
    %v1686 = vsel %vm1685, %v1010, 1e+30
    %v1687 = vsel %vm1685, %v1037, -1e+30
    %v1688 = vsel %vm1039, %v1687, -inf
    %1689 = vmax.xlane.f32.xlu0 %v1688
    %v1690 = vpop.xlane.xlu0 %1689
    %v1691 = vsub.f32 %v1687, %v1690
    %v1692 = vmul.f32 %v1691, 1.442695
    %v1693 = vpow.pop %v1692
    %v1694 = vsel %vm1685, %v1693, 0.0
    %v1695 = vsel %vm1039, %v1694, 0.0
    %1696 = vadd.xlane.f32.xlu0 %v1695
    %v1697 = vpop.xlane.xlu0 %1696
    %v1698 = vrcp.pop %v1697
    %v1699 = vmul.f32 %v1694, %v1698
    %v1700 = vsel %vm1039, %v1686, inf
    %1701 = vmin.xlane.f32.xlu0 %v1700
    %v1702 = vpop.xlane.xlu0 %1701
    %vm1703 = vcmp.le.f32.partialorder %v1686, %v1702
    %v1704 = vsel %vm1703, %v1012, 16
    %v1705 = vsel %vm1039, %v1704, 2147483647
    %v1706 = vand.u32 %v1705, 65535
    %v1707 = vshra.s32 %v1705, 16
    %v1708 = vcvt.s32.f32 %v1706
    %v1709 = vcvt.s32.f32 %v1707
    %1710 = vmin.xlane.f32.xlu0 %v1709
    %v1711 = vpop.xlane.xlu0 %1710
    %vm1712 = vcmp.eq.f32.partialorder %v1709, %v1711
    %v1713 = vsel %vm1712, %v1708, inf
    %1714 = vmin.xlane.f32.xlu0 %v1713
    %v1715 = vpop.xlane.xlu0 %1714
    %v1716 = vcvt.f32.s32 %v1715
    %v1717 = vcvt.f32.s32 %v1711
    %v1718 = vshll.u32 %v1717, 16
    %v1719 = vadd.s32 %v1718, %v1716
    %v1720 = vsel %vm1039, %v1699, -inf
    %1721 = vmax.xlane.f32.xlu0 %v1720
    %v1722 = vpop.xlane.xlu0 %1721
    %v1723 = vsel %vm1039, %v1699, 0.0
    %1724 = vadd.xlane.f32.xlu0 %v1723
    %v1725 = vpop.xlane.xlu0 %1724
    %v1726 = vrcp.pop %v1725
    %v1727 = vmul.f32 %v1722, %v1726
    %vm1728 = vcmp.ne.s32.totalorder %v1719, %v1683
    %v1729 = vadd.f32 %v1727, 0.0001
    %v1730 = vlog2.pop %v1729
    %v1731 = vmul.f32 %v1730, 0.6931472
    %v1732 = vsel %vm1728, %v1731, 0.0
    %v1733 = vadd.f32 %v1661, %v1732
    %vm1734 = vcmp.eq.s32.totalorder %v1012, %v1719
    %v1735 = vsel %vm1734, 1, 0
    %v1736 = vsel %vm1728, 1, 0
    %vm1737 = vcmp.eq.s32.totalorder %v1736, 1
    %v1738 = vsel %vm1737, %v1735, %v1666
    %vm1739 = vcmp.gt.s32.totalorder %v1738, 0
    %v1740 = vsel %vm1739, %v1012, 16
    %v1741 = vsel %vm1039, %v1740, 2147483647
    %v1742 = vand.u32 %v1741, 65535
    %v1743 = vshra.s32 %v1741, 16
    %v1744 = vcvt.s32.f32 %v1742
    %v1745 = vcvt.s32.f32 %v1743
    %1746 = vmin.xlane.f32.xlu0 %v1745
    %v1747 = vpop.xlane.xlu0 %1746
    %vm1748 = vcmp.eq.f32.partialorder %v1745, %v1747
    %v1749 = vsel %vm1748, %v1744, inf
    %1750 = vmin.xlane.f32.xlu0 %v1749
    %v1751 = vpop.xlane.xlu0 %1750
    %v1752 = vcvt.f32.s32 %v1751
    %v1753 = vcvt.f32.s32 %v1747
    %v1754 = vshll.u32 %v1753, 16
    %v1755 = vadd.s32 %v1754, %v1752
    %vm1756 = vcmp.eq.s32.totalorder %v1013, %v1755
    %vm1757 = vmor %vm1739, %vm1756
    %v1758 = vsel %vm1757, %v1010, 1e+30
    %v1759 = vsel %vm1757, %v1037, -1e+30
    %v1760 = vsel %vm1039, %v1759, -inf
    %1761 = vmax.xlane.f32.xlu0 %v1760
    %v1762 = vpop.xlane.xlu0 %1761
    %v1763 = vsub.f32 %v1759, %v1762
    %v1764 = vmul.f32 %v1763, 1.442695
    %v1765 = vpow.pop %v1764
    %v1766 = vsel %vm1757, %v1765, 0.0
    %v1767 = vsel %vm1039, %v1766, 0.0
    %1768 = vadd.xlane.f32.xlu0 %v1767
    %v1769 = vpop.xlane.xlu0 %1768
    %v1770 = vrcp.pop %v1769
    %v1771 = vmul.f32 %v1766, %v1770
    %v1772 = vsel %vm1039, %v1758, inf
    %1773 = vmin.xlane.f32.xlu0 %v1772
    %v1774 = vpop.xlane.xlu0 %1773
    %vm1775 = vcmp.le.f32.partialorder %v1758, %v1774
    %v1776 = vsel %vm1775, %v1012, 16
    %v1777 = vsel %vm1039, %v1776, 2147483647
    %v1778 = vand.u32 %v1777, 65535
    %v1779 = vshra.s32 %v1777, 16
    %v1780 = vcvt.s32.f32 %v1778
    %v1781 = vcvt.s32.f32 %v1779
    %1782 = vmin.xlane.f32.xlu0 %v1781
    %v1783 = vpop.xlane.xlu0 %1782
    %vm1784 = vcmp.eq.f32.partialorder %v1781, %v1783
    %v1785 = vsel %vm1784, %v1780, inf
    %1786 = vmin.xlane.f32.xlu0 %v1785
    %v1787 = vpop.xlane.xlu0 %1786
    %v1788 = vcvt.f32.s32 %v1787
    %v1789 = vcvt.f32.s32 %v1783
    %v1790 = vshll.u32 %v1789, 16
    %v1791 = vadd.s32 %v1790, %v1788
    %v1792 = vsel %vm1039, %v1771, -inf
    %1793 = vmax.xlane.f32.xlu0 %v1792
    %v1794 = vpop.xlane.xlu0 %1793
    %v1795 = vsel %vm1039, %v1771, 0.0
    %1796 = vadd.xlane.f32.xlu0 %v1795
    %v1797 = vpop.xlane.xlu0 %1796
    %v1798 = vrcp.pop %v1797
    %v1799 = vmul.f32 %v1794, %v1798
    %vm1800 = vcmp.ne.s32.totalorder %v1791, %v1755
    %v1801 = vadd.f32 %v1799, 0.0001
    %v1802 = vlog2.pop %v1801
    %v1803 = vmul.f32 %v1802, 0.6931472
    %v1804 = vsel %vm1800, %v1803, 0.0
    %v1805 = vadd.f32 %v1733, %v1804
    %vm1806 = vcmp.eq.s32.totalorder %v1012, %v1791
    %v1807 = vsel %vm1806, 1, 0
    %v1808 = vsel %vm1800, 1, 0
    %vm1809 = vcmp.eq.s32.totalorder %v1808, 1
    %v1810 = vsel %vm1809, %v1807, %v1738
    %vm1811 = vcmp.gt.s32.totalorder %v1810, 0
    %v1812 = vsel %vm1811, %v1012, 16
    %v1813 = vsel %vm1039, %v1812, 2147483647
    %v1814 = vand.u32 %v1813, 65535
    %v1815 = vshra.s32 %v1813, 16
    %v1816 = vcvt.s32.f32 %v1814
    %v1817 = vcvt.s32.f32 %v1815
    %1818 = vmin.xlane.f32.xlu0 %v1817
    %v1819 = vpop.xlane.xlu0 %1818
    %vm1820 = vcmp.eq.f32.partialorder %v1817, %v1819
    %v1821 = vsel %vm1820, %v1816, inf
    %1822 = vmin.xlane.f32.xlu0 %v1821
    %v1823 = vpop.xlane.xlu0 %1822
    %v1824 = vcvt.f32.s32 %v1823
    %v1825 = vcvt.f32.s32 %v1819
    %v1826 = vshll.u32 %v1825, 16
    %v1827 = vadd.s32 %v1826, %v1824
    %vm1828 = vcmp.eq.s32.totalorder %v1013, %v1827
    %vm1829 = vmor %vm1811, %vm1828
    %v1830 = vsel %vm1829, %v1010, 1e+30
    %v1831 = vsel %vm1829, %v1037, -1e+30
    %v1832 = vsel %vm1039, %v1831, -inf
    %1833 = vmax.xlane.f32.xlu0 %v1832
    %v1834 = vpop.xlane.xlu0 %1833
    %v1835 = vsub.f32 %v1831, %v1834
    %v1836 = vmul.f32 %v1835, 1.442695
    %v1837 = vpow.pop %v1836
    %v1838 = vsel %vm1829, %v1837, 0.0
    %v1839 = vsel %vm1039, %v1838, 0.0
    %1840 = vadd.xlane.f32.xlu0 %v1839
    %v1841 = vpop.xlane.xlu0 %1840
    %v1842 = vrcp.pop %v1841
    %v1843 = vmul.f32 %v1838, %v1842
    %v1844 = vsel %vm1039, %v1830, inf
    %1845 = vmin.xlane.f32.xlu0 %v1844
    %v1846 = vpop.xlane.xlu0 %1845
    %vm1847 = vcmp.le.f32.partialorder %v1830, %v1846
    %v1848 = vsel %vm1847, %v1012, 16
    %v1849 = vsel %vm1039, %v1848, 2147483647
    %v1850 = vand.u32 %v1849, 65535
    %v1851 = vshra.s32 %v1849, 16
    %v1852 = vcvt.s32.f32 %v1850
    %v1853 = vcvt.s32.f32 %v1851
    %1854 = vmin.xlane.f32.xlu0 %v1853
    %v1855 = vpop.xlane.xlu0 %1854
    %vm1856 = vcmp.eq.f32.partialorder %v1853, %v1855
    %v1857 = vsel %vm1856, %v1852, inf
    %1858 = vmin.xlane.f32.xlu0 %v1857
    %v1859 = vpop.xlane.xlu0 %1858
    %v1860 = vcvt.f32.s32 %v1859
    %v1861 = vcvt.f32.s32 %v1855
    %v1862 = vshll.u32 %v1861, 16
    %v1863 = vadd.s32 %v1862, %v1860
    %v1864 = vsel %vm1039, %v1843, -inf
    %1865 = vmax.xlane.f32.xlu0 %v1864
    %v1866 = vpop.xlane.xlu0 %1865
    %v1867 = vsel %vm1039, %v1843, 0.0
    %1868 = vadd.xlane.f32.xlu0 %v1867
    %v1869 = vpop.xlane.xlu0 %1868
    %v1870 = vrcp.pop %v1869
    %v1871 = vmul.f32 %v1866, %v1870
    %vm1872 = vcmp.ne.s32.totalorder %v1863, %v1827
    %v1873 = vadd.f32 %v1871, 0.0001
    %v1874 = vlog2.pop %v1873
    %v1875 = vmul.f32 %v1874, 0.6931472
    %v1876 = vsel %vm1872, %v1875, 0.0
    %v1877 = vadd.f32 %v1805, %v1876
    %vm1878 = vcmp.eq.s32.totalorder %v1012, %v1863
    %v1879 = vsel %vm1878, 1, 0
    %v1880 = vsel %vm1872, 1, 0
    %vm1881 = vcmp.eq.s32.totalorder %v1880, 1
    %v1882 = vsel %vm1881, %v1879, %v1810
    %vm1883 = vcmp.gt.s32.totalorder %v1882, 0
    %v1884 = vsel %vm1883, %v1012, 16
    %v1885 = vsel %vm1039, %v1884, 2147483647
    %v1886 = vand.u32 %v1885, 65535
    %v1887 = vshra.s32 %v1885, 16
    %v1888 = vcvt.s32.f32 %v1886
    %v1889 = vcvt.s32.f32 %v1887
    %1890 = vmin.xlane.f32.xlu0 %v1889
    %v1891 = vpop.xlane.xlu0 %1890
    %vm1892 = vcmp.eq.f32.partialorder %v1889, %v1891
    %v1893 = vsel %vm1892, %v1888, inf
    %1894 = vmin.xlane.f32.xlu0 %v1893
    %v1895 = vpop.xlane.xlu0 %1894
    %v1896 = vcvt.f32.s32 %v1895
    %v1897 = vcvt.f32.s32 %v1891
    %v1898 = vshll.u32 %v1897, 16
    %v1899 = vadd.s32 %v1898, %v1896
    %vm1900 = vcmp.eq.s32.totalorder %v1013, %v1899
    %vm1901 = vmor %vm1883, %vm1900
    %v1902 = vsel %vm1901, %v1010, 1e+30
    %v1903 = vsel %vm1901, %v1037, -1e+30
    %v1904 = vsel %vm1039, %v1903, -inf
    %1905 = vmax.xlane.f32.xlu0 %v1904
    %v1906 = vpop.xlane.xlu0 %1905
    %v1907 = vsub.f32 %v1903, %v1906
    %v1908 = vmul.f32 %v1907, 1.442695
    %v1909 = vpow.pop %v1908
    %v1910 = vsel %vm1901, %v1909, 0.0
    %v1911 = vsel %vm1039, %v1910, 0.0
    %1912 = vadd.xlane.f32.xlu0 %v1911
    %v1913 = vpop.xlane.xlu0 %1912
    %v1914 = vrcp.pop %v1913
    %v1915 = vmul.f32 %v1910, %v1914
    %v1916 = vsel %vm1039, %v1902, inf
    %1917 = vmin.xlane.f32.xlu0 %v1916
    %v1918 = vpop.xlane.xlu0 %1917
    %vm1919 = vcmp.le.f32.partialorder %v1902, %v1918
    %v1920 = vsel %vm1919, %v1012, 16
    %v1921 = vsel %vm1039, %v1920, 2147483647
    %v1922 = vand.u32 %v1921, 65535
    %v1923 = vshra.s32 %v1921, 16
    %v1924 = vcvt.s32.f32 %v1922
    %v1925 = vcvt.s32.f32 %v1923
    %1926 = vmin.xlane.f32.xlu0 %v1925
    %v1927 = vpop.xlane.xlu0 %1926
    %vm1928 = vcmp.eq.f32.partialorder %v1925, %v1927
    %v1929 = vsel %vm1928, %v1924, inf
    %1930 = vmin.xlane.f32.xlu0 %v1929
    %v1931 = vpop.xlane.xlu0 %1930
    %v1932 = vcvt.f32.s32 %v1931
    %v1933 = vcvt.f32.s32 %v1927
    %v1934 = vshll.u32 %v1933, 16
    %v1935 = vadd.s32 %v1934, %v1932
    %v1936 = vsel %vm1039, %v1915, -inf
    %1937 = vmax.xlane.f32.xlu0 %v1936
    %v1938 = vpop.xlane.xlu0 %1937
    %v1939 = vsel %vm1039, %v1915, 0.0
    %1940 = vadd.xlane.f32.xlu0 %v1939
    %v1941 = vpop.xlane.xlu0 %1940
    %v1942 = vrcp.pop %v1941
    %v1943 = vmul.f32 %v1938, %v1942
    %vm1944 = vcmp.ne.s32.totalorder %v1935, %v1899
    %v1945 = vadd.f32 %v1943, 0.0001
    %v1946 = vlog2.pop %v1945
    %v1947 = vmul.f32 %v1946, 0.6931472
    %v1948 = vsel %vm1944, %v1947, 0.0
    %v1949 = vadd.f32 %v1877, %v1948
    %vm1950 = vcmp.eq.s32.totalorder %v1012, %v1935
    %v1951 = vsel %vm1950, 1, 0
    %v1952 = vsel %vm1944, 1, 0
    %vm1953 = vcmp.eq.s32.totalorder %v1952, 1
    %v1954 = vsel %vm1953, %v1951, %v1882
    %vm1955 = vcmp.gt.s32.totalorder %v1954, 0
    %v1956 = vsel %vm1955, %v1012, 16
    %v1957 = vsel %vm1039, %v1956, 2147483647
    %v1958 = vand.u32 %v1957, 65535
    %v1959 = vshra.s32 %v1957, 16
    %v1960 = vcvt.s32.f32 %v1958
    %v1961 = vcvt.s32.f32 %v1959
    %1962 = vmin.xlane.f32.xlu0 %v1961
    %v1963 = vpop.xlane.xlu0 %1962
    %vm1964 = vcmp.eq.f32.partialorder %v1961, %v1963
    %v1965 = vsel %vm1964, %v1960, inf
    %1966 = vmin.xlane.f32.xlu0 %v1965
    %v1967 = vpop.xlane.xlu0 %1966
    %v1968 = vcvt.f32.s32 %v1967
    %v1969 = vcvt.f32.s32 %v1963
    %v1970 = vshll.u32 %v1969, 16
    %v1971 = vadd.s32 %v1970, %v1968
    %vm1972 = vcmp.eq.s32.totalorder %v1013, %v1971
    %vm1973 = vmor %vm1955, %vm1972
    %v1974 = vsel %vm1973, %v1010, 1e+30
    %v1975 = vsel %vm1973, %v1037, -1e+30
    %v1976 = vsel %vm1039, %v1975, -inf
    %1977 = vmax.xlane.f32.xlu0 %v1976
    %v1978 = vpop.xlane.xlu0 %1977
    %v1979 = vsub.f32 %v1975, %v1978
    %v1980 = vmul.f32 %v1979, 1.442695
    %v1981 = vpow.pop %v1980
    %v1982 = vsel %vm1973, %v1981, 0.0
    %v1983 = vsel %vm1039, %v1982, 0.0
    %1984 = vadd.xlane.f32.xlu0 %v1983
    %v1985 = vpop.xlane.xlu0 %1984
    %v1986 = vrcp.pop %v1985
    %v1987 = vmul.f32 %v1982, %v1986
    %v1988 = vsel %vm1039, %v1974, inf
    %1989 = vmin.xlane.f32.xlu0 %v1988
    %v1990 = vpop.xlane.xlu0 %1989
    %vm1991 = vcmp.le.f32.partialorder %v1974, %v1990
    %v1992 = vsel %vm1991, %v1012, 16
    %v1993 = vsel %vm1039, %v1992, 2147483647
    %v1994 = vand.u32 %v1993, 65535
    %v1995 = vshra.s32 %v1993, 16
    %v1996 = vcvt.s32.f32 %v1994
    %v1997 = vcvt.s32.f32 %v1995
    %1998 = vmin.xlane.f32.xlu0 %v1997
    %v1999 = vpop.xlane.xlu0 %1998
    %vm2000 = vcmp.eq.f32.partialorder %v1997, %v1999
    %v2001 = vsel %vm2000, %v1996, inf
    %2002 = vmin.xlane.f32.xlu0 %v2001
    %v2003 = vpop.xlane.xlu0 %2002
    %v2004 = vcvt.f32.s32 %v2003
    %v2005 = vcvt.f32.s32 %v1999
    %v2006 = vshll.u32 %v2005, 16
    %v2007 = vadd.s32 %v2006, %v2004
    %v2008 = vsel %vm1039, %v1987, -inf
    %2009 = vmax.xlane.f32.xlu0 %v2008
    %v2010 = vpop.xlane.xlu0 %2009
    %v2011 = vsel %vm1039, %v1987, 0.0
    %2012 = vadd.xlane.f32.xlu0 %v2011
    %v2013 = vpop.xlane.xlu0 %2012
    %v2014 = vrcp.pop %v2013
    %v2015 = vmul.f32 %v2010, %v2014
    %vm2016 = vcmp.ne.s32.totalorder %v2007, %v1971
    %v2017 = vadd.f32 %v2015, 0.0001
    %v2018 = vlog2.pop %v2017
    %v2019 = vmul.f32 %v2018, 0.6931472
    %v2020 = vsel %vm2016, %v2019, 0.0
    %v2021 = vadd.f32 %v1949, %v2020
    %vm2022 = vcmp.eq.s32.totalorder %v1012, %v2007
    %v2023 = vsel %vm2022, 1, 0
    %v2024 = vsel %vm2016, 1, 0
    %vm2025 = vcmp.eq.s32.totalorder %v2024, 1
    %v2026 = vsel %vm2025, %v2023, %v1954
    %vm2027 = vcmp.gt.s32.totalorder %v2026, 0
    %v2028 = vsel %vm2027, %v1012, 16
    %v2029 = vsel %vm1039, %v2028, 2147483647
    %v2030 = vand.u32 %v2029, 65535
    %v2031 = vshra.s32 %v2029, 16
    %v2032 = vcvt.s32.f32 %v2030
    %v2033 = vcvt.s32.f32 %v2031
    %2034 = vmin.xlane.f32.xlu0 %v2033
    %v2035 = vpop.xlane.xlu0 %2034
    %vm2036 = vcmp.eq.f32.partialorder %v2033, %v2035
    %v2037 = vsel %vm2036, %v2032, inf
    %2038 = vmin.xlane.f32.xlu0 %v2037
    %v2039 = vpop.xlane.xlu0 %2038
    %v2040 = vcvt.f32.s32 %v2039
    %v2041 = vcvt.f32.s32 %v2035
    %v2042 = vshll.u32 %v2041, 16
    %v2043 = vadd.s32 %v2042, %v2040
    %vm2044 = vcmp.eq.s32.totalorder %v1013, %v2043
    %vm2045 = vmor %vm2027, %vm2044
    %v2046 = vsel %vm2045, %v1010, 1e+30
    %v2047 = vsel %vm2045, %v1037, -1e+30
    %v2048 = vsel %vm1039, %v2047, -inf
    %2049 = vmax.xlane.f32.xlu0 %v2048
    %v2050 = vpop.xlane.xlu0 %2049
    %v2051 = vsub.f32 %v2047, %v2050
    %v2052 = vmul.f32 %v2051, 1.442695
    %v2053 = vpow.pop %v2052
    %v2054 = vsel %vm2045, %v2053, 0.0
    %v2055 = vsel %vm1039, %v2054, 0.0
    %2056 = vadd.xlane.f32.xlu0 %v2055
    %v2057 = vpop.xlane.xlu0 %2056
    %v2058 = vrcp.pop %v2057
    %v2059 = vmul.f32 %v2054, %v2058
    %v2060 = vsel %vm1039, %v2046, inf
    %2061 = vmin.xlane.f32.xlu0 %v2060
    %v2062 = vpop.xlane.xlu0 %2061
    %vm2063 = vcmp.le.f32.partialorder %v2046, %v2062
    %v2064 = vsel %vm2063, %v1012, 16
    %v2065 = vsel %vm1039, %v2064, 2147483647
    %v2066 = vand.u32 %v2065, 65535
    %v2067 = vshra.s32 %v2065, 16
    %v2068 = vcvt.s32.f32 %v2066
    %v2069 = vcvt.s32.f32 %v2067
    %2070 = vmin.xlane.f32.xlu0 %v2069
    %v2071 = vpop.xlane.xlu0 %2070
    %vm2072 = vcmp.eq.f32.partialorder %v2069, %v2071
    %v2073 = vsel %vm2072, %v2068, inf
    %2074 = vmin.xlane.f32.xlu0 %v2073
    %v2075 = vpop.xlane.xlu0 %2074
    %v2076 = vcvt.f32.s32 %v2075
    %v2077 = vcvt.f32.s32 %v2071
    %v2078 = vshll.u32 %v2077, 16
    %v2079 = vadd.s32 %v2078, %v2076
    %v2080 = vsel %vm1039, %v2059, -inf
    %2081 = vmax.xlane.f32.xlu0 %v2080
    %v2082 = vpop.xlane.xlu0 %2081
    %v2083 = vsel %vm1039, %v2059, 0.0
    %2084 = vadd.xlane.f32.xlu0 %v2083
    %v2085 = vpop.xlane.xlu0 %2084
    %v2086 = vrcp.pop %v2085
    %v2087 = vmul.f32 %v2082, %v2086
    %vm2088 = vcmp.ne.s32.totalorder %v2079, %v2043
    %v2089 = vadd.f32 %v2087, 0.0001
    %v2090 = vlog2.pop %v2089
    %v2091 = vmul.f32 %v2090, 0.6931472
    %v2092 = vsel %vm2088, %v2091, 0.0
    %v2093 = vadd.f32 %v2021, %v2092
    %vm2094 = vcmp.eq.s32.totalorder %v1012, %v2079
    %v2095 = vsel %vm2094, 1, 0
    %v2096 = vsel %vm2088, 1, 0
    %vm2097 = vcmp.eq.s32.totalorder %v2096, 1
    %v2098 = vsel %vm2097, %v2095, %v2026
    %vm2099 = vcmp.gt.s32.totalorder %v2098, 0
    %v2100 = vsel %vm2099, %v1012, 16
    %v2101 = vsel %vm1039, %v2100, 2147483647
    %v2102 = vand.u32 %v2101, 65535
    %v2103 = vshra.s32 %v2101, 16
    %v2104 = vcvt.s32.f32 %v2102
    %v2105 = vcvt.s32.f32 %v2103
    %2106 = vmin.xlane.f32.xlu0 %v2105
    %v2107 = vpop.xlane.xlu0 %2106
    %vm2108 = vcmp.eq.f32.partialorder %v2105, %v2107
    %v2109 = vsel %vm2108, %v2104, inf
    %2110 = vmin.xlane.f32.xlu0 %v2109
    %v2111 = vpop.xlane.xlu0 %2110
    %v2112 = vcvt.f32.s32 %v2111
    %v2113 = vcvt.f32.s32 %v2107
    %v2114 = vshll.u32 %v2113, 16
    %v2115 = vadd.s32 %v2114, %v2112
    %vm2116 = vcmp.eq.s32.totalorder %v1013, %v2115
    %vm2117 = vmor %vm2099, %vm2116
    %v2118 = vsel %vm2117, %v1010, 1e+30
    %v2119 = vsel %vm2117, %v1037, -1e+30
    %v2120 = vsel %vm1039, %v2119, -inf
    %2121 = vmax.xlane.f32.xlu0 %v2120
    %v2122 = vpop.xlane.xlu0 %2121
    %v2123 = vsub.f32 %v2119, %v2122
    %v2124 = vmul.f32 %v2123, 1.442695
    %v2125 = vpow.pop %v2124
    %v2126 = vsel %vm2117, %v2125, 0.0
    %v2127 = vsel %vm1039, %v2126, 0.0
    %2128 = vadd.xlane.f32.xlu0 %v2127
    %v2129 = vpop.xlane.xlu0 %2128
    %v2130 = vrcp.pop %v2129
    %v2131 = vmul.f32 %v2126, %v2130
    %v2132 = vsel %vm1039, %v2118, inf
    %2133 = vmin.xlane.f32.xlu0 %v2132
    %v2134 = vpop.xlane.xlu0 %2133
    %vm2135 = vcmp.le.f32.partialorder %v2118, %v2134
    %v2136 = vsel %vm2135, %v1012, 16
    %v2137 = vsel %vm1039, %v2136, 2147483647
    %v2138 = vand.u32 %v2137, 65535
    %v2139 = vshra.s32 %v2137, 16
    %v2140 = vcvt.s32.f32 %v2138
    %v2141 = vcvt.s32.f32 %v2139
    %2142 = vmin.xlane.f32.xlu0 %v2141
    %v2143 = vpop.xlane.xlu0 %2142
    %vm2144 = vcmp.eq.f32.partialorder %v2141, %v2143
    %v2145 = vsel %vm2144, %v2140, inf
    %2146 = vmin.xlane.f32.xlu0 %v2145
    %v2147 = vpop.xlane.xlu0 %2146
    %v2148 = vcvt.f32.s32 %v2147
    %v2149 = vcvt.f32.s32 %v2143
    %v2150 = vshll.u32 %v2149, 16
    %v2151 = vadd.s32 %v2150, %v2148
    %v2152 = vsel %vm1039, %v2131, -inf
    %2153 = vmax.xlane.f32.xlu0 %v2152
    %v2154 = vpop.xlane.xlu0 %2153
    %v2155 = vsel %vm1039, %v2131, 0.0
    %2156 = vadd.xlane.f32.xlu0 %v2155
    %v2157 = vpop.xlane.xlu0 %2156
    %v2158 = vrcp.pop %v2157
    %v2159 = vmul.f32 %v2154, %v2158
    %vm2160 = vcmp.ne.s32.totalorder %v2151, %v2115
    %v2161 = vadd.f32 %v2159, 0.0001
    %v2162 = vlog2.pop %v2161
    %v2163 = vmul.f32 %v2162, 0.6931472
    %v2164 = vsel %vm2160, %v2163, 0.0
    %v2165 = vadd.f32 %v2093, %v2164
    %vm2166 = vcmp.eq.s32.totalorder %v1012, %v2151
    %v2167 = vsel %vm2166, 1, 0
    %v2168 = vsel %vm2160, 1, 0
    %vm2169 = vcmp.eq.s32.totalorder %v2168, 1
    %v2170 = vsel %vm2169, %v2167, %v2098
    %vm2171 = vcmp.gt.s32.totalorder %v2170, 0
    %v2172 = vsel %vm2171, %v1012, 16
    %v2173 = vsel %vm1039, %v2172, 2147483647
    %v2174 = vand.u32 %v2173, 65535
    %v2175 = vshra.s32 %v2173, 16
    %v2176 = vcvt.s32.f32 %v2174
    %v2177 = vcvt.s32.f32 %v2175
    %2178 = vmin.xlane.f32.xlu0 %v2177
    %v2179 = vpop.xlane.xlu0 %2178
    %vm2180 = vcmp.eq.f32.partialorder %v2177, %v2179
    %v2181 = vsel %vm2180, %v2176, inf
    %2182 = vmin.xlane.f32.xlu0 %v2181
    %v2183 = vpop.xlane.xlu0 %2182
    %v2184 = vcvt.f32.s32 %v2183
    %v2185 = vcvt.f32.s32 %v2179
    %v2186 = vshll.u32 %v2185, 16
    %v2187 = vadd.s32 %v2186, %v2184
    %v2188 = vsel %vm2171, %v1013, 16
    %v2189 = vsel %vm1039, %v2188, 2147483647
    %v2190 = vand.u32 %v2189, 65535
    %v2191 = vshra.s32 %v2189, 16
    %v2192 = vcvt.s32.f32 %v2190
    %v2193 = vcvt.s32.f32 %v2191
    %2194 = vmin.xlane.f32.xlu0 %v2193
    %v2195 = vpop.xlane.xlu0 %2194
    %vm2196 = vcmp.eq.f32.partialorder %v2193, %v2195
    %v2197 = vsel %vm2196, %v2192, inf
    %2198 = vmin.xlane.f32.xlu0 %v2197
    %v2199 = vpop.xlane.xlu0 %2198
    %v2200 = vcvt.f32.s32 %v2199
    %v2201 = vcvt.f32.s32 %v2195
    %v2202 = vshll.u32 %v2201, 16
    %v2203 = vadd.s32 %v2202, %v2200
    %vm2204 = vcmp.ge.s32.totalorder %v2203, 0
    %v2205 = vsel %vm2204, %v2203, %v2187
    %vm2206 = vcmp.eq.s32.totalorder %v1012, %v2205
    %vm2207 = vcmp.eq.s32.totalorder %v1013, %v2205
    %vm2208 = vmor %vm2206, %vm2207
    %v2209 = vsel %vm2208, %v1037, -1e+30
    %v2210 = vsel %vm1039, %v2209, -inf
    %2211 = vmax.xlane.f32.xlu0 %v2210
    %v2212 = vpop.xlane.xlu0 %2211
    %v2213 = vsub.f32 %v2209, %v2212
    %v2214 = vmul.f32 %v2213, 1.442695
    %v2215 = vpow.pop %v2214
    %v2216 = vsel %vm2208, %v2215, 0.0
    %v2217 = vsel %vm1039, %v2216, 0.0
    %2218 = vadd.xlane.f32.xlu0 %v2217
    %v2219 = vpop.xlane.xlu0 %2218
    %v2220 = vrcp.pop %v2219
    %v2221 = vmul.f32 %v2216, %v2220
    %v2222 = vld [vmem:[%s2] sm:$0xff]
    %v2223 = vld [vmem:[%s2 + $0x8] sm:$0xff]
    %v2225 = vsel %vm1018, %v2221, 0
    %2227 = vmatprep.subr.mxu0 0.0
    %2228 = vmatpush1.msra.mxu0 0.0
    %2229 = vmatprep.subr.mxu0 0.0
    %2230 = vmatpush1.msra.mxu0 0.0
    %2231 = vmatprep.subr.mxu0 0.0
    %2232 = vmatpush1.msra.mxu0 0.0
    %2233 = vmatprep.subr.mxu0 0.0
    %2234 = vmatpush1.msra.mxu0 0.0
    %2235 = vmatprep.subr.mxu0 0.0
    %2236 = vmatpush1.msra.mxu0 0.0
    %2237 = vmatprep.subr.mxu0 0.0
    %2238 = vmatpush1.msra.mxu0 0.0
    %2239 = vmatprep.subr.mxu0 0.0
    %2240 = vmatpush1.msra.mxu0 0.0
    %2241 = vmatprep.subr.mxu0 0.0
    %2242 = vmatpush1.msra.mxu0 0.0
    %2243 = vmatprep.subr.mxu0 0.0
    %2244 = vmatpush1.msra.mxu0 0.0
    %2245 = vmatprep.subr.mxu0 0.0
    %2246 = vmatpush1.msra.mxu0 0.0
    %2247 = vmatprep.subr.mxu0 0.0
    %2248 = vmatpush1.msra.mxu0 0.0
    %2249 = vmatprep.subr.mxu0 0.0
    %2250 = vmatpush1.msra.mxu0 0.0
    %2251 = vmatprep.subr.mxu0 0.0
    %2252 = vmatpush1.msra.mxu0 0.0
    %2253 = vmatprep.subr.mxu0 0.0
    %2254 = vmatpush1.msra.mxu0 0.0
    %2255 = vmatprep.subr.mxu0 0.0
    %2256 = vmatpush1.msra.mxu0 %v2223
    %2257 = vmatprep.subr.mxu0 0.0
    %2258 = vmatpush1.msra.mxu0 %v2222
    %2259 = vmatprep.subr.mxu0 0.0
    %2260 = vmatpush2.msra.mxu0 0.0
    %2261 = vmatprep.subr.mxu0 0.0
    %2262 = vmatpush2.msra.mxu0 0.0
    %2263 = vmatprep.subr.mxu0 0.0
    %2264 = vmatpush2.msra.mxu0 0.0
    %2265 = vmatprep.subr.mxu0 0.0
    %2266 = vmatpush2.msra.mxu0 0.0
    %2267 = vmatprep.subr.mxu0 0.0
    %2268 = vmatpush2.msra.mxu0 0.0
    %2269 = vmatprep.subr.mxu0 0.0
    %2270 = vmatpush2.msra.mxu0 0.0
    %2271 = vmatprep.subr.mxu0 0.0
    %2272 = vmatpush2.msra.mxu0 0.0
    %2273 = vmatprep.subr.mxu0 0.0
    %2274 = vmatpush2.msra.mxu0 0.0
    %2275 = vmatprep.subr.mxu0 0.0
    %2276 = vmatpush2.msra.mxu0 0.0
    %2277 = vmatprep.subr.mxu0 0.0
    %2278 = vmatpush2.msra.mxu0 0.0
    %2279 = vmatprep.subr.mxu0 0.0
    %2280 = vmatpush2.msra.mxu0 0.0
    %2281 = vmatprep.subr.mxu0 0.0
    %2282 = vmatpush2.msra.mxu0 0.0
    %2283 = vmatprep.subr.mxu0 0.0
    %2284 = vmatpush2.msra.mxu0 0.0
    %2285 = vmatprep.subr.mxu0 0.0
    %2286 = vmatpush2.msra.mxu0 0.0
    %2287 = vmatprep.subr.mxu0 0.0
    %2288 = vmatpush2.msra.mxu0 0.0
    %2289 = vmatprep.subr.mxu0 0.0
    %2290 = vmatpush2.msra.mxu0 0.0
    %2291 = vmatprep.mubr.f32.mxu0 0.0
    %2292 = vmatmul.mubr.f32.gmra.mxu0 %v2225
    %v2293 = vpop.f32.mrf.mxu0
    %v2294 = vadd.f32 0.0001, %v2293
    %v2295 = vpop.f32.mrf.mxu0
    %2296 = vdwg.mxu0
    %v2297 = vlog2.pop %v2294
    %v2298 = vmul.f32 %v2297, 0.6931472
    %v2299 = vadd.f32 %v2298, %v2165
    %vm2300 = vcmask 16384
    %2301 = vst.msk [vmem:[#allocation2] sm:$0x1] %vm2300, %v2299
    %vm2302 = vcmask 0
    %2303 = vst.msk [vmem:[#allocation4] sm:$0x1] %vm2302, %v2187
    // Predicated region
    $region46: #{tpu_custom_call.1} parent=1 // pred_check
      _
    $region47: #{tpu_custom_call.1} parent=1 // pred_check_branch
      %2305 = sbr.rel (0) target = $region49
    $region48: #{tpu_custom_call.1} parent=1 // pred_region
      %s2307 = ssub.s32 16, 16
      %2308 = vsyncadd [#allocation3], %s2307
      %s2310 = sshll.u32 [#allocation2], 4
      %s2311 = int_to_ptr.vmem [resolvable:$true] %s2310
      %2313 = dma.vmem_to_hbm [thread:$0]  %s2311, 16, %s11, [#allocation3]
    $region49: #{tpu_custom_call.1} parent=1 // pred_fallthru
      _
    // Predicated region
    $region50: #{tpu_custom_call.1} parent=1 // pred_check
      _
    $region51: #{tpu_custom_call.1} parent=1 // pred_check_branch
      %2315 = sbr.rel (0) target = $region53
    $region52: #{tpu_custom_call.1} parent=1 // pred_region
      %s2317 = ssub.s32 16, 16
      %2318 = vsyncadd [#allocation5], %s2317
      %s2320 = sshll.u32 [#allocation4], 4
      %s2321 = int_to_ptr.vmem [resolvable:$true] %s2320
      %2323 = dma.vmem_to_hbm [thread:$0]  %s2321, 16, %s12, [#allocation5]
    $region53: #{tpu_custom_call.1} parent=1 // pred_fallthru
      _
    // Predicated region
    $region54: #{tpu_custom_call.1} parent=1 // pred_check
      _
    $region55: #{tpu_custom_call.1} parent=1 // pred_check_branch
      %2325 = sbr.rel (0) target = $region57
    $region56: #{tpu_custom_call.1} parent=1 // pred_region
      %2326 = dma.done [#allocation3], 16
    $region57: #{tpu_custom_call.1} parent=1 // pred_fallthru
      _
    // Predicated region
    $region58: #{tpu_custom_call.1} parent=1 // pred_check
      _
    $region59: #{tpu_custom_call.1} parent=1 // pred_check_branch
      %2328 = sbr.rel (0) target = $region61
    $region60: #{tpu_custom_call.1} parent=1 // pred_region
      %2329 = dma.done [#allocation5], 16
    $region61: #{tpu_custom_call.1} parent=1 // pred_fallthru
      _
    %2330 = vsyncpa [#allocation3], 1
    %2331 = vsyncpa [#allocation5], 1

</llo_original>
